<compile_context>
chip_gen: v6e
topology: v6e:2x2x1
jax: 0.10.0
libtpu: 0.0.40
codegen_flags: <defaults>
</compile_context>

<pallas_src>
import math
import functools

import jax
import jax.numpy as jnp
from jax import lax
from jax.experimental import pallas as pl
from jax.experimental.pallas import tpu as pltpu

LATENT = 64          # self.latent_dim
FEATURE_DIM = 256    # self.feature_dim
OUT_DIM = 512        # self.out_dim
NEG = -1e30          # "minus infinity" for masked max / masked ranking
_NT = (((1,), (1,)), ((), ()))   # dot_general dims for A @ B^T (contract dim 1 of both)


# ----------------------------------------------------------------------------
# Kernel 1: ChebConv / TopKPooling / readout pipeline, Gt graphs per grid step
# ----------------------------------------------------------------------------
def _graph_kernel(x_ref, adj_ref, w1_ref, b1_ref, pw1_ref,
                  w2_ref, b2_ref, pw2_ref, out_ref, *, R, k1, k2, Gt):
    f32 = jnp.float32
    bf16 = jnp.bfloat16

    # Loop-invariant constants / weight loads hoisted out of the per-graph loop.
    row_i = lax.broadcasted_iota(jnp.int32, (R, R), 0)
    col_j = lax.broadcasted_iota(jnp.int32, (R, R), 1)
    not_eye = (row_i != col_j).astype(f32)
    ones_r = jnp.ones((R, 1), bf16)
    ones_c = jnp.ones((1, R), bf16)
    w1 = (w1_ref[0], w1_ref[1], w1_ref[2])          # three (fin, 64) bf16 taps
    w2 = (w2_ref[0], w2_ref[1], w2_ref[2])          # three (64, 64)  bf16 taps
    b1 = b1_ref[...]
    pw1 = pw1_ref[...]
    b2 = b2_ref[...]
    pw2 = pw2_ref[...]

    def cheb(h_bf, adj_bf, w_taps, b):
        # ChebConv K=3, sym normalization, lambda_max=2 => Lhat = -D^-1/2 A D^-1/2
        # (zero diagonal).  Degrees via ones-vector MXU matmuls: exact f32
        # accumulation of the bf16 weights, no (R,R) upcast, no cross-sublane reduce.
        deg_r = jnp.dot(adj_bf, ones_r, preferred_element_type=f32)       # (R,1)
        deg_c = jnp.dot(ones_c, adj_bf, preferred_element_type=f32)       # (1,R)
        dinv_r = jnp.where(deg_r > 0.0, lax.rsqrt(deg_r), 0.0)
        dinv_c = jnp.where(deg_c > 0.0, lax.rsqrt(deg_c), 0.0)
        lhat = (-(dinv_r * adj_bf * dinv_c)).astype(bf16)                 # (R,R) bf16
        t0 = h_bf                                                         # (R,fin) bf16
        t1 = jnp.dot(lhat, t0, preferred_element_type=f32)
        t2 = 2.0 * jnp.dot(lhat, t1.astype(bf16), preferred_element_type=f32) \
             - t0.astype(f32)
        # Three accumulated tap matmuls: no lane-axis concat of [t0|t1|t2].
        return (jnp.dot(t0, w_taps[0], preferred_element_type=f32)
                + jnp.dot(t1.astype(bf16), w_taps[1], preferred_element_type=f32)
                + jnp.dot(t2.astype(bf16), w_taps[2], preferred_element_type=f32)
                + b)                                                      # (R,64) f32

    def scores(h, pw):
        # TopKPooling score = sigmoid(h @ (w/||w||)); column via VPU lane-reduce,
        # row via a transpose-free NT matmul on the SAME f32 operands (ulp skew only;
        # ranking just compares scores).
        u_col = jnp.sum(h * pw, axis=-1, keepdims=True)                   # (R,1)
        u_row = lax.dot_general(pw, h, _NT, preferred_element_type=f32)   # (1,R)
        return jax.nn.sigmoid(u_col), jax.nn.sigmoid(u_row)

    def topk_mask(s_col, s_row, k, need_row_mask):
        # rank_i = #{j : s_j > s_i or (s_j == s_i and j < i)}; keep rank < k.
        s_i = jnp.broadcast_to(s_col, (R, R))
        s_j = jnp.broadcast_to(s_row, (R, R))
        beats = jnp.logical_or(
            s_j > s_i, jnp.logical_and(s_j == s_i, col_j < row_i)).astype(f32)
        rank_col = jnp.sum(beats, axis=1, keepdims=True)                  # (R,1)
        mask_col = (rank_col < k).astype(f32)
        if not need_row_mask:
            return mask_col, None
        # Complement of column sums (exact for a 0/1 matrix; bf16 cast is exact).
        rank_row = (R - 1.0) - jnp.dot(ones_c, beats.astype(bf16),
                                       preferred_element_type=f32)        # (1,R)
        return mask_col, (rank_row < k).astype(f32)

    # Static Python loop over the Gt packed graphs (Gt is kept small by the wrapper,
    # so the unroll is cheap and every ref index is static).
    for g in range(Gt):
        x_bf = x_ref[g]        # (R, fin) bf16
        a0 = adj_ref[g]        # (R, R)   bf16, zero diagonal by input contract

        # ---------------- conv1 + pool1 + readout1 ----------------
        h1 = cheb(x_bf, a0, w1, b1)                          # (R, 64)
        s1c, s1r = scores(h1, pw1)
        m1c, m1r = topk_mask(s1c, s1r, k1, need_row_mask=True)
        x1p = h1 * (s1c * m1c)                               # x[perm] * score[perm]
        a1p = a0 * m1c * m1r                                 # filter_adj (f32)
        gmp1 = jnp.max(x1p + (1.0 - m1c) * NEG, axis=0, keepdims=True)   # (1,64)
        gap1 = jnp.sum(x1p, axis=0, keepdims=True) * (1.0 / k1)          # (1,64)

        # -------- augment_adj: (A+I)(A+I) with self loops removed ----------
        a1p_bf = a1p.astype(bf16)
        a_aug = ((jnp.dot(a1p_bf, a1p_bf, preferred_element_type=f32) + 2.0 * a1p)
                 * not_eye).astype(bf16)

        # ---------------- conv2 + pool2 + readout2 ----------------
        h2 = cheb(x1p.astype(bf16), a_aug, w2, b2)           # (R, 64)
        s2c, s2r = scores(h2, pw2)
        s2c_m = jnp.where(m1c > 0.0, s2c, NEG)               # rank only among pool1 survivors
        s2r_m = jnp.where(m1r > 0.0, s2r, NEG)
        m2c, _ = topk_mask(s2c_m, s2r_m, k2, need_row_mask=False)
        x2p = h2 * (s2c * m2c)
        gmp2 = jnp.max(x2p + (1.0 - m2c) * NEG, axis=0, keepdims=True)
        gap2 = jnp.sum(x2p, axis=0, keepdims=True) * (1.0 / k2)

        # (4, 64) sublane-stacked readout; the wrapper reshapes to (G, 256) for free.
        out_ref[g] = jnp.concatenate([gmp1, gap1, gmp2, gap2], axis=0)


def _choose_graphs_per_step(G, R, fin, cap=8):
    # bf16 input bytes per graph; keep each packed input block <= ~4 MiB so even
    # 3-deep buffering stays well inside every generation's scoped-VMEM budget
    # (v5e 16 MiB default, v7x 64 MiB physical).
    per_graph = 2 * (R * R + R * fin)
    gt = max(1, min(G, cap, (4 * 1024 * 1024) // max(per_graph, 1)))
    while gt > 1 and (G // gt) < 2:   # keep >= 2 grid steps (pipeline overlap, v7x 2 TCs)
        gt -= 1
    while G % gt:                     # avoid remainder blocks
        gt -= 1
    return gt


def graphconv_readout(x, adj, p, ratio):
    G, R, fin = x.shape
    k1 = math.ceil(ratio * R)
    k2 = math.ceil(ratio * k1)
    gt = _choose_graphs_per_step(G, R, fin)
    n_steps = G // gt

    # bf16 inputs: halves the dominant per-graph HBM traffic (adj + x); the kernel's
    # matmuls consume bf16 anyway and degree sums re-accumulate in f32.
    x_bf = x.astype(jnp.bfloat16)
    adj_bf = adj.astype(jnp.bfloat16)
    w1 = p["conv1_w"].astype(jnp.bfloat16)     # (3, fin, 64) — three tap weights
    w2 = p["conv2_w"].astype(jnp.bfloat16)     # (3, 64, 64)

    def _io_spec(tail):
        if n_steps >= 3:   # deepen input buffering only when the grid can profit
            return pl.BlockSpec((gt,) + tail, lambda i: (i, 0, 0),
                                pipeline_mode=pl.Buffered(3))
        return pl.BlockSpec((gt,) + tail, lambda i: (i, 0, 0))

    kern = functools.partial(_graph_kernel, R=R, k1=k1, k2=k2, Gt=gt)
    out = pl.pallas_call(
        kern,
        out_shape=jax.ShapeDtypeStruct((G, 4, LATENT), jnp.float32),
        grid=(n_steps,),
        in_specs=[
            _io_spec((R, fin)),
            _io_spec((R, R)),
            pl.BlockSpec((3, fin, LATENT), lambda i: (0, 0, 0)),
            pl.BlockSpec((1, LATENT), lambda i: (0, 0)),
            pl.BlockSpec((1, LATENT), lambda i: (0, 0)),
            pl.BlockSpec((3, LATENT, LATENT), lambda i: (0, 0, 0)),
            pl.BlockSpec((1, LATENT), lambda i: (0, 0)),
            pl.BlockSpec((1, LATENT), lambda i: (0, 0)),
        ],
        out_specs=pl.BlockSpec((gt, 4, LATENT), lambda i: (i, 0, 0)),
        compiler_params=pltpu.CompilerParams(
            dimension_semantics=("parallel",),
            vmem_limit_bytes=32 * 1024 * 1024),
    )(x_bf, adj_bf, w1, p["conv1_b"], p["pool1_w"], w2, p["conv2_b"], p["pool2_w"])
    return out.reshape(G, 4 * LATENT)


# ----------------------------------------------------------------------------
# Kernel 2: fc_encoder + BatchNorm1d(train) + contra_encoder + L2 normalize
#           (single grid step; both views in-kernel, BN statistics per view)
# ----------------------------------------------------------------------------
def _head_kernel(xr_ref, wfc_ref, bfc_ref, gam_ref, bet_ref,
                 wc1_ref, wc2_ref, bc2_ref, feat_ref, out_ref, *, V):
    f32 = jnp.float32
    bf16 = jnp.bfloat16
    wfc = wfc_ref[...]
    bfc = bfc_ref[...]
    gam = gam_ref[...]
    bet = bet_ref[...]
    wc1 = wc1_ref[...]
    wc2 = wc2_ref[...]
    bc2 = bc2_ref[...]
    for v in range(V):                                   # both contrastive views, one step
        x = xr_ref[v]                                    # (B, 256) f32
        h = jnp.maximum(
            jnp.dot(x.astype(bf16), wfc, preferred_element_type=f32) + bfc, 0.0)
        # BatchNorm1d default train mode: biased batch statistics, eps=1e-5 (per view)
        mu = jnp.mean(h, axis=0, keepdims=True)
        var = jnp.mean((h - mu) * (h - mu), axis=0, keepdims=True)
        feat = gam * (h - mu) * lax.rsqrt(var + 1e-5) + bet
        # contra_encoder: Linear(256->64, no bias) -> ReLU -> Linear(64->512)
        z = jnp.maximum(jnp.dot(feat.astype(bf16), wc1, preferred_element_type=f32), 0.0)
        o = jnp.dot(z.astype(bf16), wc2, preferred_element_type=f32) + bc2
        # F.normalize(dim=-1), eps=1e-12:  x / max(||x||, eps) == x * rsqrt(max(||x||^2, eps^2))
        feat_ref[v] = feat * lax.rsqrt(jnp.maximum(
            jnp.sum(feat * feat, axis=-1, keepdims=True), 1e-24))
        out_ref[v] = o * lax.rsqrt(jnp.maximum(
            jnp.sum(o * o, axis=-1, keepdims=True), 1e-24))


def head(xr_views, p):
    # xr_views: (V, B, 4*LATENT); one fused grid step, head weights loaded once.
    V, B, _ = xr_views.shape
    wfc = p["fc_w"].astype(jnp.bfloat16)
    wc1 = p["c1_w"].astype(jnp.bfloat16)
    wc2 = p["c2_w"].astype(jnp.bfloat16)
    kern = functools.partial(_head_kernel, V=V)
    feat, out = pl.pallas_call(
        kern,
        out_shape=(jax.ShapeDtypeStruct((V, B, FEATURE_DIM), jnp.float32),
                   jax.ShapeDtypeStruct((V, B, OUT_DIM), jnp.float32)),
        grid=(1,),
        in_specs=[
            pl.BlockSpec((V, B, 4 * LATENT), lambda i: (0, 0, 0)),
            pl.BlockSpec((4 * LATENT, FEATURE_DIM), lambda i: (0, 0)),
            pl.BlockSpec((1, FEATURE_DIM), lambda i: (0, 0)),
            pl.BlockSpec((1, FEATURE_DIM), lambda i: (0, 0)),
            pl.BlockSpec((1, FEATURE_DIM), lambda i: (0, 0)),
            pl.BlockSpec((FEATURE_DIM, FEATURE_DIM // 4), lambda i: (0, 0)),
            pl.BlockSpec((FEATURE_DIM // 4, OUT_DIM), lambda i: (0, 0)),
            pl.BlockSpec((1, OUT_DIM), lambda i: (0, 0)),
        ],
        out_specs=(pl.BlockSpec((V, B, FEATURE_DIM), lambda i: (0, 0, 0)),
                   pl.BlockSpec((V, B, OUT_DIM), lambda i: (0, 0, 0))),
        compiler_params=pltpu.CompilerParams(dimension_semantics=("arbitrary",)),
    )(xr_views, wfc, p["fc_b"], p["bn_gamma"], p["bn_beta"], wc1, wc2, p["c2_b"])
    return feat, out


# ----------------------------------------------------------------------------
# Module wrapper (forward, return_option='out') + deterministic parameter init
# ----------------------------------------------------------------------------
def init_params(key, indim):
    ks = jax.random.split(key, 9)

    def rnd(k, shape, fan_in):
        return jax.random.normal(k, shape, jnp.float32) / jnp.sqrt(jnp.float32(fan_in))

    p = {}
    p["conv1_w"] = rnd(ks[0], (3, indim, LATENT), indim)        # ChebConv lins (K=3), (in,out)
    p["conv1_b"] = jnp.zeros((1, LATENT), jnp.float32)          # ChebConv bias init = zeros
    pw1 = rnd(ks[1], (1, LATENT), LATENT)
    p["pool1_w"] = pw1 / jnp.sqrt(jnp.sum(pw1 * pw1))           # score uses w/||w||, pre-normalized
    p["conv2_w"] = rnd(ks[2], (3, LATENT, LATENT), LATENT)
    p["conv2_b"] = jnp.zeros((1, LATENT), jnp.float32)
    pw2 = rnd(ks[3], (1, LATENT), LATENT)
    p["pool2_w"] = pw2 / jnp.sqrt(jnp.sum(pw2 * pw2))
    p["fc_w"] = rnd(ks[4], (4 * LATENT, FEATURE_DIM), 4 * LATENT)   # fc_encoder, (in,out)
    p["fc_b"] = 0.01 * jax.random.normal(ks[5], (1, FEATURE_DIM), jnp.float32)
    p["bn_gamma"] = jnp.ones((1, FEATURE_DIM), jnp.float32)     # BatchNorm1d default init
    p["bn_beta"] = jnp.zeros((1, FEATURE_DIM), jnp.float32)
    p["c1_w"] = rnd(ks[6], (FEATURE_DIM, FEATURE_DIM // 4), FEATURE_DIM)
    p["c2_w"] = rnd(ks[7], (FEATURE_DIM // 4, OUT_DIM), FEATURE_DIM // 4)
    p["c2_b"] = 0.01 * jax.random.normal(ks[8], (1, OUT_DIM), jnp.float32)
    return p


def contra_graph_learning_forward(x1, adj1, x2, adj2, y1, site1, params, ratio):
    # return_option='out' branch of ContraGraphLearning.forward.  The two contrastive
    # views share a single graph pallas_call (2B graphs packed Gt per grid step) and a
    # single one-step head pallas_call; BN statistics remain per-view.
    B = x1.shape[0]
    x_all = jnp.concatenate([x1, x2], axis=0)
    adj_all = jnp.concatenate([adj1, adj2], axis=0)
    r_all = graphconv_readout(x_all, adj_all, params, ratio)       # (2B, 256)
    feat_v, out_v = head(r_all.reshape(2, B, 4 * LATENT), params)  # (2,B,256), (2,B,512)
    return out_v[0], out_v[1], feat_v[0], feat_v[1], y1, site1


if __name__ == "__main__":
    B, R, INDIM = 2, 16, 16     # small shapes (original R=200 ROIs)
    RATIO = 0.5

    key = jax.random.PRNGKey(0)
    kx1, kx2, ka1, ka2, kp = jax.random.split(key, 5)

    x1 = jax.random.normal(kx1, (B, R, INDIM), jnp.float32)
    x2 = jax.random.normal(kx2, (B, R, INDIM), jnp.float32)

    def make_adj(k):
        a = jax.random.uniform(k, (B, R, R), jnp.float32)
        a = 0.5 * (a + jnp.swapaxes(a, -1, -2))     # symmetric (undirected) weights
        return a * (1.0 - jnp.eye(R, dtype=jnp.float32))   # zero diagonal (input contract)

    adj1 = make_adj(ka1)
    adj2 = make_adj(ka2)
    y1 = jnp.zeros((B,), jnp.int32)
    site1 = jnp.zeros((B,), jnp.int32)

    params = init_params(kp, INDIM)

    out1, out2, feature1, feature2, y1, site1 = contra_graph_learning_forward(
        x1, adj1, x2, adj2, y1, site1, params, RATIO)
    jax.block_until_ready((out1, out2, feature1, feature2))

    assert out1.shape == (B, OUT_DIM) and out2.shape == (B, OUT_DIM)
    assert feature1.shape == (B, FEATURE_DIM) and feature2.shape == (B, FEATURE_DIM)
    assert bool(jnp.all(jnp.isfinite(out1))) and bool(jnp.all(jnp.isfinite(feature1)))
    assert bool(jnp.all(jnp.isfinite(out2))) and bool(jnp.all(jnp.isfinite(feature2)))

    print("KERNEL_OK")
</pallas_src>

<mosaic_0001>
module attributes {stable_mosaic.version = 11 : i64} {
  func.func @_graph_kernel(%arg0: i32, %arg1: memref<2x16x16xbf16, #tpu.memory_space<vmem>>, %arg2: memref<2x16x16xbf16, #tpu.memory_space<vmem>>, %arg3: memref<3x16x64xbf16, #tpu.memory_space<vmem>>, %arg4: memref<1x64xf32, #tpu.memory_space<vmem>>, %arg5: memref<1x64xf32, #tpu.memory_space<vmem>>, %arg6: memref<3x64x64xbf16, #tpu.memory_space<vmem>>, %arg7: memref<1x64xf32, #tpu.memory_space<vmem>>, %arg8: memref<1x64xf32, #tpu.memory_space<vmem>>, %arg9: memref<2x4x64xf32, #tpu.memory_space<vmem>>) attributes {dimension_semantics = [#tpu.dimension_semantics<parallel>], iteration_bounds = array<i64: 2>, scalar_prefetch = 0 : i64, scratch_operands = 0 : i64, tpu.core_type = #tpu.core_type<tc>, window_params = [{transform_indices = @transform_0, window_bounds = array<i64: 2, 16, 16>}, {transform_indices = @transform_1, window_bounds = array<i64: 2, 16, 16>}, {pipeline_mode = #tpu.pipeline_mode<synchronous>, transform_indices = @transform_2, window_bounds = array<i64: 3, 16, 64>}, {pipeline_mode = #tpu.pipeline_mode<synchronous>, transform_indices = @transform_3, window_bounds = array<i64: 1, 64>}, {pipeline_mode = #tpu.pipeline_mode<synchronous>, transform_indices = @transform_4, window_bounds = array<i64: 1, 64>}, {pipeline_mode = #tpu.pipeline_mode<synchronous>, transform_indices = @transform_5, window_bounds = array<i64: 3, 64, 64>}, {pipeline_mode = #tpu.pipeline_mode<synchronous>, transform_indices = @transform_6, window_bounds = array<i64: 1, 64>}, {pipeline_mode = #tpu.pipeline_mode<synchronous>, transform_indices = @transform_7, window_bounds = array<i64: 1, 64>}, {transform_indices = @transform_8, window_bounds = array<i64: 2, 4, 64>}]} {
    %0 = tpu.iota {dimensions = array<i32: 0>} : vector<16x16xi32>
    %1 = tpu.iota {dimensions = array<i32: 1>} : vector<16x16xi32>
    %2 = arith.cmpi ne, %0, %1 : vector<16x16xi32>
    %3 = arith.extui %2 : vector<16x16xi1> to vector<16x16xi32>
    %4 = arith.sitofp %3 : vector<16x16xi32> to vector<16x16xf32>
    %cst = arith.constant 1.000000e+00 : bf16
    %5 = vector.broadcast %cst : bf16 to vector<16x1xbf16>
    %cst_0 = arith.constant 1.000000e+00 : bf16
    %6 = vector.broadcast %cst_0 : bf16 to vector<1x16xbf16>
    %c0 = arith.constant 0 : index
    %c0_1 = arith.constant 0 : index
    %c0_2 = arith.constant 0 : index
    %7 = vector.load %arg3[%c0, %c0_1, %c0_2] : memref<3x16x64xbf16, #tpu.memory_space<vmem>>, vector<1x16x64xbf16>
    %8 = vector.shape_cast %7 : vector<1x16x64xbf16> to vector<16x64xbf16>
    %c1 = arith.constant 1 : index
    %c0_3 = arith.constant 0 : index
    %c0_4 = arith.constant 0 : index
    %9 = vector.load %arg3[%c1, %c0_3, %c0_4] : memref<3x16x64xbf16, #tpu.memory_space<vmem>>, vector<1x16x64xbf16>
    %10 = vector.shape_cast %9 : vector<1x16x64xbf16> to vector<16x64xbf16>
    %c2 = arith.constant 2 : index
    %c0_5 = arith.constant 0 : index
    %c0_6 = arith.constant 0 : index
    %11 = vector.load %arg3[%c2, %c0_5, %c0_6] : memref<3x16x64xbf16, #tpu.memory_space<vmem>>, vector<1x16x64xbf16>
    %12 = vector.shape_cast %11 : vector<1x16x64xbf16> to vector<16x64xbf16>
    %c0_7 = arith.constant 0 : index
    %c0_8 = arith.constant 0 : index
    %c0_9 = arith.constant 0 : index
    %13 = vector.load %arg6[%c0_7, %c0_8, %c0_9] : memref<3x64x64xbf16, #tpu.memory_space<vmem>>, vector<1x64x64xbf16>
    %14 = vector.shape_cast %13 : vector<1x64x64xbf16> to vector<64x64xbf16>
    %c1_10 = arith.constant 1 : index
    %c0_11 = arith.constant 0 : index
    %c0_12 = arith.constant 0 : index
    %15 = vector.load %arg6[%c1_10, %c0_11, %c0_12] : memref<3x64x64xbf16, #tpu.memory_space<vmem>>, vector<1x64x64xbf16>
    %16 = vector.shape_cast %15 : vector<1x64x64xbf16> to vector<64x64xbf16>
    %c2_13 = arith.constant 2 : index
    %c0_14 = arith.constant 0 : index
    %c0_15 = arith.constant 0 : index
    %17 = vector.load %arg6[%c2_13, %c0_14, %c0_15] : memref<3x64x64xbf16, #tpu.memory_space<vmem>>, vector<1x64x64xbf16>
    %18 = vector.shape_cast %17 : vector<1x64x64xbf16> to vector<64x64xbf16>
    %c0_16 = arith.constant 0 : index
    %c0_17 = arith.constant 0 : index
    %19 = vector.load %arg4[%c0_16, %c0_17] : memref<1x64xf32, #tpu.memory_space<vmem>>, vector<1x64xf32>
    %c0_18 = arith.constant 0 : index
    %c0_19 = arith.constant 0 : index
    %20 = vector.load %arg5[%c0_18, %c0_19] : memref<1x64xf32, #tpu.memory_space<vmem>>, vector<1x64xf32>
    %c0_20 = arith.constant 0 : index
    %c0_21 = arith.constant 0 : index
    %21 = vector.load %arg7[%c0_20, %c0_21] : memref<1x64xf32, #tpu.memory_space<vmem>>, vector<1x64xf32>
    %c0_22 = arith.constant 0 : index
    %c0_23 = arith.constant 0 : index
    %22 = vector.load %arg8[%c0_22, %c0_23] : memref<1x64xf32, #tpu.memory_space<vmem>>, vector<1x64xf32>
    %c0_24 = arith.constant 0 : index
    %c0_25 = arith.constant 0 : index
    %c0_26 = arith.constant 0 : index
    %23 = vector.load %arg1[%c0_24, %c0_25, %c0_26] : memref<2x16x16xbf16, #tpu.memory_space<vmem>>, vector<1x16x16xbf16>
    %24 = vector.shape_cast %23 : vector<1x16x16xbf16> to vector<16x16xbf16>
    %c0_27 = arith.constant 0 : index
    %c0_28 = arith.constant 0 : index
    %c0_29 = arith.constant 0 : index
    %25 = vector.load %arg2[%c0_27, %c0_28, %c0_29] : memref<2x16x16xbf16, #tpu.memory_space<vmem>>, vector<1x16x16xbf16>
    %26 = vector.shape_cast %25 : vector<1x16x16xbf16> to vector<16x16xbf16>
    %cst_30 = arith.constant dense<0.000000e+00> : vector<16x1xf32>
    %27 = tpu.matmul %26, %5, %cst_30 {dimension_numbers = #tpu.dot_dimension_numbers<[1], [0], [0], [1], [0, 0, 1, 1], [], []>} : vector<16x16xbf16>, vector<16x1xbf16>, vector<16x1xf32> -> vector<16x1xf32>
    %cst_31 = arith.constant dense<0.000000e+00> : vector<1x16xf32>
    %28 = tpu.matmul %6, %26, %cst_31 {dimension_numbers = #tpu.dot_dimension_numbers<[1], [0], [0], [1], [0, 0, 1, 1], [], []>} : vector<1x16xbf16>, vector<16x16xbf16>, vector<1x16xf32> -> vector<1x16xf32>
    %cst_32 = arith.constant 0.000000e+00 : f32
    %29 = vector.broadcast %cst_32 : f32 to vector<16x1xf32>
    %30 = arith.cmpf ogt, %27, %29 : vector<16x1xf32>
    %31 = math.rsqrt %27 : vector<16x1xf32>
    %cst_33 = arith.constant 0.000000e+00 : f32
    %32 = vector.broadcast %cst_33 : f32 to vector<16x1xf32>
    %33 = arith.select %30, %31, %32 : vector<16x1xi1>, vector<16x1xf32>
    %cst_34 = arith.constant 0.000000e+00 : f32
    %34 = vector.broadcast %cst_34 : f32 to vector<1x16xf32>
    %35 = arith.cmpf ogt, %28, %34 : vector<1x16xf32>
    %36 = math.rsqrt %28 : vector<1x16xf32>
    %cst_35 = arith.constant 0.000000e+00 : f32
    %37 = vector.broadcast %cst_35 : f32 to vector<1x16xf32>
    %38 = arith.select %35, %36, %37 : vector<1x16xi1>, vector<1x16xf32>
    %39 = arith.extf %26 : vector<16x16xbf16> to vector<16x16xf32>
    %40 = vector.broadcast %33 : vector<16x1xf32> to vector<16x16xf32>
    %41 = arith.mulf %40, %39 : vector<16x16xf32>
    %42 = vector.broadcast %38 : vector<1x16xf32> to vector<16x16xf32>
    %43 = arith.mulf %41, %42 : vector<16x16xf32>
    %cst_36 = arith.constant 0.000000e+00 : f32
    %44 = vector.broadcast %cst_36 : f32 to vector<16x16xf32>
    %45 = arith.subf %44, %43 : vector<16x16xf32>
    %46 = arith.truncf %45 : vector<16x16xf32> to vector<16x16xbf16>
    %cst_37 = arith.constant dense<0.000000e+00> : vector<16x16xf32>
    %47 = tpu.matmul %46, %24, %cst_37 {dimension_numbers = #tpu.dot_dimension_numbers<[1], [0], [0], [1], [0, 0, 1, 1], [], []>} : vector<16x16xbf16>, vector<16x16xbf16>, vector<16x16xf32> -> vector<16x16xf32>
    %48 = arith.truncf %47 : vector<16x16xf32> to vector<16x16xbf16>
    %cst_38 = arith.constant dense<0.000000e+00> : vector<16x16xf32>
    %49 = tpu.matmul %46, %48, %cst_38 {dimension_numbers = #tpu.dot_dimension_numbers<[1], [0], [0], [1], [0, 0, 1, 1], [], []>} : vector<16x16xbf16>, vector<16x16xbf16>, vector<16x16xf32> -> vector<16x16xf32>
    %cst_39 = arith.constant 2.000000e+00 : f32
    %50 = vector.broadcast %cst_39 : f32 to vector<16x16xf32>
    %51 = arith.mulf %50, %49 : vector<16x16xf32>
    %52 = arith.extf %24 : vector<16x16xbf16> to vector<16x16xf32>
    %53 = arith.subf %51, %52 : vector<16x16xf32>
    %cst_40 = arith.constant dense<0.000000e+00> : vector<16x64xf32>
    %54 = tpu.matmul %24, %8, %cst_40 {dimension_numbers = #tpu.dot_dimension_numbers<[1], [0], [0], [1], [0, 0, 1, 1], [], []>} : vector<16x16xbf16>, vector<16x64xbf16>, vector<16x64xf32> -> vector<16x64xf32>
    %55 = arith.truncf %47 : vector<16x16xf32> to vector<16x16xbf16>
    %cst_41 = arith.constant dense<0.000000e+00> : vector<16x64xf32>
    %56 = tpu.matmul %55, %10, %cst_41 {dimension_numbers = #tpu.dot_dimension_numbers<[1], [0], [0], [1], [0, 0, 1, 1], [], []>} : vector<16x16xbf16>, vector<16x64xbf16>, vector<16x64xf32> -> vector<16x64xf32>
    %57 = arith.addf %54, %56 : vector<16x64xf32>
    %58 = arith.truncf %53 : vector<16x16xf32> to vector<16x16xbf16>
    %cst_42 = arith.constant dense<0.000000e+00> : vector<16x64xf32>
    %59 = tpu.matmul %58, %12, %cst_42 {dimension_numbers = #tpu.dot_dimension_numbers<[1], [0], [0], [1], [0, 0, 1, 1], [], []>} : vector<16x16xbf16>, vector<16x64xbf16>, vector<16x64xf32> -> vector<16x64xf32>
    %60 = arith.addf %57, %59 : vector<16x64xf32>
    %61 = vector.broadcast %19 : vector<1x64xf32> to vector<16x64xf32>
    %62 = arith.addf %60, %61 : vector<16x64xf32>
    %63 = vector.broadcast %20 : vector<1x64xf32> to vector<16x64xf32>
    %64 = arith.mulf %62, %63 : vector<16x64xf32>
    %cst_43 = arith.constant dense<0.000000e+00> : vector<16xf32>
    %65 = vector.multi_reduction <add>, %64, %cst_43 [1] : vector<16x64xf32> to vector<16xf32>
    %66 = vector.shape_cast %65 : vector<16xf32> to vector<16x1xf32>
    %cst_44 = arith.constant dense<0.000000e+00> : vector<1x16xf32>
    %67 = tpu.matmul %20, %62, %cst_44 {dimension_numbers = #tpu.dot_dimension_numbers<[1], [1], [0], [0], [0, 0, 1, 0], [], []>} : vector<1x64xf32>, vector<16x64xf32>, vector<1x16xf32> -> vector<1x16xf32>
    %68 = arith.negf %66 : vector<16x1xf32>
    %69 = math.exp %68 : vector<16x1xf32>
    %cst_45 = arith.constant 1.000000e+00 : f32
    %70 = vector.broadcast %cst_45 : f32 to vector<16x1xf32>
    %71 = arith.addf %70, %69 : vector<16x1xf32>
    %72 = arith.divf %70, %71 : vector<16x1xf32>
    %73 = arith.negf %67 : vector<1x16xf32>
    %74 = math.exp %73 : vector<1x16xf32>
    %cst_46 = arith.constant 1.000000e+00 : f32
    %75 = vector.broadcast %cst_46 : f32 to vector<1x16xf32>
    %76 = arith.addf %75, %74 : vector<1x16xf32>
    %77 = arith.divf %75, %76 : vector<1x16xf32>
    %78 = vector.shape_cast %72 : vector<16x1xf32> to vector<16x1xf32>
    %79 = vector.broadcast %78 : vector<16x1xf32> to vector<16x16xf32>
    %80 = vector.shape_cast %77 : vector<1x16xf32> to vector<1x16xf32>
    %81 = vector.broadcast %80 : vector<1x16xf32> to vector<16x16xf32>
    %82 = arith.cmpf ogt, %81, %79 : vector<16x16xf32>
    %83 = arith.cmpf oeq, %81, %79 : vector<16x16xf32>
    %84 = arith.cmpi slt, %1, %0 : vector<16x16xi32>
    %85 = arith.andi %83, %84 : vector<16x16xi1>
    %86 = arith.ori %82, %85 : vector<16x16xi1>
    %87 = arith.extui %86 : vector<16x16xi1> to vector<16x16xi32>
    %88 = arith.sitofp %87 : vector<16x16xi32> to vector<16x16xf32>
    %cst_47 = arith.constant dense<0.000000e+00> : vector<16xf32>
    %89 = vector.multi_reduction <add>, %88, %cst_47 [1] : vector<16x16xf32> to vector<16xf32>
    %90 = vector.shape_cast %89 : vector<16xf32> to vector<16x1xf32>
    %cst_48 = arith.constant 8.000000e+00 : f32
    %91 = vector.broadcast %cst_48 : f32 to vector<16x1xf32>
    %92 = arith.cmpf olt, %90, %91 : vector<16x1xf32>
    %93 = arith.extui %92 : vector<16x1xi1> to vector<16x1xi32>
    %94 = arith.sitofp %93 : vector<16x1xi32> to vector<16x1xf32>
    %95 = arith.truncf %88 : vector<16x16xf32> to vector<16x16xbf16>
    %cst_49 = arith.constant dense<0.000000e+00> : vector<1x16xf32>
    %96 = tpu.matmul %6, %95, %cst_49 {dimension_numbers = #tpu.dot_dimension_numbers<[1], [0], [0], [1], [0, 0, 1, 1], [], []>} : vector<1x16xbf16>, vector<16x16xbf16>, vector<1x16xf32> -> vector<1x16xf32>
    %cst_50 = arith.constant 1.500000e+01 : f32
    %97 = vector.broadcast %cst_50 : f32 to vector<1x16xf32>
    %98 = arith.subf %97, %96 : vector<1x16xf32>
    %cst_51 = arith.constant 8.000000e+00 : f32
    %99 = vector.broadcast %cst_51 : f32 to vector<1x16xf32>
    %100 = arith.cmpf olt, %98, %99 : vector<1x16xf32>
    %101 = arith.extui %100 : vector<1x16xi1> to vector<1x16xi32>
    %102 = arith.sitofp %101 : vector<1x16xi32> to vector<1x16xf32>
    %103 = arith.mulf %72, %94 : vector<16x1xf32>
    %104 = vector.broadcast %103 : vector<16x1xf32> to vector<16x64xf32>
    %105 = arith.mulf %62, %104 : vector<16x64xf32>
    %106 = arith.extf %26 : vector<16x16xbf16> to vector<16x16xf32>
    %107 = vector.broadcast %94 : vector<16x1xf32> to vector<16x16xf32>
    %108 = arith.mulf %106, %107 : vector<16x16xf32>
    %109 = vector.broadcast %102 : vector<1x16xf32> to vector<16x16xf32>
    %110 = arith.mulf %108, %109 : vector<16x16xf32>
    %cst_52 = arith.constant 1.000000e+00 : f32
    %111 = vector.broadcast %cst_52 : f32 to vector<16x1xf32>
    %112 = arith.subf %111, %94 : vector<16x1xf32>
    %cst_53 = arith.constant -1.000000e+30 : f32
    %113 = vector.broadcast %cst_53 : f32 to vector<16x1xf32>
    %114 = arith.mulf %112, %113 : vector<16x1xf32>
    %115 = vector.broadcast %114 : vector<16x1xf32> to vector<16x64xf32>
    %116 = arith.addf %105, %115 : vector<16x64xf32>
    %cst_54 = arith.constant dense<0xFF800000> : vector<64xf32>
    %117 = vector.multi_reduction <maximumf>, %116, %cst_54 [0] : vector<16x64xf32> to vector<64xf32>
    %118 = vector.shape_cast %117 : vector<64xf32> to vector<1x64xf32>
    %cst_55 = arith.constant dense<0.000000e+00> : vector<64xf32>
    %119 = vector.multi_reduction <add>, %105, %cst_55 [0] : vector<16x64xf32> to vector<64xf32>
    %120 = vector.shape_cast %119 : vector<64xf32> to vector<1x64xf32>
    %cst_56 = arith.constant 1.250000e-01 : f32
    %121 = vector.broadcast %cst_56 : f32 to vector<1x64xf32>
    %122 = arith.mulf %120, %121 : vector<1x64xf32>
    %123 = arith.truncf %110 : vector<16x16xf32> to vector<16x16xbf16>
    %cst_57 = arith.constant dense<0.000000e+00> : vector<16x16xf32>
    %124 = tpu.matmul %123, %123, %cst_57 {dimension_numbers = #tpu.dot_dimension_numbers<[1], [0], [0], [1], [0, 0, 1, 1], [], []>} : vector<16x16xbf16>, vector<16x16xbf16>, vector<16x16xf32> -> vector<16x16xf32>
    %cst_58 = arith.constant 2.000000e+00 : f32
    %125 = vector.broadcast %cst_58 : f32 to vector<16x16xf32>
    %126 = arith.mulf %125, %110 : vector<16x16xf32>
    %127 = arith.addf %124, %126 : vector<16x16xf32>
    %128 = arith.mulf %127, %4 : vector<16x16xf32>
    %129 = arith.truncf %128 : vector<16x16xf32> to vector<16x16xbf16>
    %130 = arith.truncf %105 : vector<16x64xf32> to vector<16x64xbf16>
    %cst_59 = arith.constant dense<0.000000e+00> : vector<16x1xf32>
    %131 = tpu.matmul %129, %5, %cst_59 {dimension_numbers = #tpu.dot_dimension_numbers<[1], [0], [0], [1], [0, 0, 1, 1], [], []>} : vector<16x16xbf16>, vector<16x1xbf16>, vector<16x1xf32> -> vector<16x1xf32>
    %cst_60 = arith.constant dense<0.000000e+00> : vector<1x16xf32>
    %132 = tpu.matmul %6, %129, %cst_60 {dimension_numbers = #tpu.dot_dimension_numbers<[1], [0], [0], [1], [0, 0, 1, 1], [], []>} : vector<1x16xbf16>, vector<16x16xbf16>, vector<1x16xf32> -> vector<1x16xf32>
    %cst_61 = arith.constant 0.000000e+00 : f32
    %133 = vector.broadcast %cst_61 : f32 to vector<16x1xf32>
    %134 = arith.cmpf ogt, %131, %133 : vector<16x1xf32>
    %135 = math.rsqrt %131 : vector<16x1xf32>
    %cst_62 = arith.constant 0.000000e+00 : f32
    %136 = vector.broadcast %cst_62 : f32 to vector<16x1xf32>
    %137 = arith.select %134, %135, %136 : vector<16x1xi1>, vector<16x1xf32>
    %cst_63 = arith.constant 0.000000e+00 : f32
    %138 = vector.broadcast %cst_63 : f32 to vector<1x16xf32>
    %139 = arith.cmpf ogt, %132, %138 : vector<1x16xf32>
    %140 = math.rsqrt %132 : vector<1x16xf32>
    %cst_64 = arith.constant 0.000000e+00 : f32
    %141 = vector.broadcast %cst_64 : f32 to vector<1x16xf32>
    %142 = arith.select %139, %140, %141 : vector<1x16xi1>, vector<1x16xf32>
    %143 = arith.extf %129 : vector<16x16xbf16> to vector<16x16xf32>
    %144 = vector.broadcast %137 : vector<16x1xf32> to vector<16x16xf32>
    %145 = arith.mulf %144, %143 : vector<16x16xf32>
    %146 = vector.broadcast %142 : vector<1x16xf32> to vector<16x16xf32>
    %147 = arith.mulf %145, %146 : vector<16x16xf32>
    %cst_65 = arith.constant 0.000000e+00 : f32
    %148 = vector.broadcast %cst_65 : f32 to vector<16x16xf32>
    %149 = arith.subf %148, %147 : vector<16x16xf32>
    %150 = arith.truncf %149 : vector<16x16xf32> to vector<16x16xbf16>
    %cst_66 = arith.constant dense<0.000000e+00> : vector<16x64xf32>
    %151 = tpu.matmul %150, %130, %cst_66 {dimension_numbers = #tpu.dot_dimension_numbers<[1], [0], [0], [1], [0, 0, 1, 1], [], []>} : vector<16x16xbf16>, vector<16x64xbf16>, vector<16x64xf32> -> vector<16x64xf32>
    %152 = arith.truncf %151 : vector<16x64xf32> to vector<16x64xbf16>
    %cst_67 = arith.constant dense<0.000000e+00> : vector<16x64xf32>
    %153 = tpu.matmul %150, %152, %cst_67 {dimension_numbers = #tpu.dot_dimension_numbers<[1], [0], [0], [1], [0, 0, 1, 1], [], []>} : vector<16x16xbf16>, vector<16x64xbf16>, vector<16x64xf32> -> vector<16x64xf32>
    %cst_68 = arith.constant 2.000000e+00 : f32
    %154 = vector.broadcast %cst_68 : f32 to vector<16x64xf32>
    %155 = arith.mulf %154, %153 : vector<16x64xf32>
    %156 = arith.extf %130 : vector<16x64xbf16> to vector<16x64xf32>
    %157 = arith.subf %155, %156 : vector<16x64xf32>
    %cst_69 = arith.constant dense<0.000000e+00> : vector<16x64xf32>
    %158 = tpu.matmul %130, %14, %cst_69 {dimension_numbers = #tpu.dot_dimension_numbers<[1], [0], [0], [1], [0, 0, 1, 1], [], []>} : vector<16x64xbf16>, vector<64x64xbf16>, vector<16x64xf32> -> vector<16x64xf32>
    %159 = arith.truncf %151 : vector<16x64xf32> to vector<16x64xbf16>
    %cst_70 = arith.constant dense<0.000000e+00> : vector<16x64xf32>
    %160 = tpu.matmul %159, %16, %cst_70 {dimension_numbers = #tpu.dot_dimension_numbers<[1], [0], [0], [1], [0, 0, 1, 1], [], []>} : vector<16x64xbf16>, vector<64x64xbf16>, vector<16x64xf32> -> vector<16x64xf32>
    %161 = arith.addf %158, %160 : vector<16x64xf32>
    %162 = arith.truncf %157 : vector<16x64xf32> to vector<16x64xbf16>
    %cst_71 = arith.constant dense<0.000000e+00> : vector<16x64xf32>
    %163 = tpu.matmul %162, %18, %cst_71 {dimension_numbers = #tpu.dot_dimension_numbers<[1], [0], [0], [1], [0, 0, 1, 1], [], []>} : vector<16x64xbf16>, vector<64x64xbf16>, vector<16x64xf32> -> vector<16x64xf32>
    %164 = arith.addf %161, %163 : vector<16x64xf32>
    %165 = vector.broadcast %21 : vector<1x64xf32> to vector<16x64xf32>
    %166 = arith.addf %164, %165 : vector<16x64xf32>
    %167 = vector.broadcast %22 : vector<1x64xf32> to vector<16x64xf32>
    %168 = arith.mulf %166, %167 : vector<16x64xf32>
    %cst_72 = arith.constant dense<0.000000e+00> : vector<16xf32>
    %169 = vector.multi_reduction <add>, %168, %cst_72 [1] : vector<16x64xf32> to vector<16xf32>
    %170 = vector.shape_cast %169 : vector<16xf32> to vector<16x1xf32>
    %cst_73 = arith.constant dense<0.000000e+00> : vector<1x16xf32>
    %171 = tpu.matmul %22, %166, %cst_73 {dimension_numbers = #tpu.dot_dimension_numbers<[1], [1], [0], [0], [0, 0, 1, 0], [], []>} : vector<1x64xf32>, vector<16x64xf32>, vector<1x16xf32> -> vector<1x16xf32>
    %172 = arith.negf %170 : vector<16x1xf32>
    %173 = math.exp %172 : vector<16x1xf32>
    %cst_74 = arith.constant 1.000000e+00 : f32
    %174 = vector.broadcast %cst_74 : f32 to vector<16x1xf32>
    %175 = arith.addf %174, %173 : vector<16x1xf32>
    %176 = arith.divf %174, %175 : vector<16x1xf32>
    %177 = arith.negf %171 : vector<1x16xf32>
    %178 = math.exp %177 : vector<1x16xf32>
    %cst_75 = arith.constant 1.000000e+00 : f32
    %179 = vector.broadcast %cst_75 : f32 to vector<1x16xf32>
    %180 = arith.addf %179, %178 : vector<1x16xf32>
    %181 = arith.divf %179, %180 : vector<1x16xf32>
    %cst_76 = arith.constant 0.000000e+00 : f32
    %182 = vector.broadcast %cst_76 : f32 to vector<16x1xf32>
    %183 = arith.cmpf ogt, %94, %182 : vector<16x1xf32>
    %cst_77 = arith.constant -1.000000e+30 : f32
    %184 = vector.broadcast %cst_77 : f32 to vector<16x1xf32>
    %185 = arith.select %183, %176, %184 : vector<16x1xi1>, vector<16x1xf32>
    %cst_78 = arith.constant 0.000000e+00 : f32
    %186 = vector.broadcast %cst_78 : f32 to vector<1x16xf32>
    %187 = arith.cmpf ogt, %102, %186 : vector<1x16xf32>
    %cst_79 = arith.constant -1.000000e+30 : f32
    %188 = vector.broadcast %cst_79 : f32 to vector<1x16xf32>
    %189 = arith.select %187, %181, %188 : vector<1x16xi1>, vector<1x16xf32>
    %190 = vector.shape_cast %185 : vector<16x1xf32> to vector<16x1xf32>
    %191 = vector.broadcast %190 : vector<16x1xf32> to vector<16x16xf32>
    %192 = vector.shape_cast %189 : vector<1x16xf32> to vector<1x16xf32>
    %193 = vector.broadcast %192 : vector<1x16xf32> to vector<16x16xf32>
    %194 = arith.cmpf ogt, %193, %191 : vector<16x16xf32>
    %195 = arith.cmpf oeq, %193, %191 : vector<16x16xf32>
    %196 = arith.cmpi slt, %1, %0 : vector<16x16xi32>
    %197 = arith.andi %195, %196 : vector<16x16xi1>
    %198 = arith.ori %194, %197 : vector<16x16xi1>
    %199 = arith.extui %198 : vector<16x16xi1> to vector<16x16xi32>
    %200 = arith.sitofp %199 : vector<16x16xi32> to vector<16x16xf32>
    %cst_80 = arith.constant dense<0.000000e+00> : vector<16xf32>
    %201 = vector.multi_reduction <add>, %200, %cst_80 [1] : vector<16x16xf32> to vector<16xf32>
    %202 = vector.shape_cast %201 : vector<16xf32> to vector<16x1xf32>
    %cst_81 = arith.constant 4.000000e+00 : f32
    %203 = vector.broadcast %cst_81 : f32 to vector<16x1xf32>
    %204 = arith.cmpf olt, %202, %203 : vector<16x1xf32>
    %205 = arith.extui %204 : vector<16x1xi1> to vector<16x1xi32>
    %206 = arith.sitofp %205 : vector<16x1xi32> to vector<16x1xf32>
    %207 = arith.mulf %176, %206 : vector<16x1xf32>
    %208 = vector.broadcast %207 : vector<16x1xf32> to vector<16x64xf32>
    %209 = arith.mulf %166, %208 : vector<16x64xf32>
    %cst_82 = arith.constant 1.000000e+00 : f32
    %210 = vector.broadcast %cst_82 : f32 to vector<16x1xf32>
    %211 = arith.subf %210, %206 : vector<16x1xf32>
    %cst_83 = arith.constant -1.000000e+30 : f32
    %212 = vector.broadcast %cst_83 : f32 to vector<16x1xf32>
    %213 = arith.mulf %211, %212 : vector<16x1xf32>
    %214 = vector.broadcast %213 : vector<16x1xf32> to vector<16x64xf32>
    %215 = arith.addf %209, %214 : vector<16x64xf32>
    %cst_84 = arith.constant dense<0xFF800000> : vector<64xf32>
    %216 = vector.multi_reduction <maximumf>, %215, %cst_84 [0] : vector<16x64xf32> to vector<64xf32>
    %217 = vector.shape_cast %216 : vector<64xf32> to vector<1x64xf32>
    %cst_85 = arith.constant dense<0.000000e+00> : vector<64xf32>
    %218 = vector.multi_reduction <add>, %209, %cst_85 [0] : vector<16x64xf32> to vector<64xf32>
    %219 = vector.shape_cast %218 : vector<64xf32> to vector<1x64xf32>
    %cst_86 = arith.constant 2.500000e-01 : f32
    %220 = vector.broadcast %cst_86 : f32 to vector<1x64xf32>
    %221 = arith.mulf %219, %220 : vector<1x64xf32>
    %222 = tpu.concatenate %118, %122, %217, %221 in 0 : vector<1x64xf32>, vector<1x64xf32>, vector<1x64xf32>, vector<1x64xf32> -> vector<4x64xf32>
    %c0_87 = arith.constant 0 : index
    %c0_88 = arith.constant 0 : index
    %c0_89 = arith.constant 0 : index
    %223 = vector.load %arg9[%c0_87, %c0_88, %c0_89] : memref<2x4x64xf32, #tpu.memory_space<vmem>>, vector<1x4x64xf32>
    %224 = vector.shape_cast %223 : vector<1x4x64xf32> to vector<4x64xf32>
    %225 = vector.shape_cast %222 : vector<4x64xf32> to vector<1x4x64xf32>
    tpu.vector_store %arg9[%c0_87, %c0_88, %c0_89], %225 {strides = array<i32>} : memref<2x4x64xf32, #tpu.memory_space<vmem>>, vector<1x4x64xf32>,
    %c1_90 = arith.constant 1 : index
    %c0_91 = arith.constant 0 : index
    %c0_92 = arith.constant 0 : index
    %226 = vector.load %arg1[%c1_90, %c0_91, %c0_92] : memref<2x16x16xbf16, #tpu.memory_space<vmem>>, vector<1x16x16xbf16>
    %227 = vector.shape_cast %226 : vector<1x16x16xbf16> to vector<16x16xbf16>
    %c1_93 = arith.constant 1 : index
    %c0_94 = arith.constant 0 : index
    %c0_95 = arith.constant 0 : index
    %228 = vector.load %arg2[%c1_93, %c0_94, %c0_95] : memref<2x16x16xbf16, #tpu.memory_space<vmem>>, vector<1x16x16xbf16>
    %229 = vector.shape_cast %228 : vector<1x16x16xbf16> to vector<16x16xbf16>
    %cst_96 = arith.constant dense<0.000000e+00> : vector<16x1xf32>
    %230 = tpu.matmul %229, %5, %cst_96 {dimension_numbers = #tpu.dot_dimension_numbers<[1], [0], [0], [1], [0, 0, 1, 1], [], []>} : vector<16x16xbf16>, vector<16x1xbf16>, vector<16x1xf32> -> vector<16x1xf32>
    %cst_97 = arith.constant dense<0.000000e+00> : vector<1x16xf32>
    %231 = tpu.matmul %6, %229, %cst_97 {dimension_numbers = #tpu.dot_dimension_numbers<[1], [0], [0], [1], [0, 0, 1, 1], [], []>} : vector<1x16xbf16>, vector<16x16xbf16>, vector<1x16xf32> -> vector<1x16xf32>
    %cst_98 = arith.constant 0.000000e+00 : f32
    %232 = vector.broadcast %cst_98 : f32 to vector<16x1xf32>
    %233 = arith.cmpf ogt, %230, %232 : vector<16x1xf32>
    %234 = math.rsqrt %230 : vector<16x1xf32>
    %cst_99 = arith.constant 0.000000e+00 : f32
    %235 = vector.broadcast %cst_99 : f32 to vector<16x1xf32>
    %236 = arith.select %233, %234, %235 : vector<16x1xi1>, vector<16x1xf32>
    %cst_100 = arith.constant 0.000000e+00 : f32
    %237 = vector.broadcast %cst_100 : f32 to vector<1x16xf32>
    %238 = arith.cmpf ogt, %231, %237 : vector<1x16xf32>
    %239 = math.rsqrt %231 : vector<1x16xf32>
    %cst_101 = arith.constant 0.000000e+00 : f32
    %240 = vector.broadcast %cst_101 : f32 to vector<1x16xf32>
    %241 = arith.select %238, %239, %240 : vector<1x16xi1>, vector<1x16xf32>
    %242 = arith.extf %229 : vector<16x16xbf16> to vector<16x16xf32>
    %243 = vector.broadcast %236 : vector<16x1xf32> to vector<16x16xf32>
    %244 = arith.mulf %243, %242 : vector<16x16xf32>
    %245 = vector.broadcast %241 : vector<1x16xf32> to vector<16x16xf32>
    %246 = arith.mulf %244, %245 : vector<16x16xf32>
    %cst_102 = arith.constant 0.000000e+00 : f32
    %247 = vector.broadcast %cst_102 : f32 to vector<16x16xf32>
    %248 = arith.subf %247, %246 : vector<16x16xf32>
    %249 = arith.truncf %248 : vector<16x16xf32> to vector<16x16xbf16>
    %cst_103 = arith.constant dense<0.000000e+00> : vector<16x16xf32>
    %250 = tpu.matmul %249, %227, %cst_103 {dimension_numbers = #tpu.dot_dimension_numbers<[1], [0], [0], [1], [0, 0, 1, 1], [], []>} : vector<16x16xbf16>, vector<16x16xbf16>, vector<16x16xf32> -> vector<16x16xf32>
    %251 = arith.truncf %250 : vector<16x16xf32> to vector<16x16xbf16>
    %cst_104 = arith.constant dense<0.000000e+00> : vector<16x16xf32>
    %252 = tpu.matmul %249, %251, %cst_104 {dimension_numbers = #tpu.dot_dimension_numbers<[1], [0], [0], [1], [0, 0, 1, 1], [], []>} : vector<16x16xbf16>, vector<16x16xbf16>, vector<16x16xf32> -> vector<16x16xf32>
    %cst_105 = arith.constant 2.000000e+00 : f32
    %253 = vector.broadcast %cst_105 : f32 to vector<16x16xf32>
    %254 = arith.mulf %253, %252 : vector<16x16xf32>
    %255 = arith.extf %227 : vector<16x16xbf16> to vector<16x16xf32>
    %256 = arith.subf %254, %255 : vector<16x16xf32>
    %cst_106 = arith.constant dense<0.000000e+00> : vector<16x64xf32>
    %257 = tpu.matmul %227, %8, %cst_106 {dimension_numbers = #tpu.dot_dimension_numbers<[1], [0], [0], [1], [0, 0, 1, 1], [], []>} : vector<16x16xbf16>, vector<16x64xbf16>, vector<16x64xf32> -> vector<16x64xf32>
    %258 = arith.truncf %250 : vector<16x16xf32> to vector<16x16xbf16>
    %cst_107 = arith.constant dense<0.000000e+00> : vector<16x64xf32>
    %259 = tpu.matmul %258, %10, %cst_107 {dimension_numbers = #tpu.dot_dimension_numbers<[1], [0], [0], [1], [0, 0, 1, 1], [], []>} : vector<16x16xbf16>, vector<16x64xbf16>, vector<16x64xf32> -> vector<16x64xf32>
    %260 = arith.addf %257, %259 : vector<16x64xf32>
    %261 = arith.truncf %256 : vector<16x16xf32> to vector<16x16xbf16>
    %cst_108 = arith.constant dense<0.000000e+00> : vector<16x64xf32>
    %262 = tpu.matmul %261, %12, %cst_108 {dimension_numbers = #tpu.dot_dimension_numbers<[1], [0], [0], [1], [0, 0, 1, 1], [], []>} : vector<16x16xbf16>, vector<16x64xbf16>, vector<16x64xf32> -> vector<16x64xf32>
    %263 = arith.addf %260, %262 : vector<16x64xf32>
    %264 = vector.broadcast %19 : vector<1x64xf32> to vector<16x64xf32>
    %265 = arith.addf %263, %264 : vector<16x64xf32>
    %266 = vector.broadcast %20 : vector<1x64xf32> to vector<16x64xf32>
    %267 = arith.mulf %265, %266 : vector<16x64xf32>
    %cst_109 = arith.constant dense<0.000000e+00> : vector<16xf32>
    %268 = vector.multi_reduction <add>, %267, %cst_109 [1] : vector<16x64xf32> to vector<16xf32>
    %269 = vector.shape_cast %268 : vector<16xf32> to vector<16x1xf32>
    %cst_110 = arith.constant dense<0.000000e+00> : vector<1x16xf32>
    %270 = tpu.matmul %20, %265, %cst_110 {dimension_numbers = #tpu.dot_dimension_numbers<[1], [1], [0], [0], [0, 0, 1, 0], [], []>} : vector<1x64xf32>, vector<16x64xf32>, vector<1x16xf32> -> vector<1x16xf32>
    %271 = arith.negf %269 : vector<16x1xf32>
    %272 = math.exp %271 : vector<16x1xf32>
    %cst_111 = arith.constant 1.000000e+00 : f32
    %273 = vector.broadcast %cst_111 : f32 to vector<16x1xf32>
    %274 = arith.addf %273, %272 : vector<16x1xf32>
    %275 = arith.divf %273, %274 : vector<16x1xf32>
    %276 = arith.negf %270 : vector<1x16xf32>
    %277 = math.exp %276 : vector<1x16xf32>
    %cst_112 = arith.constant 1.000000e+00 : f32
    %278 = vector.broadcast %cst_112 : f32 to vector<1x16xf32>
    %279 = arith.addf %278, %277 : vector<1x16xf32>
    %280 = arith.divf %278, %279 : vector<1x16xf32>
    %281 = vector.shape_cast %275 : vector<16x1xf32> to vector<16x1xf32>
    %282 = vector.broadcast %281 : vector<16x1xf32> to vector<16x16xf32>
    %283 = vector.shape_cast %280 : vector<1x16xf32> to vector<1x16xf32>
    %284 = vector.broadcast %283 : vector<1x16xf32> to vector<16x16xf32>
    %285 = arith.cmpf ogt, %284, %282 : vector<16x16xf32>
    %286 = arith.cmpf oeq, %284, %282 : vector<16x16xf32>
    %287 = arith.cmpi slt, %1, %0 : vector<16x16xi32>
    %288 = arith.andi %286, %287 : vector<16x16xi1>
    %289 = arith.ori %285, %288 : vector<16x16xi1>
    %290 = arith.extui %289 : vector<16x16xi1> to vector<16x16xi32>
    %291 = arith.sitofp %290 : vector<16x16xi32> to vector<16x16xf32>
    %cst_113 = arith.constant dense<0.000000e+00> : vector<16xf32>
    %292 = vector.multi_reduction <add>, %291, %cst_113 [1] : vector<16x16xf32> to vector<16xf32>
    %293 = vector.shape_cast %292 : vector<16xf32> to vector<16x1xf32>
    %cst_114 = arith.constant 8.000000e+00 : f32
    %294 = vector.broadcast %cst_114 : f32 to vector<16x1xf32>
    %295 = arith.cmpf olt, %293, %294 : vector<16x1xf32>
    %296 = arith.extui %295 : vector<16x1xi1> to vector<16x1xi32>
    %297 = arith.sitofp %296 : vector<16x1xi32> to vector<16x1xf32>
    %298 = arith.truncf %291 : vector<16x16xf32> to vector<16x16xbf16>
    %cst_115 = arith.constant dense<0.000000e+00> : vector<1x16xf32>
    %299 = tpu.matmul %6, %298, %cst_115 {dimension_numbers = #tpu.dot_dimension_numbers<[1], [0], [0], [1], [0, 0, 1, 1], [], []>} : vector<1x16xbf16>, vector<16x16xbf16>, vector<1x16xf32> -> vector<1x16xf32>
    %cst_116 = arith.constant 1.500000e+01 : f32
    %300 = vector.broadcast %cst_116 : f32 to vector<1x16xf32>
    %301 = arith.subf %300, %299 : vector<1x16xf32>
    %cst_117 = arith.constant 8.000000e+00 : f32
    %302 = vector.broadcast %cst_117 : f32 to vector<1x16xf32>
    %303 = arith.cmpf olt, %301, %302 : vector<1x16xf32>
    %304 = arith.extui %303 : vector<1x16xi1> to vector<1x16xi32>
    %305 = arith.sitofp %304 : vector<1x16xi32> to vector<1x16xf32>
    %306 = arith.mulf %275, %297 : vector<16x1xf32>
    %307 = vector.broadcast %306 : vector<16x1xf32> to vector<16x64xf32>
    %308 = arith.mulf %265, %307 : vector<16x64xf32>
    %309 = arith.extf %229 : vector<16x16xbf16> to vector<16x16xf32>
    %310 = vector.broadcast %297 : vector<16x1xf32> to vector<16x16xf32>
    %311 = arith.mulf %309, %310 : vector<16x16xf32>
    %312 = vector.broadcast %305 : vector<1x16xf32> to vector<16x16xf32>
    %313 = arith.mulf %311, %312 : vector<16x16xf32>
    %cst_118 = arith.constant 1.000000e+00 : f32
    %314 = vector.broadcast %cst_118 : f32 to vector<16x1xf32>
    %315 = arith.subf %314, %297 : vector<16x1xf32>
    %cst_119 = arith.constant -1.000000e+30 : f32
    %316 = vector.broadcast %cst_119 : f32 to vector<16x1xf32>
    %317 = arith.mulf %315, %316 : vector<16x1xf32>
    %318 = vector.broadcast %317 : vector<16x1xf32> to vector<16x64xf32>
    %319 = arith.addf %308, %318 : vector<16x64xf32>
    %cst_120 = arith.constant dense<0xFF800000> : vector<64xf32>
    %320 = vector.multi_reduction <maximumf>, %319, %cst_120 [0] : vector<16x64xf32> to vector<64xf32>
    %321 = vector.shape_cast %320 : vector<64xf32> to vector<1x64xf32>
    %cst_121 = arith.constant dense<0.000000e+00> : vector<64xf32>
    %322 = vector.multi_reduction <add>, %308, %cst_121 [0] : vector<16x64xf32> to vector<64xf32>
    %323 = vector.shape_cast %322 : vector<64xf32> to vector<1x64xf32>
    %cst_122 = arith.constant 1.250000e-01 : f32
    %324 = vector.broadcast %cst_122 : f32 to vector<1x64xf32>
    %325 = arith.mulf %323, %324 : vector<1x64xf32>
    %326 = arith.truncf %313 : vector<16x16xf32> to vector<16x16xbf16>
    %cst_123 = arith.constant dense<0.000000e+00> : vector<16x16xf32>
    %327 = tpu.matmul %326, %326, %cst_123 {dimension_numbers = #tpu.dot_dimension_numbers<[1], [0], [0], [1], [0, 0, 1, 1], [], []>} : vector<16x16xbf16>, vector<16x16xbf16>, vector<16x16xf32> -> vector<16x16xf32>
    %cst_124 = arith.constant 2.000000e+00 : f32
    %328 = vector.broadcast %cst_124 : f32 to vector<16x16xf32>
    %329 = arith.mulf %328, %313 : vector<16x16xf32>
    %330 = arith.addf %327, %329 : vector<16x16xf32>
    %331 = arith.mulf %330, %4 : vector<16x16xf32>
    %332 = arith.truncf %331 : vector<16x16xf32> to vector<16x16xbf16>
    %333 = arith.truncf %308 : vector<16x64xf32> to vector<16x64xbf16>
    %cst_125 = arith.constant dense<0.000000e+00> : vector<16x1xf32>
    %334 = tpu.matmul %332, %5, %cst_125 {dimension_numbers = #tpu.dot_dimension_numbers<[1], [0], [0], [1], [0, 0, 1, 1], [], []>} : vector<16x16xbf16>, vector<16x1xbf16>, vector<16x1xf32> -> vector<16x1xf32>
    %cst_126 = arith.constant dense<0.000000e+00> : vector<1x16xf32>
    %335 = tpu.matmul %6, %332, %cst_126 {dimension_numbers = #tpu.dot_dimension_numbers<[1], [0], [0], [1], [0, 0, 1, 1], [], []>} : vector<1x16xbf16>, vector<16x16xbf16>, vector<1x16xf32> -> vector<1x16xf32>
    %cst_127 = arith.constant 0.000000e+00 : f32
    %336 = vector.broadcast %cst_127 : f32 to vector<16x1xf32>
    %337 = arith.cmpf ogt, %334, %336 : vector<16x1xf32>
    %338 = math.rsqrt %334 : vector<16x1xf32>
    %cst_128 = arith.constant 0.000000e+00 : f32
    %339 = vector.broadcast %cst_128 : f32 to vector<16x1xf32>
    %340 = arith.select %337, %338, %339 : vector<16x1xi1>, vector<16x1xf32>
    %cst_129 = arith.constant 0.000000e+00 : f32
    %341 = vector.broadcast %cst_129 : f32 to vector<1x16xf32>
    %342 = arith.cmpf ogt, %335, %341 : vector<1x16xf32>
    %343 = math.rsqrt %335 : vector<1x16xf32>
    %cst_130 = arith.constant 0.000000e+00 : f32
    %344 = vector.broadcast %cst_130 : f32 to vector<1x16xf32>
    %345 = arith.select %342, %343, %344 : vector<1x16xi1>, vector<1x16xf32>
    %346 = arith.extf %332 : vector<16x16xbf16> to vector<16x16xf32>
    %347 = vector.broadcast %340 : vector<16x1xf32> to vector<16x16xf32>
    %348 = arith.mulf %347, %346 : vector<16x16xf32>
    %349 = vector.broadcast %345 : vector<1x16xf32> to vector<16x16xf32>
    %350 = arith.mulf %348, %349 : vector<16x16xf32>
    %cst_131 = arith.constant 0.000000e+00 : f32
    %351 = vector.broadcast %cst_131 : f32 to vector<16x16xf32>
    %352 = arith.subf %351, %350 : vector<16x16xf32>
    %353 = arith.truncf %352 : vector<16x16xf32> to vector<16x16xbf16>
    %cst_132 = arith.constant dense<0.000000e+00> : vector<16x64xf32>
    %354 = tpu.matmul %353, %333, %cst_132 {dimension_numbers = #tpu.dot_dimension_numbers<[1], [0], [0], [1], [0, 0, 1, 1], [], []>} : vector<16x16xbf16>, vector<16x64xbf16>, vector<16x64xf32> -> vector<16x64xf32>
    %355 = arith.truncf %354 : vector<16x64xf32> to vector<16x64xbf16>
    %cst_133 = arith.constant dense<0.000000e+00> : vector<16x64xf32>
    %356 = tpu.matmul %353, %355, %cst_133 {dimension_numbers = #tpu.dot_dimension_numbers<[1], [0], [0], [1], [0, 0, 1, 1], [], []>} : vector<16x16xbf16>, vector<16x64xbf16>, vector<16x64xf32> -> vector<16x64xf32>
    %cst_134 = arith.constant 2.000000e+00 : f32
    %357 = vector.broadcast %cst_134 : f32 to vector<16x64xf32>
    %358 = arith.mulf %357, %356 : vector<16x64xf32>
    %359 = arith.extf %333 : vector<16x64xbf16> to vector<16x64xf32>
    %360 = arith.subf %358, %359 : vector<16x64xf32>
    %cst_135 = arith.constant dense<0.000000e+00> : vector<16x64xf32>
    %361 = tpu.matmul %333, %14, %cst_135 {dimension_numbers = #tpu.dot_dimension_numbers<[1], [0], [0], [1], [0, 0, 1, 1], [], []>} : vector<16x64xbf16>, vector<64x64xbf16>, vector<16x64xf32> -> vector<16x64xf32>
    %362 = arith.truncf %354 : vector<16x64xf32> to vector<16x64xbf16>
    %cst_136 = arith.constant dense<0.000000e+00> : vector<16x64xf32>
    %363 = tpu.matmul %362, %16, %cst_136 {dimension_numbers = #tpu.dot_dimension_numbers<[1], [0], [0], [1], [0, 0, 1, 1], [], []>} : vector<16x64xbf16>, vector<64x64xbf16>, vector<16x64xf32> -> vector<16x64xf32>
    %364 = arith.addf %361, %363 : vector<16x64xf32>
    %365 = arith.truncf %360 : vector<16x64xf32> to vector<16x64xbf16>
    %cst_137 = arith.constant dense<0.000000e+00> : vector<16x64xf32>
    %366 = tpu.matmul %365, %18, %cst_137 {dimension_numbers = #tpu.dot_dimension_numbers<[1], [0], [0], [1], [0, 0, 1, 1], [], []>} : vector<16x64xbf16>, vector<64x64xbf16>, vector<16x64xf32> -> vector<16x64xf32>
    %367 = arith.addf %364, %366 : vector<16x64xf32>
    %368 = vector.broadcast %21 : vector<1x64xf32> to vector<16x64xf32>
    %369 = arith.addf %367, %368 : vector<16x64xf32>
    %370 = vector.broadcast %22 : vector<1x64xf32> to vector<16x64xf32>
    %371 = arith.mulf %369, %370 : vector<16x64xf32>
    %cst_138 = arith.constant dense<0.000000e+00> : vector<16xf32>
    %372 = vector.multi_reduction <add>, %371, %cst_138 [1] : vector<16x64xf32> to vector<16xf32>
    %373 = vector.shape_cast %372 : vector<16xf32> to vector<16x1xf32>
    %cst_139 = arith.constant dense<0.000000e+00> : vector<1x16xf32>
    %374 = tpu.matmul %22, %369, %cst_139 {dimension_numbers = #tpu.dot_dimension_numbers<[1], [1], [0], [0], [0, 0, 1, 0], [], []>} : vector<1x64xf32>, vector<16x64xf32>, vector<1x16xf32> -> vector<1x16xf32>
    %375 = arith.negf %373 : vector<16x1xf32>
    %376 = math.exp %375 : vector<16x1xf32>
    %cst_140 = arith.constant 1.000000e+00 : f32
    %377 = vector.broadcast %cst_140 : f32 to vector<16x1xf32>
    %378 = arith.addf %377, %376 : vector<16x1xf32>
    %379 = arith.divf %377, %378 : vector<16x1xf32>
    %380 = arith.negf %374 : vector<1x16xf32>
    %381 = math.exp %380 : vector<1x16xf32>
    %cst_141 = arith.constant 1.000000e+00 : f32
    %382 = vector.broadcast %cst_141 : f32 to vector<1x16xf32>
    %383 = arith.addf %382, %381 : vector<1x16xf32>
    %384 = arith.divf %382, %383 : vector<1x16xf32>
    %cst_142 = arith.constant 0.000000e+00 : f32
    %385 = vector.broadcast %cst_142 : f32 to vector<16x1xf32>
    %386 = arith.cmpf ogt, %297, %385 : vector<16x1xf32>
    %cst_143 = arith.constant -1.000000e+30 : f32
    %387 = vector.broadcast %cst_143 : f32 to vector<16x1xf32>
    %388 = arith.select %386, %379, %387 : vector<16x1xi1>, vector<16x1xf32>
    %cst_144 = arith.constant 0.000000e+00 : f32
    %389 = vector.broadcast %cst_144 : f32 to vector<1x16xf32>
    %390 = arith.cmpf ogt, %305, %389 : vector<1x16xf32>
    %cst_145 = arith.constant -1.000000e+30 : f32
    %391 = vector.broadcast %cst_145 : f32 to vector<1x16xf32>
    %392 = arith.select %390, %384, %391 : vector<1x16xi1>, vector<1x16xf32>
    %393 = vector.shape_cast %388 : vector<16x1xf32> to vector<16x1xf32>
    %394 = vector.broadcast %393 : vector<16x1xf32> to vector<16x16xf32>
    %395 = vector.shape_cast %392 : vector<1x16xf32> to vector<1x16xf32>
    %396 = vector.broadcast %395 : vector<1x16xf32> to vector<16x16xf32>
    %397 = arith.cmpf ogt, %396, %394 : vector<16x16xf32>
    %398 = arith.cmpf oeq, %396, %394 : vector<16x16xf32>
    %399 = arith.cmpi slt, %1, %0 : vector<16x16xi32>
    %400 = arith.andi %398, %399 : vector<16x16xi1>
    %401 = arith.ori %397, %400 : vector<16x16xi1>
    %402 = arith.extui %401 : vector<16x16xi1> to vector<16x16xi32>
    %403 = arith.sitofp %402 : vector<16x16xi32> to vector<16x16xf32>
    %cst_146 = arith.constant dense<0.000000e+00> : vector<16xf32>
    %404 = vector.multi_reduction <add>, %403, %cst_146 [1] : vector<16x16xf32> to vector<16xf32>
    %405 = vector.shape_cast %404 : vector<16xf32> to vector<16x1xf32>
    %cst_147 = arith.constant 4.000000e+00 : f32
    %406 = vector.broadcast %cst_147 : f32 to vector<16x1xf32>
    %407 = arith.cmpf olt, %405, %406 : vector<16x1xf32>
    %408 = arith.extui %407 : vector<16x1xi1> to vector<16x1xi32>
    %409 = arith.sitofp %408 : vector<16x1xi32> to vector<16x1xf32>
    %410 = arith.mulf %379, %409 : vector<16x1xf32>
    %411 = vector.broadcast %410 : vector<16x1xf32> to vector<16x64xf32>
    %412 = arith.mulf %369, %411 : vector<16x64xf32>
    %cst_148 = arith.constant 1.000000e+00 : f32
    %413 = vector.broadcast %cst_148 : f32 to vector<16x1xf32>
    %414 = arith.subf %413, %409 : vector<16x1xf32>
    %cst_149 = arith.constant -1.000000e+30 : f32
    %415 = vector.broadcast %cst_149 : f32 to vector<16x1xf32>
    %416 = arith.mulf %414, %415 : vector<16x1xf32>
    %417 = vector.broadcast %416 : vector<16x1xf32> to vector<16x64xf32>
    %418 = arith.addf %412, %417 : vector<16x64xf32>
    %cst_150 = arith.constant dense<0xFF800000> : vector<64xf32>
    %419 = vector.multi_reduction <maximumf>, %418, %cst_150 [0] : vector<16x64xf32> to vector<64xf32>
    %420 = vector.shape_cast %419 : vector<64xf32> to vector<1x64xf32>
    %cst_151 = arith.constant dense<0.000000e+00> : vector<64xf32>
    %421 = vector.multi_reduction <add>, %412, %cst_151 [0] : vector<16x64xf32> to vector<64xf32>
    %422 = vector.shape_cast %421 : vector<64xf32> to vector<1x64xf32>
    %cst_152 = arith.constant 2.500000e-01 : f32
    %423 = vector.broadcast %cst_152 : f32 to vector<1x64xf32>
    %424 = arith.mulf %422, %423 : vector<1x64xf32>
    %425 = tpu.concatenate %321, %325, %420, %424 in 0 : vector<1x64xf32>, vector<1x64xf32>, vector<1x64xf32>, vector<1x64xf32> -> vector<4x64xf32>
    %c1_153 = arith.constant 1 : index
    %c0_154 = arith.constant 0 : index
    %c0_155 = arith.constant 0 : index
    %426 = vector.load %arg9[%c1_153, %c0_154, %c0_155] : memref<2x4x64xf32, #tpu.memory_space<vmem>>, vector<1x4x64xf32>
    %427 = vector.shape_cast %426 : vector<1x4x64xf32> to vector<4x64xf32>
    %428 = vector.shape_cast %425 : vector<4x64xf32> to vector<1x4x64xf32>
    tpu.vector_store %arg9[%c1_153, %c0_154, %c0_155], %428 {strides = array<i32>} : memref<2x4x64xf32, #tpu.memory_space<vmem>>, vector<1x4x64xf32>,
    return
  }
  func.func @transform_0(%arg0: i32) -> (i32, i32, i32) {
    %c0_i32 = arith.constant 0 : i32
    %c0_i32_0 = arith.constant 0 : i32
    %c0_i32_1 = arith.constant 0 : i32
    return %arg0, %c0_i32, %c0_i32_0 : i32, i32, i32
  }
  func.func @transform_1(%arg0: i32) -> (i32, i32, i32) {
    %c0_i32 = arith.constant 0 : i32
    %c0_i32_0 = arith.constant 0 : i32
    %c0_i32_1 = arith.constant 0 : i32
    return %arg0, %c0_i32, %c0_i32_0 : i32, i32, i32
  }
  func.func @transform_2(%arg0: i32) -> (i32, i32, i32) {
    %c0_i32 = arith.constant 0 : i32
    %c0_i32_0 = arith.constant 0 : i32
    %c0_i32_1 = arith.constant 0 : i32
    %c0_i32_2 = arith.constant 0 : i32
    return %c0_i32, %c0_i32_0, %c0_i32_1 : i32, i32, i32
  }
  func.func @transform_3(%arg0: i32) -> (i32, i32) {
    %c0_i32 = arith.constant 0 : i32
    %c0_i32_0 = arith.constant 0 : i32
    %c0_i32_1 = arith.constant 0 : i32
    return %c0_i32, %c0_i32_0 : i32, i32
  }
  func.func @transform_4(%arg0: i32) -> (i32, i32) {
    %c0_i32 = arith.constant 0 : i32
    %c0_i32_0 = arith.constant 0 : i32
    %c0_i32_1 = arith.constant 0 : i32
    return %c0_i32, %c0_i32_0 : i32, i32
  }
  func.func @transform_5(%arg0: i32) -> (i32, i32, i32) {
    %c0_i32 = arith.constant 0 : i32
    %c0_i32_0 = arith.constant 0 : i32
    %c0_i32_1 = arith.constant 0 : i32
    %c0_i32_2 = arith.constant 0 : i32
    return %c0_i32, %c0_i32_0, %c0_i32_1 : i32, i32, i32
  }
  func.func @transform_6(%arg0: i32) -> (i32, i32) {
    %c0_i32 = arith.constant 0 : i32
    %c0_i32_0 = arith.constant 0 : i32
    %c0_i32_1 = arith.constant 0 : i32
    return %c0_i32, %c0_i32_0 : i32, i32
  }
  func.func @transform_7(%arg0: i32) -> (i32, i32) {
    %c0_i32 = arith.constant 0 : i32
    %c0_i32_0 = arith.constant 0 : i32
    %c0_i32_1 = arith.constant 0 : i32
    return %c0_i32, %c0_i32_0 : i32, i32
  }
  func.func @transform_8(%arg0: i32) -> (i32, i32, i32) {
    %c0_i32 = arith.constant 0 : i32
    %c0_i32_0 = arith.constant 0 : i32
    %c0_i32_1 = arith.constant 0 : i32
    return %arg0, %c0_i32, %c0_i32_0 : i32, i32, i32
  }
}

</mosaic_0001>

<llo_original>
// kernel: tpu_custom_call.1
$region0: #{tpu_custom_call.1}
  #allocation0 [shape = 'u32[]', space=smem, size = 0x4, offset = 0x4, fixed_abs, tag = 'smem constant byte address 0x4 - core index']
  #allocation1 [shape = 'u32[144,128]{1,0:T(1,128)}', space=vmem, size = 0x12000, scoped, tag = 'internal scratch']
  %s0 = inlined_call_operand.hbm [shape: bf16[4,16,16], index: 0, kind: input, shape index: {}]
  %s1 = inlined_call_operand.hbm [shape: bf16[4,16,16], index: 1, kind: input, shape index: {}]
  %s2 = inlined_call_operand.hbm [shape: bf16[3,16,64], index: 2, kind: input, shape index: {}]
  %s3 = inlined_call_operand.vmem [shape: f32[1,64], index: 3, kind: input, shape index: {}]
  %s4 = inlined_call_operand.vmem [shape: f32[1,64], index: 4, kind: input, shape index: {}]
  %s5 = inlined_call_operand.hbm [shape: bf16[3,64,64], index: 5, kind: input, shape index: {}]
  %s6 = inlined_call_operand.vmem [shape: f32[1,64], index: 6, kind: input, shape index: {}]
  %s7 = inlined_call_operand.vmem [shape: f32[1,64], index: 7, kind: input, shape index: {}]
  %s8 = inlined_call_operand.hbm [shape: f32[4,4,64], index: 8, kind: output, shape index: {}]
  %s9 = sld [smem:[#allocation0]]
  $region81: #{tpu_custom_call.1} parent=0
    _
  %s11 = ssub.s32 1, %s9
  %s12 = scalar_select 0, %s11, %s9
  $region1: #{tpu_custom_call.1} parent=0
    #allocation2 [shape = 'u8[16384]{0}', space=vmem, size = 0x4000, scoped, tag = 'input window, operand 0']
    #allocation3 [shape = 's32[2]{0}', space=sflag, size = 0x8, scoped, tag = 'scoped memory for tpu_custom_call.1']
    #allocation4 [shape = 's32[2]{0}', space=sflag, size = 0x8, scoped, tag = 'scoped memory for tpu_custom_call.1']
    #allocation5 [shape = 'u8[16384]{0}', space=vmem, size = 0x4000, scoped, tag = 'input window, operand 1']
    #allocation6 [shape = 's32[2]{0}', space=sflag, size = 0x8, scoped, tag = 'scoped memory for tpu_custom_call.1']
    #allocation7 [shape = 'u8[12288]{0}', space=vmem, size = 0x3000, scoped, tag = 'input window, operand 2, single buffered']
    #allocation8 [shape = 'u8[49152]{0}', space=vmem, size = 0xc000, scoped, tag = 'input window, operand 5, single buffered']
    #allocation9 [shape = 's32[1]{0}', space=sflag, size = 0x4, scoped, tag = 'scoped memory for tpu_custom_call.1']
    #allocation10 [shape = 'u8[8192]{0}', space=vmem, size = 0x2000, scoped, tag = 'output window, operand 0']
    %13 = vsyncpa [#allocation3], 0
    %s14 = scalar_lea.sflag [#allocation3], 1
    %15 = vsyncpa %s14, 0
    %16 = vsyncpa [#allocation6], 0
    %s17 = scalar_lea.sflag [#allocation6], 1
    %18 = vsyncpa %s17, 0
    %19 = vsyncpa [#allocation9], 0
    %20 = vsyncpa [#allocation4], 0
    %s21 = scalar_lea.sflag [#allocation4], 1
    %22 = vsyncpa %s21, 0
    loop: start=0, step=1, limit=4
    $region2: #{tpu_custom_call.1} parent=1 // loop_pre_header
      _
    $region3: #{tpu_custom_call.1} parent=1 // loop_header
      %s24 = sphi 0, %s28
      %p25 = scmp.ge.s32.totalorder %s24, 4
      %s34 = sphi 0, %s36
      %s37 = sphi 0, %s34
      %s38 = sphi 0, %s37
      %s54 = sphi 0, %s38
      %s60 = sphi 0, %s62
      %s63 = sphi 0, %s60
      %s64 = sphi 0, %s63
      %s80 = sphi 0, %s64
      %s84 = sphi 0, %s84
      %s86 = sphi 0, %s84
      %s87 = sphi 0, %s86
      %s101 = sphi 0, %s87
      %s105 = sphi 0, %s105
      %s107 = sphi 0, %s105
      %s108 = sphi 0, %s107
      %s122 = sphi 0, %s108
      %s126 = sphi 0, %s126
      %s128 = sphi 0, %s126
      %s129 = sphi 0, %s128
      %s143 = sphi 0, %s129
      %s147 = sphi 0, %s147
      %s149 = sphi 0, %s147
      %s150 = sphi 0, %s149
      %s164 = sphi 0, %s150
      %s168 = sphi 0, %s168
      %s170 = sphi 0, %s168
      %s171 = sphi 0, %s170
      %s185 = sphi 0, %s171
      %s189 = sphi 0, %s189
      %s191 = sphi 0, %s189
      %s192 = sphi 0, %s191
      %s206 = sphi 0, %s192
      %s212 = sphi 0, %s214
      %s215 = sphi 0, %s212
      %s216 = sphi 0, %s215
      %s232 = sphi 0, %s216
    $region4: #{tpu_custom_call.1} parent=1 // loop_header_branch
      %27 = sbr.rel (%p25) target = $region8
    $region5: #{tpu_custom_call.1} parent=1 // loop_body
      %s29 = ssub.s32 %s24, 1
      %s30 = ssub.s32 %s24, 2
      %s31 = sadd.s32 %s24, 1
      %s32 = ssub.s32 %s24, %s31
      %p33 = scmp.eq.s32.totalorder %s32, 0
      %s35 = sadd.s32 %s34, 1
      %s36 = scalar_select %p33, %s34, %s35
      %p39 = pneg %p33
      %p40 = scmp.eq.s32.totalorder %s24, 1
      %p41 = por %p39, %p40
      %p42 = scmp.ne.s32.totalorder %s34, %s37
      %p43 = scmp.eq.s32.totalorder %s24, 0
      %p44 = por %p42, %p43
      %p45 = scmp.ne.s32.totalorder %s34, %s37
      %p46 = scmp.eq.s32.totalorder %s29, 1
      %p47 = por %p45, %p46
      %p48 = scmp.ne.s32.totalorder %s37, %s38
      %p49 = scmp.eq.s32.totalorder %s29, 0
      %p50 = por %p48, %p49
      %p51 = scmp.ne.s32.totalorder %s37, %s38
      %p52 = scmp.eq.s32.totalorder %s30, 1
      %p53 = por %p51, %p52
      %p55 = scmp.ne.s32.totalorder %s38, %s54
      %p56 = scmp.eq.s32.totalorder %s30, 0
      %p57 = por %p55, %p56
      %s58 = ssub.s32 %s24, %s31
      %p59 = scmp.eq.s32.totalorder %s58, 0
      %s61 = sadd.s32 %s60, 1
      %s62 = scalar_select %p59, %s60, %s61
      %p65 = pneg %p59
      %p66 = scmp.eq.s32.totalorder %s24, 1
      %p67 = por %p65, %p66
      %p68 = scmp.ne.s32.totalorder %s60, %s63
      %p69 = scmp.eq.s32.totalorder %s24, 0
      %p70 = por %p68, %p69
      %p71 = scmp.ne.s32.totalorder %s60, %s63
      %p72 = scmp.eq.s32.totalorder %s29, 1
      %p73 = por %p71, %p72
      %p74 = scmp.ne.s32.totalorder %s63, %s64
      %p75 = scmp.eq.s32.totalorder %s29, 0
      %p76 = por %p74, %p75
      %p77 = scmp.ne.s32.totalorder %s63, %s64
      %p78 = scmp.eq.s32.totalorder %s30, 1
      %p79 = por %p77, %p78
      %p81 = scmp.ne.s32.totalorder %s64, %s80
      %p82 = scmp.eq.s32.totalorder %s30, 0
      %p83 = por %p81, %p82
      %s85 = sadd.s32 %s84, 1
      %p88 = scmp.eq.s32.totalorder %s24, 1
      %p89 = scmp.ne.s32.totalorder %s84, %s86
      %p90 = scmp.eq.s32.totalorder %s24, 0
      %p91 = por %p89, %p90
      %p92 = scmp.ne.s32.totalorder %s84, %s86
      %p93 = scmp.eq.s32.totalorder %s29, 1
      %p94 = por %p92, %p93
      %p95 = scmp.ne.s32.totalorder %s86, %s87
      %p96 = scmp.eq.s32.totalorder %s29, 0
      %p97 = por %p95, %p96
      %p98 = scmp.ne.s32.totalorder %s86, %s87
      %p99 = scmp.eq.s32.totalorder %s30, 1
      %p100 = por %p98, %p99
      %p102 = scmp.ne.s32.totalorder %s87, %s101
      %p103 = scmp.eq.s32.totalorder %s30, 0
      %p104 = por %p102, %p103
      %s106 = sadd.s32 %s105, 1
      %p109 = scmp.eq.s32.totalorder %s24, 1
      %p110 = scmp.ne.s32.totalorder %s105, %s107
      %p111 = scmp.eq.s32.totalorder %s24, 0
      %p112 = por %p110, %p111
      %p113 = scmp.ne.s32.totalorder %s105, %s107
      %p114 = scmp.eq.s32.totalorder %s29, 1
      %p115 = por %p113, %p114
      %p116 = scmp.ne.s32.totalorder %s107, %s108
      %p117 = scmp.eq.s32.totalorder %s29, 0
      %p118 = por %p116, %p117
      %p119 = scmp.ne.s32.totalorder %s107, %s108
      %p120 = scmp.eq.s32.totalorder %s30, 1
      %p121 = por %p119, %p120
      %p123 = scmp.ne.s32.totalorder %s108, %s122
      %p124 = scmp.eq.s32.totalorder %s30, 0
      %p125 = por %p123, %p124
      %s127 = sadd.s32 %s126, 1
      %p130 = scmp.eq.s32.totalorder %s24, 1
      %p131 = scmp.ne.s32.totalorder %s126, %s128
      %p132 = scmp.eq.s32.totalorder %s24, 0
      %p133 = por %p131, %p132
      %p134 = scmp.ne.s32.totalorder %s126, %s128
      %p135 = scmp.eq.s32.totalorder %s29, 1
      %p136 = por %p134, %p135
      %p137 = scmp.ne.s32.totalorder %s128, %s129
      %p138 = scmp.eq.s32.totalorder %s29, 0
      %p139 = por %p137, %p138
      %p140 = scmp.ne.s32.totalorder %s128, %s129
      %p141 = scmp.eq.s32.totalorder %s30, 1
      %p142 = por %p140, %p141
      %p144 = scmp.ne.s32.totalorder %s129, %s143
      %p145 = scmp.eq.s32.totalorder %s30, 0
      %p146 = por %p144, %p145
      %s148 = sadd.s32 %s147, 1
      %p151 = scmp.eq.s32.totalorder %s24, 1
      %p152 = scmp.ne.s32.totalorder %s147, %s149
      %p153 = scmp.eq.s32.totalorder %s24, 0
      %p154 = por %p152, %p153
      %p155 = scmp.ne.s32.totalorder %s147, %s149
      %p156 = scmp.eq.s32.totalorder %s29, 1
      %p157 = por %p155, %p156
      %p158 = scmp.ne.s32.totalorder %s149, %s150
      %p159 = scmp.eq.s32.totalorder %s29, 0
      %p160 = por %p158, %p159
      %p161 = scmp.ne.s32.totalorder %s149, %s150
      %p162 = scmp.eq.s32.totalorder %s30, 1
      %p163 = por %p161, %p162
      %p165 = scmp.ne.s32.totalorder %s150, %s164
      %p166 = scmp.eq.s32.totalorder %s30, 0
      %p167 = por %p165, %p166
      %s169 = sadd.s32 %s168, 1
      %p172 = scmp.eq.s32.totalorder %s24, 1
      %p173 = scmp.ne.s32.totalorder %s168, %s170
      %p174 = scmp.eq.s32.totalorder %s24, 0
      %p175 = por %p173, %p174
      %p176 = scmp.ne.s32.totalorder %s168, %s170
      %p177 = scmp.eq.s32.totalorder %s29, 1
      %p178 = por %p176, %p177
      %p179 = scmp.ne.s32.totalorder %s170, %s171
      %p180 = scmp.eq.s32.totalorder %s29, 0
      %p181 = por %p179, %p180
      %p182 = scmp.ne.s32.totalorder %s170, %s171
      %p183 = scmp.eq.s32.totalorder %s30, 1
      %p184 = por %p182, %p183
      %p186 = scmp.ne.s32.totalorder %s171, %s185
      %p187 = scmp.eq.s32.totalorder %s30, 0
      %p188 = por %p186, %p187
      %s190 = sadd.s32 %s189, 1
      %p193 = scmp.eq.s32.totalorder %s24, 1
      %p194 = scmp.ne.s32.totalorder %s189, %s191
      %p195 = scmp.eq.s32.totalorder %s24, 0
      %p196 = por %p194, %p195
      %p197 = scmp.ne.s32.totalorder %s189, %s191
      %p198 = scmp.eq.s32.totalorder %s29, 1
      %p199 = por %p197, %p198
      %p200 = scmp.ne.s32.totalorder %s191, %s192
      %p201 = scmp.eq.s32.totalorder %s29, 0
      %p202 = por %p200, %p201
      %p203 = scmp.ne.s32.totalorder %s191, %s192
      %p204 = scmp.eq.s32.totalorder %s30, 1
      %p205 = por %p203, %p204
      %p207 = scmp.ne.s32.totalorder %s192, %s206
      %p208 = scmp.eq.s32.totalorder %s30, 0
      %p209 = por %p207, %p208
      %s210 = ssub.s32 %s24, %s31
      %p211 = scmp.eq.s32.totalorder %s210, 0
      %s213 = sadd.s32 %s212, 1
      %s214 = scalar_select %p211, %s212, %s213
      %p217 = pneg %p211
      %p218 = scmp.eq.s32.totalorder %s24, 1
      %p219 = por %p217, %p218
      %p220 = scmp.ne.s32.totalorder %s212, %s215
      %p221 = scmp.eq.s32.totalorder %s24, 0
      %p222 = por %p220, %p221
      %p223 = scmp.ne.s32.totalorder %s212, %s215
      %p224 = scmp.eq.s32.totalorder %s29, 1
      %p225 = por %p223, %p224
      %p226 = scmp.ne.s32.totalorder %s215, %s216
      %p227 = scmp.eq.s32.totalorder %s29, 0
      %p228 = por %p226, %p227
      %p229 = scmp.ne.s32.totalorder %s215, %s216
      %p230 = scmp.eq.s32.totalorder %s30, 1
      %p231 = por %p229, %p230
      %p233 = scmp.ne.s32.totalorder %s216, %s232
      %p234 = scmp.eq.s32.totalorder %s30, 0
      %p235 = por %p233, %p234
      %p236 = scmp.le.s32.totalorder 1, %s24
      %p237 = scmp.lt.s32.totalorder %s24, 3
      %p238 = pnand %p236, %p237
      %p239 = pneg %p238
      // Predicated region
      $region9: #{tpu_custom_call.1} parent=5 // pred_check
        _
      $region10: #{tpu_custom_call.1} parent=5 // pred_check_branch
        %241 = sbr.rel (%p238) target = $region12
      $region11: #{tpu_custom_call.1} parent=5 // pred_region
        %s242 = ssub.s32 %s24, 1
        // Predicated region
        $region13: #{tpu_custom_call.1} parent=11 // pred_check
          %p243 = pneg %p97
        $region14: #{tpu_custom_call.1} parent=11 // pred_check_branch
          %245 = sbr.rel (%p243) target = $region16
        $region15: #{tpu_custom_call.1} parent=11 // pred_region
          %s247 = ssub.s32 384, 384
          %248 = vsyncadd [#allocation6], %s247
          %s249 = sshll.u32 [#allocation7], 4
          %s250 = int_to_ptr.vmem [resolvable:$true] %s249
          %255 = dma.hbm_to_vmem [thread:$0]  %s2, 384, %s250, [#allocation6], 64, 64, 4
        $region16: #{tpu_custom_call.1} parent=11 // pred_fallthru
          _
        // Predicated region
        $region17: #{tpu_custom_call.1} parent=11 // pred_check
          %p256 = pneg %p118
        $region18: #{tpu_custom_call.1} parent=11 // pred_check_branch
          %258 = sbr.rel (%p256) target = $region20
        $region19: #{tpu_custom_call.1} parent=11 // pred_region
          _
        $region20: #{tpu_custom_call.1} parent=11 // pred_fallthru
          _
        // Predicated region
        $region21: #{tpu_custom_call.1} parent=11 // pred_check
          %p259 = pneg %p139
        $region22: #{tpu_custom_call.1} parent=11 // pred_check_branch
          %261 = sbr.rel (%p259) target = $region24
        $region23: #{tpu_custom_call.1} parent=11 // pred_region
          _
        $region24: #{tpu_custom_call.1} parent=11 // pred_fallthru
          _
        // Predicated region
        $region25: #{tpu_custom_call.1} parent=11 // pred_check
          %p262 = pneg %p160
        $region26: #{tpu_custom_call.1} parent=11 // pred_check_branch
          %264 = sbr.rel (%p262) target = $region28
        $region27: #{tpu_custom_call.1} parent=11 // pred_region
          %s266 = ssub.s32 1536, 1536
          %267 = vsyncadd [#allocation9], %s266
          %s268 = sshll.u32 [#allocation8], 4
          %s269 = int_to_ptr.vmem [resolvable:$true] %s268
          %274 = dma.hbm_to_vmem [thread:$0]  %s5, 1536, %s269, [#allocation9], 64, 64, 4
        $region28: #{tpu_custom_call.1} parent=11 // pred_fallthru
          _
        // Predicated region
        $region29: #{tpu_custom_call.1} parent=11 // pred_check
          %p275 = pneg %p181
        $region30: #{tpu_custom_call.1} parent=11 // pred_check_branch
          %277 = sbr.rel (%p275) target = $region32
        $region31: #{tpu_custom_call.1} parent=11 // pred_region
          _
        $region32: #{tpu_custom_call.1} parent=11 // pred_fallthru
          _
        // Predicated region
        $region33: #{tpu_custom_call.1} parent=11 // pred_check
          %p278 = pneg %p202
        $region34: #{tpu_custom_call.1} parent=11 // pred_check_branch
          %280 = sbr.rel (%p278) target = $region36
        $region35: #{tpu_custom_call.1} parent=11 // pred_region
          _
        $region36: #{tpu_custom_call.1} parent=11 // pred_fallthru
          _
      $region12: #{tpu_custom_call.1} parent=5 // pred_fallthru
        _
      %p281 = scmp.lt.s32.totalorder %s24, 2
      // Predicated region
      $region37: #{tpu_custom_call.1} parent=5 // pred_check
        %p282 = pneg %p281
      $region38: #{tpu_custom_call.1} parent=5 // pred_check_branch
        %284 = sbr.rel (%p282) target = $region40
      $region39: #{tpu_custom_call.1} parent=5 // pred_region
        // Predicated region
        $region41: #{tpu_custom_call.1} parent=39 // pred_check
          %p285 = pneg %p44
        $region42: #{tpu_custom_call.1} parent=39 // pred_check_branch
          %287 = sbr.rel (%p285) target = $region44
        $region43: #{tpu_custom_call.1} parent=39 // pred_region
          %s288 = sand.u32 %s34, 1
          %s289 = scalar_lea.sflag [#allocation3], %s288
          %s290 = sand.u32 %s34, 1
          %s291 = smul.addr %s290, 16
          %s292 = scalar_lea.vmem [#allocation2], %s291
          %s293 = smul.u32 2, %s24
          %s295 = ssub.s32 256, 256
          %296 = vsyncadd %s289, %s295
          %s297 = smul.addr %s293, 2
          %s298 = smul.addr %s297, 64
          %s299 = scalar_lea.hbm %s0, %s298
          %s300 = sshll.u32 %s292, 4
          %s301 = int_to_ptr.vmem [resolvable:$true] %s300
          %306 = dma.hbm_to_vmem [thread:$0]  %s299, 256, %s301, %s289, 64, 64, 4
        $region44: #{tpu_custom_call.1} parent=39 // pred_fallthru
          _
        // Predicated region
        $region45: #{tpu_custom_call.1} parent=39 // pred_check
          %p307 = pneg %p70
        $region46: #{tpu_custom_call.1} parent=39 // pred_check_branch
          %309 = sbr.rel (%p307) target = $region48
        $region47: #{tpu_custom_call.1} parent=39 // pred_region
          %s310 = sand.u32 %s24, 1
          %s311 = scalar_lea.sflag [#allocation6], %s310
          %s312 = sand.u32 %s60, 1
          %s313 = smul.addr %s312, 16
          %s314 = scalar_lea.vmem [#allocation5], %s313
          %s315 = smul.u32 2, %s24
          %s317 = ssub.s32 256, 256
          %318 = vsyncadd %s311, %s317
          %s319 = smul.addr %s315, 2
          %s320 = smul.addr %s319, 64
          %s321 = scalar_lea.hbm %s1, %s320
          %s322 = sshll.u32 %s314, 4
          %s323 = int_to_ptr.vmem [resolvable:$true] %s322
          %328 = dma.hbm_to_vmem [thread:$0]  %s321, 256, %s323, %s311, 64, 64, 4
        $region48: #{tpu_custom_call.1} parent=39 // pred_fallthru
          _
      $region40: #{tpu_custom_call.1} parent=5 // pred_fallthru
        _
      %p329 = scmp.le.s32.totalorder 1, %s24
      %p330 = scmp.lt.s32.totalorder %s24, 3
      %p331 = pnand %p329, %p330
      %p332 = pneg %p331
      // Predicated region
      $region49: #{tpu_custom_call.1} parent=5 // pred_check
        _
      $region50: #{tpu_custom_call.1} parent=5 // pred_check_branch
        %334 = sbr.rel (%p331) target = $region52
      $region51: #{tpu_custom_call.1} parent=5 // pred_region
        %s335 = ssub.s32 %s24, 1
        %s336 = sand.u32 %s37, 1
        %s337 = scalar_lea.sflag [#allocation3], %s336
        %s338 = sand.u32 %s37, 1
        %s339 = smul.addr %s338, 16
        %s340 = scalar_lea.vmem [#allocation2], %s339
        // Predicated region
        $region53: #{tpu_custom_call.1} parent=51 // pred_check
          %p341 = pneg %p50
        $region54: #{tpu_custom_call.1} parent=51 // pred_check_branch
          %343 = sbr.rel (%p341) target = $region56
        $region55: #{tpu_custom_call.1} parent=51 // pred_region
          %344 = dma.done %s337, 256
        $region56: #{tpu_custom_call.1} parent=51 // pred_fallthru
          _
        %s345 = sand.u32 %s29, 1
        %s346 = scalar_lea.sflag [#allocation6], %s345
        %s347 = sand.u32 %s63, 1
        %s348 = smul.addr %s347, 16
        %s349 = scalar_lea.vmem [#allocation5], %s348
        // Predicated region
        $region57: #{tpu_custom_call.1} parent=51 // pred_check
          %p350 = pneg %p76
        $region58: #{tpu_custom_call.1} parent=51 // pred_check_branch
          %352 = sbr.rel (%p350) target = $region60
        $region59: #{tpu_custom_call.1} parent=51 // pred_region
          %353 = dma.done %s346, 256
        $region60: #{tpu_custom_call.1} parent=51 // pred_fallthru
          _
        // Predicated region
        $region61: #{tpu_custom_call.1} parent=51 // pred_check
          %p354 = pneg %p97
        $region62: #{tpu_custom_call.1} parent=51 // pred_check_branch
          %356 = sbr.rel (%p354) target = $region64
        $region63: #{tpu_custom_call.1} parent=51 // pred_region
          %357 = dma.done [#allocation6], 384
        $region64: #{tpu_custom_call.1} parent=51 // pred_fallthru
          _
        // Predicated region
        $region65: #{tpu_custom_call.1} parent=51 // pred_check
          %p358 = pneg %p160
        $region66: #{tpu_custom_call.1} parent=51 // pred_check_branch
          %360 = sbr.rel (%p358) target = $region68
        $region67: #{tpu_custom_call.1} parent=51 // pred_region
          %361 = dma.done [#allocation9], 1536
        $region68: #{tpu_custom_call.1} parent=51 // pred_fallthru
          _
        %s362 = sand.u32 %s37, 1
        %s363 = scalar_lea.sflag [#allocation3], %s362
        %s364 = sand.u32 %s37, 1
        %s365 = smul.addr %s364, 16
        %s366 = scalar_lea.vmem [#allocation2], %s365
        %p367 = pneg %p50
        %p368 = pneg %p47
        %s369 = sand.u32 %s29, 1
        %s370 = scalar_lea.sflag [#allocation6], %s369
        %s371 = sand.u32 %s63, 1
        %s372 = smul.addr %s371, 16
        %s373 = scalar_lea.vmem [#allocation5], %s372
        %p374 = pneg %p76
        %p375 = pneg %p73
        %p376 = pneg %p97
        %p377 = pneg %p94
        %p378 = pneg %p118
        %p379 = pneg %p115
        %p380 = pneg %p139
        %p381 = pneg %p136
        %p382 = pneg %p160
        %p383 = pneg %p157
        %p384 = pneg %p181
        %p385 = pneg %p178
        %p386 = pneg %p202
        %p387 = pneg %p199
        %p388 = pneg %p228
        %p389 = pneg %p225
        %s390 = sand.u32 %s215, 1
        %s391 = scalar_lea.sflag [#allocation4], %s390
        %s392 = sand.u32 %s215, 1
        %s393 = smul.addr %s392, 8
        %s394 = scalar_lea.vmem [#allocation10], %s393
        %s395 = smul.u32 2, %s29
        %s396 = smul.u32 2, %s29
        %s397 = smul.u32 2, %s29
        %v400 = vlaneseq
        %v401 = vshrl.u32 %v400, 7
        %v402 = vadd.s32 %v401, 8
        %v403 = vlaneseq
        %v404 = vand.u32 %v403, 127
        %vm405 = vcmp.ne.s32.totalorder %v401, %v404
        %vm406 = vcmp.ne.s32.totalorder %v402, %v404
        %v407 = vsel %vm405, 1, 0
        %v408 = vsel %vm406, 1, 0
        %v409 = vcvt.s32.f32 %v407
        %v410 = vcvt.s32.f32 %v408
        %v411 = vld [vmem:[#allocation7] sm:$0xf]
        %v412 = vld [vmem:[#allocation7 + $0x4] sm:$0xf]
        %s413 = scalar_lea.vmem [#allocation7], 8
        %v414 = vld [vmem:[%s413] sm:$0xf]
        %v415 = vld [vmem:[%s413 + $0x4] sm:$0xf]
        %s416 = scalar_lea.vmem [#allocation7], 16
        %v417 = vld [vmem:[%s416] sm:$0xf]
        %v418 = vld [vmem:[%s416 + $0x4] sm:$0xf]
        %v419 = vld [vmem:[#allocation8] sm:$0xf]
        %v420 = vld [vmem:[#allocation8 + $0x4] sm:$0xf]
        %v421 = vld [vmem:[#allocation8 + $0x8] sm:$0xf]
        %v422 = vld [vmem:[#allocation8 + $0xc] sm:$0xf]
        %v423 = vld [vmem:[#allocation8 + $0x10] sm:$0xf]
        %v424 = vld [vmem:[#allocation8 + $0x14] sm:$0xf]
        %v425 = vld [vmem:[#allocation8 + $0x18] sm:$0xf]
        %v426 = vld [vmem:[#allocation8 + $0x1c] sm:$0xf]
        %s427 = scalar_lea.vmem [#allocation8], 32
        %v428 = vld [vmem:[%s427] sm:$0xf]
        %v429 = vld [vmem:[%s427 + $0x4] sm:$0xf]
        %v430 = vld [vmem:[%s427 + $0x8] sm:$0xf]
        %v431 = vld [vmem:[%s427 + $0xc] sm:$0xf]
        %v432 = vld [vmem:[%s427 + $0x10] sm:$0xf]
        %v433 = vld [vmem:[%s427 + $0x14] sm:$0xf]
        %v434 = vld [vmem:[%s427 + $0x18] sm:$0xf]
        %v435 = vld [vmem:[%s427 + $0x1c] sm:$0xf]
        %s436 = scalar_lea.vmem [#allocation8], 64
        %v437 = vld [vmem:[%s436] sm:$0xf]
        %v438 = vld [vmem:[%s436 + $0x4] sm:$0xf]
        %v439 = vld [vmem:[%s436 + $0x8] sm:$0xf]
        %v440 = vld [vmem:[%s436 + $0xc] sm:$0xf]
        %v441 = vld [vmem:[%s436 + $0x10] sm:$0xf]
        %v442 = vld [vmem:[%s436 + $0x14] sm:$0xf]
        %v443 = vld [vmem:[%s436 + $0x18] sm:$0xf]
        %v444 = vld [vmem:[%s436 + $0x1c] sm:$0xf]
        %v445 = vld [vmem:[%s3] sm:$0x1]
        %v446 = vld [vmem:[%s4] sm:$0x1]
        %v447 = vld [vmem:[%s6] sm:$0x1]
        %v448 = vld [vmem:[%s7] sm:$0x1]
        %v449 = vld [vmem:[%s340] sm:$0xf]
        %v450 = vld [vmem:[%s340 + $0x4] sm:$0xf]
        %v451 = vld [vmem:[%s349] sm:$0xf]
        %v452 = vld [vmem:[%s349 + $0x4] sm:$0xf]
        %v455 = vunpack.c.l.b16 %v451
        %v456 = vunpack.c.l.b16 %v452
        %v457 = vpack.c.b16 %v456, %v455
        %vm458 = vcmask 130048
        %v460 = vsel %vm458, %v457, 0
        %462 = vmatprep.subr.bf16.mxu0 0
        %463 = vmatpush1.bf16.msra.mxu0 0
        %464 = vmatprep.subr.bf16.mxu0 0
        %465 = vmatpush1.bf16.msra.mxu0 0
        %466 = vmatprep.subr.bf16.mxu0 0
        %467 = vmatpush1.bf16.msra.mxu0 0
        %468 = vmatprep.subr.bf16.mxu0 0
        %469 = vmatpush1.bf16.msra.mxu0 0
        %470 = vmatprep.subr.bf16.mxu0 0
        %471 = vmatpush1.bf16.msra.mxu0 0
        %472 = vmatprep.subr.bf16.mxu0 0
        %473 = vmatpush1.bf16.msra.mxu0 0
        %474 = vmatprep.subr.bf16.mxu0 0
        %475 = vmatpush1.bf16.msra.mxu0 0
        %476 = vmatprep.subr.bf16.mxu0 0
        %477 = vmatpush1.bf16.msra.mxu0 1065369472
        %478 = vmatprep.subr.bf16.mxu0 0
        %479 = vmatpush2.bf16.msra.mxu0 0
        %480 = vmatprep.subr.bf16.mxu0 0
        %481 = vmatpush2.bf16.msra.mxu0 0
        %482 = vmatprep.subr.bf16.mxu0 0
        %483 = vmatpush2.bf16.msra.mxu0 0
        %484 = vmatprep.subr.bf16.mxu0 0
        %485 = vmatpush2.bf16.msra.mxu0 0
        %486 = vmatprep.subr.bf16.mxu0 0
        %487 = vmatpush2.bf16.msra.mxu0 0
        %488 = vmatprep.subr.bf16.mxu0 0
        %489 = vmatpush2.bf16.msra.mxu0 0
        %490 = vmatprep.subr.bf16.mxu0 0
        %491 = vmatpush2.bf16.msra.mxu0 0
        %492 = vmatprep.subr.bf16.mxu0 0
        %493 = vmatpush2.bf16.msra.mxu0 0
        %494 = vmatprep.mubr.bf16.mxu0 0
        %495 = vmatmul.mubr.bf16.gmra.mxu0 %v460
        %v496 = vpop.f32.mrf.mxu0
        %v497 = vadd.f32 0.0, %v496
        %v498 = vpop.f32.mrf.mxu0
        %v499 = vpop.f32.mrf.mxu0
        %v500 = vadd.f32 0.0, %v499
        %v501 = vpop.f32.mrf.mxu0
        %502 = vdwg.mxu0
        %v505 = vsel %vm458, 1065369472, 0
        %507 = vmatprep.subr.bf16.mxu0 0
        %508 = vmatpush1.bf16.msra.mxu0 0
        %509 = vmatprep.subr.bf16.mxu0 0
        %510 = vmatpush1.bf16.msra.mxu0 0
        %511 = vmatprep.subr.bf16.mxu0 0
        %512 = vmatpush1.bf16.msra.mxu0 0
        %513 = vmatprep.subr.bf16.mxu0 0
        %514 = vmatpush1.bf16.msra.mxu0 0
        %515 = vmatprep.subr.bf16.mxu0 0
        %516 = vmatpush1.bf16.msra.mxu0 0
        %517 = vmatprep.subr.bf16.mxu0 0
        %518 = vmatpush1.bf16.msra.mxu0 0
        %519 = vmatprep.subr.bf16.mxu0 0
        %520 = vmatpush1.bf16.msra.mxu0 0
        %521 = vmatprep.subr.bf16.mxu0 0
        %522 = vmatpush1.bf16.msra.mxu0 %v457
        %523 = vmatprep.subr.bf16.mxu0 0
        %524 = vmatpush2.bf16.msra.mxu0 0
        %525 = vmatprep.subr.bf16.mxu0 0
        %526 = vmatpush2.bf16.msra.mxu0 0
        %527 = vmatprep.subr.bf16.mxu0 0
        %528 = vmatpush2.bf16.msra.mxu0 0
        %529 = vmatprep.subr.bf16.mxu0 0
        %530 = vmatpush2.bf16.msra.mxu0 0
        %531 = vmatprep.subr.bf16.mxu0 0
        %532 = vmatpush2.bf16.msra.mxu0 0
        %533 = vmatprep.subr.bf16.mxu0 0
        %534 = vmatpush2.bf16.msra.mxu0 0
        %535 = vmatprep.subr.bf16.mxu0 0
        %536 = vmatpush2.bf16.msra.mxu0 0
        %537 = vmatprep.subr.bf16.mxu0 0
        %538 = vmatpush2.bf16.msra.mxu0 0
        %539 = vmatprep.mubr.bf16.mxu0 0
        %540 = vmatmul.mubr.bf16.gmra.mxu0 %v505
        %v541 = vpop.f32.mrf.mxu0
        %v542 = vadd.f32 0.0, %v541
        %v543 = vpop.f32.mrf.mxu0
        %v544 = vpop.f32.mrf.mxu0
        %v545 = vpop.f32.mrf.mxu0
        %546 = vdwg.mxu0
        %vm547 = vcmp.gt.f32.partialorder %v497, 0.0
        %vm548 = vcmp.gt.f32.partialorder %v500, 0.0
        %v549 = vrsqrt.pop %v497
        %v550 = vrsqrt.pop %v500
        %v551 = vsel %vm547, %v549, 0.0
        %v552 = vsel %vm548, %v550, 0.0
        %vm553 = vcmp.gt.f32.partialorder %v542, 0.0
        %v554 = vrsqrt.pop %v542
        %v555 = vsel %vm553, %v554, 0.0
        %v556 = vunpack.c.l.bf16 %v451
        %v557 = vunpack.c.l.bf16 %v452
        %559 = vset.pattern.permute.xlu0 0
        %560 = vperm.xlu0 %559, %v551
        %v561 = vpop.permute.xlu0 %560
        %564 = vset.pattern.permute.xlu0 0
        %565 = vperm.xlu0 %564, %v552
        %v566 = vpop.permute.xlu0 %565
        %v568 = vmul.f32 %v561, %v556
        %v569 = vmul.f32 %v566, %v557
        %v570 = vlaneseq
        %v571 = vshrl.u32 %v570, 7
        %v572 = vsub.s32 0, %v571
        %v573 = vrot.slane %v555, %v572
        %v574 = vmul.f32 %v568, %v573
        %v575 = vmul.f32 %v569, %v573
        %v576 = vsub.f32 0.0, %v574
        %v577 = vsub.f32 0.0, %v575
        %v578 = vpack.c.bf16 %v577, %v576
        %v581 = vunpack.c.l.b16 %v449
        %v582 = vunpack.c.l.b16 %v450
        %v583 = vpack.c.b16 %v582, %v581
        %v586 = vsel %vm458, %v578, 0
        %588 = vmatprep.subr.bf16.mxu0 0
        %589 = vmatpush1.bf16.msra.mxu0 0
        %590 = vmatprep.subr.bf16.mxu0 0
        %591 = vmatpush1.bf16.msra.mxu0 0
        %592 = vmatprep.subr.bf16.mxu0 0
        %593 = vmatpush1.bf16.msra.mxu0 0
        %594 = vmatprep.subr.bf16.mxu0 0
        %595 = vmatpush1.bf16.msra.mxu0 0
        %596 = vmatprep.subr.bf16.mxu0 0
        %597 = vmatpush1.bf16.msra.mxu0 0
        %598 = vmatprep.subr.bf16.mxu0 0
        %599 = vmatpush1.bf16.msra.mxu0 0
        %600 = vmatprep.subr.bf16.mxu0 0
        %601 = vmatpush1.bf16.msra.mxu0 0
        %602 = vmatprep.subr.bf16.mxu0 0
        %603 = vmatpush1.bf16.msra.mxu0 %v583
        %604 = vmatprep.subr.bf16.mxu0 0
        %605 = vmatpush2.bf16.msra.mxu0 0
        %606 = vmatprep.subr.bf16.mxu0 0
        %607 = vmatpush2.bf16.msra.mxu0 0
        %608 = vmatprep.subr.bf16.mxu0 0
        %609 = vmatpush2.bf16.msra.mxu0 0
        %610 = vmatprep.subr.bf16.mxu0 0
        %611 = vmatpush2.bf16.msra.mxu0 0
        %612 = vmatprep.subr.bf16.mxu0 0
        %613 = vmatpush2.bf16.msra.mxu0 0
        %614 = vmatprep.subr.bf16.mxu0 0
        %615 = vmatpush2.bf16.msra.mxu0 0
        %616 = vmatprep.subr.bf16.mxu0 0
        %617 = vmatpush2.bf16.msra.mxu0 0
        %618 = vmatprep.subr.bf16.mxu0 0
        %619 = vmatpush2.bf16.msra.mxu0 0
        %620 = vmatprep.mubr.bf16.mxu0 0
        %621 = vmatmul.mubr.bf16.gmra.mxu0 %v586
        %v622 = vpop.f32.mrf.mxu0
        %v623 = vadd.f32 0.0, %v622
        %v624 = vpop.f32.mrf.mxu0
        %v625 = vpop.f32.mrf.mxu0
        %v626 = vadd.f32 0.0, %v625
        %v627 = vpop.f32.mrf.mxu0
        %628 = vdwg.mxu0
        %v629 = vpack.c.bf16 %v626, %v623
        %630 = vmatprep.subr.bf16.mxu0 0
        %631 = vmatpush1.bf16.msra.mxu0 0
        %632 = vmatprep.subr.bf16.mxu0 0
        %633 = vmatpush1.bf16.msra.mxu0 0
        %634 = vmatprep.subr.bf16.mxu0 0
        %635 = vmatpush1.bf16.msra.mxu0 0
        %636 = vmatprep.subr.bf16.mxu0 0
        %637 = vmatpush1.bf16.msra.mxu0 0
        %638 = vmatprep.subr.bf16.mxu0 0
        %639 = vmatpush1.bf16.msra.mxu0 0
        %640 = vmatprep.subr.bf16.mxu0 0
        %641 = vmatpush1.bf16.msra.mxu0 0
        %642 = vmatprep.subr.bf16.mxu0 0
        %643 = vmatpush1.bf16.msra.mxu0 0
        %644 = vmatprep.subr.bf16.mxu0 0
        %645 = vmatpush1.bf16.msra.mxu0 %v629
        %646 = vmatprep.subr.bf16.mxu0 0
        %647 = vmatpush2.bf16.msra.mxu0 0
        %648 = vmatprep.subr.bf16.mxu0 0
        %649 = vmatpush2.bf16.msra.mxu0 0
        %650 = vmatprep.subr.bf16.mxu0 0
        %651 = vmatpush2.bf16.msra.mxu0 0
        %652 = vmatprep.subr.bf16.mxu0 0
        %653 = vmatpush2.bf16.msra.mxu0 0
        %654 = vmatprep.subr.bf16.mxu0 0
        %655 = vmatpush2.bf16.msra.mxu0 0
        %656 = vmatprep.subr.bf16.mxu0 0
        %657 = vmatpush2.bf16.msra.mxu0 0
        %658 = vmatprep.subr.bf16.mxu0 0
        %659 = vmatpush2.bf16.msra.mxu0 0
        %660 = vmatprep.subr.bf16.mxu0 0
        %661 = vmatpush2.bf16.msra.mxu0 0
        %662 = vmatprep.mubr.bf16.mxu0 0
        %663 = vmatmul.mubr.bf16.gmra.mxu0 %v586
        %v664 = vpop.f32.mrf.mxu0
        %v665 = vadd.f32 0.0, %v664
        %v666 = vpop.f32.mrf.mxu0
        %v667 = vpop.f32.mrf.mxu0
        %v668 = vadd.f32 0.0, %v667
        %v669 = vpop.f32.mrf.mxu0
        %670 = vdwg.mxu0
        %v671 = vmul.f32 %v665, 2.0
        %v672 = vmul.f32 %v668, 2.0
        %v673 = vunpack.c.l.bf16 %v449
        %v674 = vunpack.c.l.bf16 %v450
        %v675 = vsub.f32 %v671, %v673
        %v676 = vsub.f32 %v672, %v674
        %v679 = vunpack.c.l.b16 %v414
        %v680 = vunpack.c.l.b16 %v415
        %v681 = vpack.c.b16 %v680, %v679
        %v684 = vsel %vm458, %v629, 0
        %686 = vmatprep.subr.bf16.mxu0 0
        %687 = vmatpush1.bf16.msra.mxu0 0
        %688 = vmatprep.subr.bf16.mxu0 0
        %689 = vmatpush1.bf16.msra.mxu0 0
        %690 = vmatprep.subr.bf16.mxu0 0
        %691 = vmatpush1.bf16.msra.mxu0 0
        %692 = vmatprep.subr.bf16.mxu0 0
        %693 = vmatpush1.bf16.msra.mxu0 0
        %694 = vmatprep.subr.bf16.mxu0 0
        %695 = vmatpush1.bf16.msra.mxu0 0
        %696 = vmatprep.subr.bf16.mxu0 0
        %697 = vmatpush1.bf16.msra.mxu0 0
        %698 = vmatprep.subr.bf16.mxu0 0
        %699 = vmatpush1.bf16.msra.mxu0 0
        %700 = vmatprep.subr.bf16.mxu0 0
        %701 = vmatpush1.bf16.msra.mxu0 %v681
        %702 = vmatprep.subr.bf16.mxu0 0
        %703 = vmatpush2.bf16.msra.mxu0 0
        %704 = vmatprep.subr.bf16.mxu0 0
        %705 = vmatpush2.bf16.msra.mxu0 0
        %706 = vmatprep.subr.bf16.mxu0 0
        %707 = vmatpush2.bf16.msra.mxu0 0
        %708 = vmatprep.subr.bf16.mxu0 0
        %709 = vmatpush2.bf16.msra.mxu0 0
        %710 = vmatprep.subr.bf16.mxu0 0
        %711 = vmatpush2.bf16.msra.mxu0 0
        %712 = vmatprep.subr.bf16.mxu0 0
        %713 = vmatpush2.bf16.msra.mxu0 0
        %714 = vmatprep.subr.bf16.mxu0 0
        %715 = vmatpush2.bf16.msra.mxu0 0
        %716 = vmatprep.subr.bf16.mxu0 0
        %717 = vmatpush2.bf16.msra.mxu0 0
        %718 = vmatprep.mubr.bf16.mxu0 0
        %719 = vmatmul.mubr.bf16.gmra.mxu0 %v684
        %v720 = vpop.f32.mrf.mxu0
        %v721 = vadd.f32 0.0, %v720
        %v722 = vpop.f32.mrf.mxu0
        %v723 = vpop.f32.mrf.mxu0
        %v724 = vadd.f32 0.0, %v723
        %v725 = vpop.f32.mrf.mxu0
        %726 = vdwg.mxu0
        %v729 = vunpack.c.l.b16 %v411
        %v730 = vunpack.c.l.b16 %v412
        %v731 = vpack.c.b16 %v730, %v729
        %v734 = vsel %vm458, %v583, 0
        %736 = vmatprep.subr.bf16.mxu0 0
        %737 = vmatpush1.bf16.msra.mxu0 0
        %738 = vmatprep.subr.bf16.mxu0 0
        %739 = vmatpush1.bf16.msra.mxu0 0
        %740 = vmatprep.subr.bf16.mxu0 0
        %741 = vmatpush1.bf16.msra.mxu0 0
        %742 = vmatprep.subr.bf16.mxu0 0
        %743 = vmatpush1.bf16.msra.mxu0 0
        %744 = vmatprep.subr.bf16.mxu0 0
        %745 = vmatpush1.bf16.msra.mxu0 0
        %746 = vmatprep.subr.bf16.mxu0 0
        %747 = vmatpush1.bf16.msra.mxu0 0
        %748 = vmatprep.subr.bf16.mxu0 0
        %749 = vmatpush1.bf16.msra.mxu0 0
        %750 = vmatprep.subr.bf16.mxu0 0
        %751 = vmatpush1.bf16.msra.mxu0 %v731
        %752 = vmatprep.subr.bf16.mxu0 0
        %753 = vmatpush2.bf16.msra.mxu0 0
        %754 = vmatprep.subr.bf16.mxu0 0
        %755 = vmatpush2.bf16.msra.mxu0 0
        %756 = vmatprep.subr.bf16.mxu0 0
        %757 = vmatpush2.bf16.msra.mxu0 0
        %758 = vmatprep.subr.bf16.mxu0 0
        %759 = vmatpush2.bf16.msra.mxu0 0
        %760 = vmatprep.subr.bf16.mxu0 0
        %761 = vmatpush2.bf16.msra.mxu0 0
        %762 = vmatprep.subr.bf16.mxu0 0
        %763 = vmatpush2.bf16.msra.mxu0 0
        %764 = vmatprep.subr.bf16.mxu0 0
        %765 = vmatpush2.bf16.msra.mxu0 0
        %766 = vmatprep.subr.bf16.mxu0 0
        %767 = vmatpush2.bf16.msra.mxu0 0
        %768 = vmatprep.mubr.bf16.mxu0 0
        %769 = vmatmul.mubr.bf16.gmra.mxu0 %v734
        %v770 = vpop.f32.mrf.mxu0
        %v771 = vadd.f32 %v721, %v770
        %v772 = vpop.f32.mrf.mxu0
        %v773 = vpop.f32.mrf.mxu0
        %v774 = vadd.f32 %v724, %v773
        %v775 = vpop.f32.mrf.mxu0
        %776 = vdwg.mxu0
        %v777 = vpack.c.bf16 %v676, %v675
        %v780 = vunpack.c.l.b16 %v417
        %v781 = vunpack.c.l.b16 %v418
        %v782 = vpack.c.b16 %v781, %v780
        %v785 = vsel %vm458, %v777, 0
        %787 = vmatprep.subr.bf16.mxu0 0
        %788 = vmatpush1.bf16.msra.mxu0 0
        %789 = vmatprep.subr.bf16.mxu0 0
        %790 = vmatpush1.bf16.msra.mxu0 0
        %791 = vmatprep.subr.bf16.mxu0 0
        %792 = vmatpush1.bf16.msra.mxu0 0
        %793 = vmatprep.subr.bf16.mxu0 0
        %794 = vmatpush1.bf16.msra.mxu0 0
        %795 = vmatprep.subr.bf16.mxu0 0
        %796 = vmatpush1.bf16.msra.mxu0 0
        %797 = vmatprep.subr.bf16.mxu0 0
        %798 = vmatpush1.bf16.msra.mxu0 0
        %799 = vmatprep.subr.bf16.mxu0 0
        %800 = vmatpush1.bf16.msra.mxu0 0
        %801 = vmatprep.subr.bf16.mxu0 0
        %802 = vmatpush1.bf16.msra.mxu0 %v782
        %803 = vmatprep.subr.bf16.mxu0 0
        %804 = vmatpush2.bf16.msra.mxu0 0
        %805 = vmatprep.subr.bf16.mxu0 0
        %806 = vmatpush2.bf16.msra.mxu0 0
        %807 = vmatprep.subr.bf16.mxu0 0
        %808 = vmatpush2.bf16.msra.mxu0 0
        %809 = vmatprep.subr.bf16.mxu0 0
        %810 = vmatpush2.bf16.msra.mxu0 0
        %811 = vmatprep.subr.bf16.mxu0 0
        %812 = vmatpush2.bf16.msra.mxu0 0
        %813 = vmatprep.subr.bf16.mxu0 0
        %814 = vmatpush2.bf16.msra.mxu0 0
        %815 = vmatprep.subr.bf16.mxu0 0
        %816 = vmatpush2.bf16.msra.mxu0 0
        %817 = vmatprep.subr.bf16.mxu0 0
        %818 = vmatpush2.bf16.msra.mxu0 0
        %819 = vmatprep.mubr.bf16.mxu0 0
        %820 = vmatmul.mubr.bf16.gmra.mxu0 %v785
        %v821 = vpop.f32.mrf.mxu0
        %v822 = vadd.f32 0.0, %v821
        %v823 = vpop.f32.mrf.mxu0
        %v824 = vpop.f32.mrf.mxu0
        %v825 = vadd.f32 0.0, %v824
        %v826 = vpop.f32.mrf.mxu0
        %827 = vdwg.mxu0
        %v828 = vadd.f32 %v771, %v822
        %v829 = vadd.f32 %v774, %v825
        %v831 = vlaneseq
        %v832 = vshrl.u32 %v831, 7
        %v833 = vsub.s32 0, %v832
        %v834 = vrot.slane %v445, %v833
        %v836 = vadd.f32 %v828, %v834
        %v837 = vadd.f32 %v829, %v834
        %v839 = vlaneseq
        %v840 = vshrl.u32 %v839, 7
        %v841 = vsub.s32 0, %v840
        %v842 = vrot.slane %v446, %v841
        %v844 = vmul.f32 %v836, %v842
        %v845 = vmul.f32 %v837, %v842
        %vm846 = vcmask 523264
        %v847 = vsel %vm846, %v844, 0.0
        %848 = vadd.xlane.f32.xlu0 %v847
        %v849 = vpop.xlane.xlu0 %848
        %v850 = vsel %vm846, %v845, 0.0
        %851 = vadd.xlane.f32.xlu0 %v850
        %v852 = vpop.xlane.xlu0 %851
        %v853 = vsel %vm846, %v446, 0
        %v856 = vsel %vm846, %v836, 0
        %v859 = vsel %vm846, %v837, 0
        %861 = vmatprep.subr.mxu0 0.0
        %862 = vmatpush1.xpose.msra.mxu0 0.0
        %863 = vmatprep.subr.mxu0 0.0
        %864 = vmatpush1.xpose.msra.mxu0 0.0
        %865 = vmatprep.subr.mxu0 0.0
        %866 = vmatpush1.xpose.msra.mxu0 0.0
        %867 = vmatprep.subr.mxu0 0.0
        %868 = vmatpush1.xpose.msra.mxu0 0.0
        %869 = vmatprep.subr.mxu0 0.0
        %870 = vmatpush1.xpose.msra.mxu0 0.0
        %871 = vmatprep.subr.mxu0 0.0
        %872 = vmatpush1.xpose.msra.mxu0 0.0
        %873 = vmatprep.subr.mxu0 0.0
        %874 = vmatpush1.xpose.msra.mxu0 0.0
        %875 = vmatprep.subr.mxu0 0.0
        %876 = vmatpush1.xpose.msra.mxu0 0.0
        %877 = vmatprep.subr.mxu0 0.0
        %878 = vmatpush1.xpose.msra.mxu0 0.0
        %879 = vmatprep.subr.mxu0 0.0
        %880 = vmatpush1.xpose.msra.mxu0 0.0
        %881 = vmatprep.subr.mxu0 0.0
        %882 = vmatpush1.xpose.msra.mxu0 0.0
        %883 = vmatprep.subr.mxu0 0.0
        %884 = vmatpush1.xpose.msra.mxu0 0.0
        %885 = vmatprep.subr.mxu0 0.0
        %886 = vmatpush1.xpose.msra.mxu0 0.0
        %887 = vmatprep.subr.mxu0 0.0
        %888 = vmatpush1.xpose.msra.mxu0 0.0
        %889 = vmatprep.subr.mxu0 0.0
        %890 = vmatpush1.xpose.msra.mxu0 %v859
        %891 = vmatprep.subr.mxu0 0.0
        %892 = vmatpush1.xpose.msra.mxu0 %v856
        %893 = vmatprep.subr.mxu0 0.0
        %894 = vmatpush2.xpose.msra.mxu0 0.0
        %895 = vmatprep.subr.mxu0 0.0
        %896 = vmatpush2.xpose.msra.mxu0 0.0
        %897 = vmatprep.subr.mxu0 0.0
        %898 = vmatpush2.xpose.msra.mxu0 0.0
        %899 = vmatprep.subr.mxu0 0.0
        %900 = vmatpush2.xpose.msra.mxu0 0.0
        %901 = vmatprep.subr.mxu0 0.0
        %902 = vmatpush2.xpose.msra.mxu0 0.0
        %903 = vmatprep.subr.mxu0 0.0
        %904 = vmatpush2.xpose.msra.mxu0 0.0
        %905 = vmatprep.subr.mxu0 0.0
        %906 = vmatpush2.xpose.msra.mxu0 0.0
        %907 = vmatprep.subr.mxu0 0.0
        %908 = vmatpush2.xpose.msra.mxu0 0.0
        %909 = vmatprep.subr.mxu0 0.0
        %910 = vmatpush2.xpose.msra.mxu0 0.0
        %911 = vmatprep.subr.mxu0 0.0
        %912 = vmatpush2.xpose.msra.mxu0 0.0
        %913 = vmatprep.subr.mxu0 0.0
        %914 = vmatpush2.xpose.msra.mxu0 0.0
        %915 = vmatprep.subr.mxu0 0.0
        %916 = vmatpush2.xpose.msra.mxu0 0.0
        %917 = vmatprep.subr.mxu0 0.0
        %918 = vmatpush2.xpose.msra.mxu0 0.0
        %919 = vmatprep.subr.mxu0 0.0
        %920 = vmatpush2.xpose.msra.mxu0 0.0
        %921 = vmatprep.subr.mxu0 0.0
        %922 = vmatpush2.xpose.msra.mxu0 0.0
        %923 = vmatprep.subr.mxu0 0.0
        %924 = vmatpush2.xpose.msra.mxu0 0.0
        %925 = vmatprep.mubr.f32.mxu0 0.0
        %926 = vmatmul.mubr.f32.gmra.mxu0 %v853
        %v927 = vpop.f32.mrf.mxu0
        %v928 = vadd.f32 0.0, %v927
        %v929 = vpop.f32.mrf.mxu0
        %930 = vdwg.mxu0
        %v931 = vxor.u32 %v849, 2147483648
        %v932 = vxor.u32 %v852, 2147483648
        %v933 = vmul.f32 %v931, 1.442695
        %v934 = vpow.pop %v933
        %v935 = vmul.f32 %v932, 1.442695
        %v936 = vpow.pop %v935
        %v937 = vadd.f32 %v934, 1.0
        %v938 = vadd.f32 %v936, 1.0
        %v939 = vrcp.pop %v937
        %v940 = vmul.f32 1.0, %v939
        %v941 = vrcp.pop %v938
        %v942 = vmul.f32 1.0, %v941
        %v943 = vxor.u32 %v928, 2147483648
        %v944 = vmul.f32 %v943, 1.442695
        %v945 = vpow.pop %v944
        %v946 = vadd.f32 %v945, 1.0
        %v947 = vrcp.pop %v946
        %v948 = vmul.f32 1.0, %v947
        %v949 = vlaneseq
        %v950 = vshrl.u32 %v949, 7
        %v951 = vsub.s32 0, %v950
        %v952 = vrot.slane %v948, %v951
        %vm953 = vcmp.gt.f32.partialorder %v952, %v940
        %vm954 = vcmp.gt.f32.partialorder %v952, %v942
        %vm955 = vcmp.eq.f32.partialorder %v952, %v940
        %vm956 = vcmp.eq.f32.partialorder %v952, %v942
        %vm957 = vcmp.lt.s32.totalorder %v404, %v401
        %vm958 = vcmp.lt.s32.totalorder %v404, %v402
        %vm959 = vmand %vm955, %vm957
        %vm960 = vmand %vm956, %vm958
        %vm961 = vmor %vm953, %vm959
        %vm962 = vmor %vm954, %vm960
        %v963 = vsel %vm961, 1, 0
        %v964 = vsel %vm962, 1, 0
        %v965 = vcvt.s32.f32 %v963
        %v966 = vcvt.s32.f32 %v964
        %v967 = vsel %vm458, %v965, 0.0
        %968 = vadd.xlane.f32.xlu0 %v967
        %v969 = vpop.xlane.xlu0 %968
        %v970 = vsel %vm458, %v966, 0.0
        %971 = vadd.xlane.f32.xlu0 %v970
        %v972 = vpop.xlane.xlu0 %971
        %vm973 = vcmp.lt.f32.partialorder %v969, 8.0
        %vm974 = vcmp.lt.f32.partialorder %v972, 8.0
        %v975 = vsel %vm973, 1, 0
        %v976 = vsel %vm974, 1, 0
        %v977 = vcvt.s32.f32 %v975
        %v978 = vcvt.s32.f32 %v976
        %v979 = vpack.c.bf16 %v966, %v965
        %980 = vmatprep.subr.bf16.mxu0 0
        %981 = vmatpush1.bf16.msra.mxu0 0
        %982 = vmatprep.subr.bf16.mxu0 0
        %983 = vmatpush1.bf16.msra.mxu0 0
        %984 = vmatprep.subr.bf16.mxu0 0
        %985 = vmatpush1.bf16.msra.mxu0 0
        %986 = vmatprep.subr.bf16.mxu0 0
        %987 = vmatpush1.bf16.msra.mxu0 0
        %988 = vmatprep.subr.bf16.mxu0 0
        %989 = vmatpush1.bf16.msra.mxu0 0
        %990 = vmatprep.subr.bf16.mxu0 0
        %991 = vmatpush1.bf16.msra.mxu0 0
        %992 = vmatprep.subr.bf16.mxu0 0
        %993 = vmatpush1.bf16.msra.mxu0 0
        %994 = vmatprep.subr.bf16.mxu0 0
        %995 = vmatpush1.bf16.msra.mxu0 %v979
        %996 = vmatprep.subr.bf16.mxu0 0
        %997 = vmatpush2.bf16.msra.mxu0 0
        %998 = vmatprep.subr.bf16.mxu0 0
        %999 = vmatpush2.bf16.msra.mxu0 0
        %1000 = vmatprep.subr.bf16.mxu0 0
        %1001 = vmatpush2.bf16.msra.mxu0 0
        %1002 = vmatprep.subr.bf16.mxu0 0
        %1003 = vmatpush2.bf16.msra.mxu0 0
        %1004 = vmatprep.subr.bf16.mxu0 0
        %1005 = vmatpush2.bf16.msra.mxu0 0
        %1006 = vmatprep.subr.bf16.mxu0 0
        %1007 = vmatpush2.bf16.msra.mxu0 0
        %1008 = vmatprep.subr.bf16.mxu0 0
        %1009 = vmatpush2.bf16.msra.mxu0 0
        %1010 = vmatprep.subr.bf16.mxu0 0
        %1011 = vmatpush2.bf16.msra.mxu0 0
        %1012 = vmatprep.mubr.bf16.mxu0 0
        %1013 = vmatmul.mubr.bf16.gmra.mxu0 %v505
        %v1014 = vpop.f32.mrf.mxu0
        %v1015 = vadd.f32 0.0, %v1014
        %v1016 = vpop.f32.mrf.mxu0
        %v1017 = vpop.f32.mrf.mxu0
        %v1018 = vpop.f32.mrf.mxu0
        %1019 = vdwg.mxu0
        %v1020 = vsub.f32 15.0, %v1015
        %vm1021 = vcmp.lt.f32.partialorder %v1020, 8.0
        %v1022 = vsel %vm1021, 1, 0
        %v1023 = vcvt.s32.f32 %v1022
        %v1024 = vmul.f32 %v940, %v977
        %v1025 = vmul.f32 %v942, %v978
        %v1026 = vmul.f32 %v836, %v1024
        %v1027 = vmul.f32 %v837, %v1025
        %v1028 = vmul.f32 %v556, %v977
        %v1029 = vmul.f32 %v557, %v978
        %v1030 = vlaneseq
        %v1031 = vshrl.u32 %v1030, 7
        %v1032 = vsub.s32 0, %v1031
        %v1033 = vrot.slane %v1023, %v1032
        %v1034 = vmul.f32 %v1028, %v1033
        %v1035 = vmul.f32 %v1029, %v1033
        %v1036 = vsub.f32 1.0, %v977
        %v1037 = vsub.f32 1.0, %v978
        %v1038 = vmul.f32 %v1036, -1e+30
        %v1039 = vmul.f32 %v1037, -1e+30
        %v1040 = vadd.f32 %v1026, %v1038
        %v1041 = vadd.f32 %v1027, %v1039
        %v1042 = vsel %vm846, %v1040, -inf
        %v1043 = vsel %vm846, %v1041, -inf
        %v1044 = vmax.f32 %v1042, %v1043
        %v1045 = vrot.slane %v1044, 4
        %v1046 = vmax.f32 %v1044, %v1045
        %v1047 = vrot.slane %v1046, 2
        %v1048 = vmax.f32 %v1046, %v1047
        %v1049 = vrot.slane %v1048, 1
        %v1050 = vmax.f32 %v1048, %v1049
        %v1051 = vsel %vm846, %v1026, 0.0
        %v1052 = vsel %vm846, %v1027, 0.0
        %v1053 = vadd.f32 %v1051, %v1052
        %v1054 = vrot.slane %v1053, 4
        %v1055 = vadd.f32 %v1053, %v1054
        %v1056 = vrot.slane %v1055, 2
        %v1057 = vadd.f32 %v1055, %v1056
        %v1058 = vrot.slane %v1057, 1
        %v1059 = vadd.f32 %v1057, %v1058
        %v1060 = vmul.f32 %v1059, 0.125
        %v1061 = vpack.c.bf16 %v1035, %v1034
        %v1062 = vmul.f32 %v1034, 2.0
        %v1063 = vmul.f32 %v1035, 2.0
        %v1065 = vsel %vm458, %v1061, 0
        %1067 = vmatprep.subr.bf16.mxu0 0
        %1068 = vmatpush1.bf16.msra.mxu0 0
        %1069 = vmatprep.subr.bf16.mxu0 0
        %1070 = vmatpush1.bf16.msra.mxu0 0
        %1071 = vmatprep.subr.bf16.mxu0 0
        %1072 = vmatpush1.bf16.msra.mxu0 0
        %1073 = vmatprep.subr.bf16.mxu0 0
        %1074 = vmatpush1.bf16.msra.mxu0 0
        %1075 = vmatprep.subr.bf16.mxu0 0
        %1076 = vmatpush1.bf16.msra.mxu0 0
        %1077 = vmatprep.subr.bf16.mxu0 0
        %1078 = vmatpush1.bf16.msra.mxu0 0
        %1079 = vmatprep.subr.bf16.mxu0 0
        %1080 = vmatpush1.bf16.msra.mxu0 0
        %1081 = vmatprep.subr.bf16.mxu0 0
        %1082 = vmatpush1.bf16.msra.mxu0 %v1061
        %1083 = vmatprep.subr.bf16.mxu0 0
        %1084 = vmatpush2.bf16.msra.mxu0 0
        %1085 = vmatprep.subr.bf16.mxu0 0
        %1086 = vmatpush2.bf16.msra.mxu0 0
        %1087 = vmatprep.subr.bf16.mxu0 0
        %1088 = vmatpush2.bf16.msra.mxu0 0
        %1089 = vmatprep.subr.bf16.mxu0 0
        %1090 = vmatpush2.bf16.msra.mxu0 0
        %1091 = vmatprep.subr.bf16.mxu0 0
        %1092 = vmatpush2.bf16.msra.mxu0 0
        %1093 = vmatprep.subr.bf16.mxu0 0
        %1094 = vmatpush2.bf16.msra.mxu0 0
        %1095 = vmatprep.subr.bf16.mxu0 0
        %1096 = vmatpush2.bf16.msra.mxu0 0
        %1097 = vmatprep.subr.bf16.mxu0 0
        %1098 = vmatpush2.bf16.msra.mxu0 0
        %1099 = vmatprep.mubr.bf16.mxu0 0
        %1100 = vmatmul.mubr.bf16.gmra.mxu0 %v1065
        %v1101 = vpop.f32.mrf.mxu0
        %v1102 = vadd.f32 %v1062, %v1101
        %v1103 = vpop.f32.mrf.mxu0
        %v1104 = vpop.f32.mrf.mxu0
        %v1105 = vadd.f32 %v1063, %v1104
        %v1106 = vpop.f32.mrf.mxu0
        %1107 = vdwg.mxu0
        %v1108 = vmul.f32 %v1102, %v409
        %v1109 = vmul.f32 %v1105, %v410
        %v1110 = vpack.c.bf16 %v1109, %v1108
        %v1111 = vpack.c.bf16 %v1027, %v1026
        %v1113 = vsel %vm458, %v1110, 0
        %1115 = vmatprep.subr.bf16.mxu0 0
        %1116 = vmatpush1.bf16.msra.mxu0 0
        %1117 = vmatprep.subr.bf16.mxu0 0
        %1118 = vmatpush1.bf16.msra.mxu0 0
        %1119 = vmatprep.subr.bf16.mxu0 0
        %1120 = vmatpush1.bf16.msra.mxu0 0
        %1121 = vmatprep.subr.bf16.mxu0 0
        %1122 = vmatpush1.bf16.msra.mxu0 0
        %1123 = vmatprep.subr.bf16.mxu0 0
        %1124 = vmatpush1.bf16.msra.mxu0 0
        %1125 = vmatprep.subr.bf16.mxu0 0
        %1126 = vmatpush1.bf16.msra.mxu0 0
        %1127 = vmatprep.subr.bf16.mxu0 0
        %1128 = vmatpush1.bf16.msra.mxu0 0
        %1129 = vmatprep.subr.bf16.mxu0 0
        %1130 = vmatpush1.bf16.msra.mxu0 1065369472
        %1131 = vmatprep.subr.bf16.mxu0 0
        %1132 = vmatpush2.bf16.msra.mxu0 0
        %1133 = vmatprep.subr.bf16.mxu0 0
        %1134 = vmatpush2.bf16.msra.mxu0 0
        %1135 = vmatprep.subr.bf16.mxu0 0
        %1136 = vmatpush2.bf16.msra.mxu0 0
        %1137 = vmatprep.subr.bf16.mxu0 0
        %1138 = vmatpush2.bf16.msra.mxu0 0
        %1139 = vmatprep.subr.bf16.mxu0 0
        %1140 = vmatpush2.bf16.msra.mxu0 0
        %1141 = vmatprep.subr.bf16.mxu0 0
        %1142 = vmatpush2.bf16.msra.mxu0 0
        %1143 = vmatprep.subr.bf16.mxu0 0
        %1144 = vmatpush2.bf16.msra.mxu0 0
        %1145 = vmatprep.subr.bf16.mxu0 0
        %1146 = vmatpush2.bf16.msra.mxu0 0
        %1147 = vmatprep.mubr.bf16.mxu0 0
        %1148 = vmatmul.mubr.bf16.gmra.mxu0 %v1113
        %v1149 = vpop.f32.mrf.mxu0
        %v1150 = vadd.f32 0.0, %v1149
        %v1151 = vpop.f32.mrf.mxu0
        %v1152 = vpop.f32.mrf.mxu0
        %v1153 = vadd.f32 0.0, %v1152
        %v1154 = vpop.f32.mrf.mxu0
        %1155 = vdwg.mxu0
        %1156 = vmatprep.subr.bf16.mxu0 0
        %1157 = vmatpush1.bf16.msra.mxu0 0
        %1158 = vmatprep.subr.bf16.mxu0 0
        %1159 = vmatpush1.bf16.msra.mxu0 0
        %1160 = vmatprep.subr.bf16.mxu0 0
        %1161 = vmatpush1.bf16.msra.mxu0 0
        %1162 = vmatprep.subr.bf16.mxu0 0
        %1163 = vmatpush1.bf16.msra.mxu0 0
        %1164 = vmatprep.subr.bf16.mxu0 0
        %1165 = vmatpush1.bf16.msra.mxu0 0
        %1166 = vmatprep.subr.bf16.mxu0 0
        %1167 = vmatpush1.bf16.msra.mxu0 0
        %1168 = vmatprep.subr.bf16.mxu0 0
        %1169 = vmatpush1.bf16.msra.mxu0 0
        %1170 = vmatprep.subr.bf16.mxu0 0
        %1171 = vmatpush1.bf16.msra.mxu0 %v1110
        %1172 = vmatprep.subr.bf16.mxu0 0
        %1173 = vmatpush2.bf16.msra.mxu0 0
        %1174 = vmatprep.subr.bf16.mxu0 0
        %1175 = vmatpush2.bf16.msra.mxu0 0
        %1176 = vmatprep.subr.bf16.mxu0 0
        %1177 = vmatpush2.bf16.msra.mxu0 0
        %1178 = vmatprep.subr.bf16.mxu0 0
        %1179 = vmatpush2.bf16.msra.mxu0 0
        %1180 = vmatprep.subr.bf16.mxu0 0
        %1181 = vmatpush2.bf16.msra.mxu0 0
        %1182 = vmatprep.subr.bf16.mxu0 0
        %1183 = vmatpush2.bf16.msra.mxu0 0
        %1184 = vmatprep.subr.bf16.mxu0 0
        %1185 = vmatpush2.bf16.msra.mxu0 0
        %1186 = vmatprep.subr.bf16.mxu0 0
        %1187 = vmatpush2.bf16.msra.mxu0 0
        %1188 = vmatprep.mubr.bf16.mxu0 0
        %1189 = vmatmul.mubr.bf16.gmra.mxu0 %v505
        %v1190 = vpop.f32.mrf.mxu0
        %v1191 = vadd.f32 0.0, %v1190
        %v1192 = vpop.f32.mrf.mxu0
        %v1193 = vpop.f32.mrf.mxu0
        %v1194 = vpop.f32.mrf.mxu0
        %1195 = vdwg.mxu0
        %vm1196 = vcmp.gt.f32.partialorder %v1150, 0.0
        %vm1197 = vcmp.gt.f32.partialorder %v1153, 0.0
        %v1198 = vrsqrt.pop %v1150
        %v1199 = vrsqrt.pop %v1153
        %v1200 = vsel %vm1196, %v1198, 0.0
        %v1201 = vsel %vm1197, %v1199, 0.0
        %vm1202 = vcmp.gt.f32.partialorder %v1191, 0.0
        %v1203 = vrsqrt.pop %v1191
        %v1204 = vsel %vm1202, %v1203, 0.0
        %v1205 = vunpack.c.l.bf16 %v1110
        %v1206 = vunpack.c.h.bf16 %v1110
        %1208 = vset.pattern.permute.xlu0 0
        %1209 = vperm.xlu0 %1208, %v1200
        %v1210 = vpop.permute.xlu0 %1209
        %1213 = vset.pattern.permute.xlu0 0
        %1214 = vperm.xlu0 %1213, %v1201
        %v1215 = vpop.permute.xlu0 %1214
        %v1217 = vmul.f32 %v1210, %v1205
        %v1218 = vmul.f32 %v1215, %v1206
        %v1219 = vlaneseq
        %v1220 = vshrl.u32 %v1219, 7
        %v1221 = vsub.s32 0, %v1220
        %v1222 = vrot.slane %v1204, %v1221
        %v1223 = vmul.f32 %v1217, %v1222
        %v1224 = vmul.f32 %v1218, %v1222
        %v1225 = vsub.f32 0.0, %v1223
        %v1226 = vsub.f32 0.0, %v1224
        %v1227 = vpack.c.bf16 %v1226, %v1225
        %v1229 = vsel %vm458, %v1227, 0
        %1231 = vmatprep.subr.bf16.mxu0 0
        %1232 = vmatpush1.bf16.msra.mxu0 0
        %1233 = vmatprep.subr.bf16.mxu0 0
        %1234 = vmatpush1.bf16.msra.mxu0 0
        %1235 = vmatprep.subr.bf16.mxu0 0
        %1236 = vmatpush1.bf16.msra.mxu0 0
        %1237 = vmatprep.subr.bf16.mxu0 0
        %1238 = vmatpush1.bf16.msra.mxu0 0
        %1239 = vmatprep.subr.bf16.mxu0 0
        %1240 = vmatpush1.bf16.msra.mxu0 0
        %1241 = vmatprep.subr.bf16.mxu0 0
        %1242 = vmatpush1.bf16.msra.mxu0 0
        %1243 = vmatprep.subr.bf16.mxu0 0
        %1244 = vmatpush1.bf16.msra.mxu0 0
        %1245 = vmatprep.subr.bf16.mxu0 0
        %1246 = vmatpush1.bf16.msra.mxu0 %v1111
        %1247 = vmatprep.subr.bf16.mxu0 0
        %1248 = vmatpush2.bf16.msra.mxu0 0
        %1249 = vmatprep.subr.bf16.mxu0 0
        %1250 = vmatpush2.bf16.msra.mxu0 0
        %1251 = vmatprep.subr.bf16.mxu0 0
        %1252 = vmatpush2.bf16.msra.mxu0 0
        %1253 = vmatprep.subr.bf16.mxu0 0
        %1254 = vmatpush2.bf16.msra.mxu0 0
        %1255 = vmatprep.subr.bf16.mxu0 0
        %1256 = vmatpush2.bf16.msra.mxu0 0
        %1257 = vmatprep.subr.bf16.mxu0 0
        %1258 = vmatpush2.bf16.msra.mxu0 0
        %1259 = vmatprep.subr.bf16.mxu0 0
        %1260 = vmatpush2.bf16.msra.mxu0 0
        %1261 = vmatprep.subr.bf16.mxu0 0
        %1262 = vmatpush2.bf16.msra.mxu0 0
        %1263 = vmatprep.mubr.bf16.mxu0 0
        %1264 = vmatmul.mubr.bf16.gmra.mxu0 %v1229
        %v1265 = vpop.f32.mrf.mxu0
        %v1266 = vadd.f32 0.0, %v1265
        %v1267 = vpop.f32.mrf.mxu0
        %v1268 = vpop.f32.mrf.mxu0
        %v1269 = vadd.f32 0.0, %v1268
        %v1270 = vpop.f32.mrf.mxu0
        %1271 = vdwg.mxu0
        %v1272 = vpack.c.bf16 %v1269, %v1266
        %1273 = vmatprep.subr.bf16.mxu0 0
        %1274 = vmatpush1.bf16.msra.mxu0 0
        %1275 = vmatprep.subr.bf16.mxu0 0
        %1276 = vmatpush1.bf16.msra.mxu0 0
        %1277 = vmatprep.subr.bf16.mxu0 0
        %1278 = vmatpush1.bf16.msra.mxu0 0
        %1279 = vmatprep.subr.bf16.mxu0 0
        %1280 = vmatpush1.bf16.msra.mxu0 0
        %1281 = vmatprep.subr.bf16.mxu0 0
        %1282 = vmatpush1.bf16.msra.mxu0 0
        %1283 = vmatprep.subr.bf16.mxu0 0
        %1284 = vmatpush1.bf16.msra.mxu0 0
        %1285 = vmatprep.subr.bf16.mxu0 0
        %1286 = vmatpush1.bf16.msra.mxu0 0
        %1287 = vmatprep.subr.bf16.mxu0 0
        %1288 = vmatpush1.bf16.msra.mxu0 %v1272
        %1289 = vmatprep.subr.bf16.mxu0 0
        %1290 = vmatpush2.bf16.msra.mxu0 0
        %1291 = vmatprep.subr.bf16.mxu0 0
        %1292 = vmatpush2.bf16.msra.mxu0 0
        %1293 = vmatprep.subr.bf16.mxu0 0
        %1294 = vmatpush2.bf16.msra.mxu0 0
        %1295 = vmatprep.subr.bf16.mxu0 0
        %1296 = vmatpush2.bf16.msra.mxu0 0
        %1297 = vmatprep.subr.bf16.mxu0 0
        %1298 = vmatpush2.bf16.msra.mxu0 0
        %1299 = vmatprep.subr.bf16.mxu0 0
        %1300 = vmatpush2.bf16.msra.mxu0 0
        %1301 = vmatprep.subr.bf16.mxu0 0
        %1302 = vmatpush2.bf16.msra.mxu0 0
        %1303 = vmatprep.subr.bf16.mxu0 0
        %1304 = vmatpush2.bf16.msra.mxu0 0
        %1305 = vmatprep.mubr.bf16.mxu0 0
        %1306 = vmatmul.mubr.bf16.gmra.mxu0 %v1229
        %v1307 = vpop.f32.mrf.mxu0
        %v1308 = vadd.f32 0.0, %v1307
        %v1309 = vpop.f32.mrf.mxu0
        %v1310 = vpop.f32.mrf.mxu0
        %v1311 = vadd.f32 0.0, %v1310
        %v1312 = vpop.f32.mrf.mxu0
        %1313 = vdwg.mxu0
        %v1314 = vmul.f32 %v1308, 2.0
        %v1315 = vmul.f32 %v1311, 2.0
        %v1316 = vunpack.c.l.bf16 %v1111
        %v1317 = vunpack.c.h.bf16 %v1111
        %v1318 = vsub.f32 %v1314, %v1316
        %v1319 = vsub.f32 %v1315, %v1317
        %v1328 = vunpack.c.l.b16 %v428
        %v1329 = vunpack.c.l.b16 %v429
        %v1330 = vunpack.c.l.b16 %v430
        %v1331 = vunpack.c.l.b16 %v431
        %v1332 = vunpack.c.l.b16 %v432
        %v1333 = vunpack.c.l.b16 %v433
        %v1334 = vunpack.c.l.b16 %v434
        %v1335 = vunpack.c.l.b16 %v435
        %v1336 = vpack.c.b16 %v1329, %v1328
        %v1337 = vpack.c.b16 %v1331, %v1330
        %v1338 = vpack.c.b16 %v1333, %v1332
        %v1339 = vpack.c.b16 %v1335, %v1334
        %v1345 = vsel %vm846, %v1272, 0
        %1347 = vmatprep.subr.bf16.mxu0 0
        %1348 = vmatpush1.bf16.msra.mxu0 0
        %1349 = vmatprep.subr.bf16.mxu0 0
        %1350 = vmatpush1.bf16.msra.mxu0 0
        %1351 = vmatprep.subr.bf16.mxu0 0
        %1352 = vmatpush1.bf16.msra.mxu0 0
        %1353 = vmatprep.subr.bf16.mxu0 0
        %1354 = vmatpush1.bf16.msra.mxu0 0
        %1355 = vmatprep.subr.bf16.mxu0 0
        %1356 = vmatpush1.bf16.msra.mxu0 %v1339
        %1357 = vmatprep.subr.bf16.mxu0 0
        %1358 = vmatpush1.bf16.msra.mxu0 %v1338
        %1359 = vmatprep.subr.bf16.mxu0 0
        %1360 = vmatpush1.bf16.msra.mxu0 %v1337
        %1361 = vmatprep.subr.bf16.mxu0 0
        %1362 = vmatpush1.bf16.msra.mxu0 %v1336
        %1363 = vmatprep.subr.bf16.mxu0 0
        %1364 = vmatpush2.bf16.msra.mxu0 0
        %1365 = vmatprep.subr.bf16.mxu0 0
        %1366 = vmatpush2.bf16.msra.mxu0 0
        %1367 = vmatprep.subr.bf16.mxu0 0
        %1368 = vmatpush2.bf16.msra.mxu0 0
        %1369 = vmatprep.subr.bf16.mxu0 0
        %1370 = vmatpush2.bf16.msra.mxu0 0
        %1371 = vmatprep.subr.bf16.mxu0 0
        %1372 = vmatpush2.bf16.msra.mxu0 0
        %1373 = vmatprep.subr.bf16.mxu0 0
        %1374 = vmatpush2.bf16.msra.mxu0 0
        %1375 = vmatprep.subr.bf16.mxu0 0
        %1376 = vmatpush2.bf16.msra.mxu0 0
        %1377 = vmatprep.subr.bf16.mxu0 0
        %1378 = vmatpush2.bf16.msra.mxu0 0
        %1379 = vmatprep.mubr.bf16.mxu0 0
        %1380 = vmatmul.mubr.bf16.gmra.mxu0 %v1345
        %v1381 = vpop.f32.mrf.mxu0
        %v1382 = vadd.f32 0.0, %v1381
        %v1383 = vpop.f32.mrf.mxu0
        %v1384 = vpop.f32.mrf.mxu0
        %v1385 = vadd.f32 0.0, %v1384
        %v1386 = vpop.f32.mrf.mxu0
        %1387 = vdwg.mxu0
        %v1396 = vunpack.c.l.b16 %v419
        %v1397 = vunpack.c.l.b16 %v420
        %v1398 = vunpack.c.l.b16 %v421
        %v1399 = vunpack.c.l.b16 %v422
        %v1400 = vunpack.c.l.b16 %v423
        %v1401 = vunpack.c.l.b16 %v424
        %v1402 = vunpack.c.l.b16 %v425
        %v1403 = vunpack.c.l.b16 %v426
        %v1404 = vpack.c.b16 %v1397, %v1396
        %v1405 = vpack.c.b16 %v1399, %v1398
        %v1406 = vpack.c.b16 %v1401, %v1400
        %v1407 = vpack.c.b16 %v1403, %v1402
        %v1413 = vsel %vm846, %v1111, 0
        %1415 = vmatprep.subr.bf16.mxu0 0
        %1416 = vmatpush1.bf16.msra.mxu0 0
        %1417 = vmatprep.subr.bf16.mxu0 0
        %1418 = vmatpush1.bf16.msra.mxu0 0
        %1419 = vmatprep.subr.bf16.mxu0 0
        %1420 = vmatpush1.bf16.msra.mxu0 0
        %1421 = vmatprep.subr.bf16.mxu0 0
        %1422 = vmatpush1.bf16.msra.mxu0 0
        %1423 = vmatprep.subr.bf16.mxu0 0
        %1424 = vmatpush1.bf16.msra.mxu0 %v1407
        %1425 = vmatprep.subr.bf16.mxu0 0
        %1426 = vmatpush1.bf16.msra.mxu0 %v1406
        %1427 = vmatprep.subr.bf16.mxu0 0
        %1428 = vmatpush1.bf16.msra.mxu0 %v1405
        %1429 = vmatprep.subr.bf16.mxu0 0
        %1430 = vmatpush1.bf16.msra.mxu0 %v1404
        %1431 = vmatprep.subr.bf16.mxu0 0
        %1432 = vmatpush2.bf16.msra.mxu0 0
        %1433 = vmatprep.subr.bf16.mxu0 0
        %1434 = vmatpush2.bf16.msra.mxu0 0
        %1435 = vmatprep.subr.bf16.mxu0 0
        %1436 = vmatpush2.bf16.msra.mxu0 0
        %1437 = vmatprep.subr.bf16.mxu0 0
        %1438 = vmatpush2.bf16.msra.mxu0 0
        %1439 = vmatprep.subr.bf16.mxu0 0
        %1440 = vmatpush2.bf16.msra.mxu0 0
        %1441 = vmatprep.subr.bf16.mxu0 0
        %1442 = vmatpush2.bf16.msra.mxu0 0
        %1443 = vmatprep.subr.bf16.mxu0 0
        %1444 = vmatpush2.bf16.msra.mxu0 0
        %1445 = vmatprep.subr.bf16.mxu0 0
        %1446 = vmatpush2.bf16.msra.mxu0 0
        %1447 = vmatprep.mubr.bf16.mxu0 0
        %1448 = vmatmul.mubr.bf16.gmra.mxu0 %v1413
        %v1449 = vpop.f32.mrf.mxu0
        %v1450 = vadd.f32 %v1382, %v1449
        %v1451 = vpop.f32.mrf.mxu0
        %v1452 = vpop.f32.mrf.mxu0
        %v1453 = vadd.f32 %v1385, %v1452
        %v1454 = vpop.f32.mrf.mxu0
        %1455 = vdwg.mxu0
        %v1456 = vpack.c.bf16 %v1319, %v1318
        %v1465 = vunpack.c.l.b16 %v437
        %v1466 = vunpack.c.l.b16 %v438
        %v1467 = vunpack.c.l.b16 %v439
        %v1468 = vunpack.c.l.b16 %v440
        %v1469 = vunpack.c.l.b16 %v441
        %v1470 = vunpack.c.l.b16 %v442
        %v1471 = vunpack.c.l.b16 %v443
        %v1472 = vunpack.c.l.b16 %v444
        %v1473 = vpack.c.b16 %v1466, %v1465
        %v1474 = vpack.c.b16 %v1468, %v1467
        %v1475 = vpack.c.b16 %v1470, %v1469
        %v1476 = vpack.c.b16 %v1472, %v1471
        %v1482 = vsel %vm846, %v1456, 0
        %1484 = vmatprep.subr.bf16.mxu0 0
        %1485 = vmatpush1.bf16.msra.mxu0 0
        %1486 = vmatprep.subr.bf16.mxu0 0
        %1487 = vmatpush1.bf16.msra.mxu0 0
        %1488 = vmatprep.subr.bf16.mxu0 0
        %1489 = vmatpush1.bf16.msra.mxu0 0
        %1490 = vmatprep.subr.bf16.mxu0 0
        %1491 = vmatpush1.bf16.msra.mxu0 0
        %1492 = vmatprep.subr.bf16.mxu0 0
        %1493 = vmatpush1.bf16.msra.mxu0 %v1476
        %1494 = vmatprep.subr.bf16.mxu0 0
        %1495 = vmatpush1.bf16.msra.mxu0 %v1475
        %1496 = vmatprep.subr.bf16.mxu0 0
        %1497 = vmatpush1.bf16.msra.mxu0 %v1474
        %1498 = vmatprep.subr.bf16.mxu0 0
        %1499 = vmatpush1.bf16.msra.mxu0 %v1473
        %1500 = vmatprep.subr.bf16.mxu0 0
        %1501 = vmatpush2.bf16.msra.mxu0 0
        %1502 = vmatprep.subr.bf16.mxu0 0
        %1503 = vmatpush2.bf16.msra.mxu0 0
        %1504 = vmatprep.subr.bf16.mxu0 0
        %1505 = vmatpush2.bf16.msra.mxu0 0
        %1506 = vmatprep.subr.bf16.mxu0 0
        %1507 = vmatpush2.bf16.msra.mxu0 0
        %1508 = vmatprep.subr.bf16.mxu0 0
        %1509 = vmatpush2.bf16.msra.mxu0 0
        %1510 = vmatprep.subr.bf16.mxu0 0
        %1511 = vmatpush2.bf16.msra.mxu0 0
        %1512 = vmatprep.subr.bf16.mxu0 0
        %1513 = vmatpush2.bf16.msra.mxu0 0
        %1514 = vmatprep.subr.bf16.mxu0 0
        %1515 = vmatpush2.bf16.msra.mxu0 0
        %1516 = vmatprep.mubr.bf16.mxu0 0
        %1517 = vmatmul.mubr.bf16.gmra.mxu0 %v1482
        %v1518 = vpop.f32.mrf.mxu0
        %v1519 = vadd.f32 0.0, %v1518
        %v1520 = vpop.f32.mrf.mxu0
        %v1521 = vpop.f32.mrf.mxu0
        %v1522 = vadd.f32 0.0, %v1521
        %v1523 = vpop.f32.mrf.mxu0
        %1524 = vdwg.mxu0
        %v1525 = vadd.f32 %v1450, %v1519
        %v1526 = vadd.f32 %v1453, %v1522
        %v1528 = vlaneseq
        %v1529 = vshrl.u32 %v1528, 7
        %v1530 = vsub.s32 0, %v1529
        %v1531 = vrot.slane %v447, %v1530
        %v1533 = vadd.f32 %v1525, %v1531
        %v1534 = vadd.f32 %v1526, %v1531
        %v1536 = vlaneseq
        %v1537 = vshrl.u32 %v1536, 7
        %v1538 = vsub.s32 0, %v1537
        %v1539 = vrot.slane %v448, %v1538
        %v1541 = vmul.f32 %v1533, %v1539
        %v1542 = vmul.f32 %v1534, %v1539
        %v1543 = vsel %vm846, %v1541, 0.0
        %1544 = vadd.xlane.f32.xlu0 %v1543
        %v1545 = vpop.xlane.xlu0 %1544
        %v1546 = vsel %vm846, %v1542, 0.0
        %1547 = vadd.xlane.f32.xlu0 %v1546
        %v1548 = vpop.xlane.xlu0 %1547
        %v1549 = vsel %vm846, %v448, 0
        %v1552 = vsel %vm846, %v1533, 0
        %v1555 = vsel %vm846, %v1534, 0
        %1557 = vmatprep.subr.mxu0 0.0
        %1558 = vmatpush1.xpose.msra.mxu0 0.0
        %1559 = vmatprep.subr.mxu0 0.0
        %1560 = vmatpush1.xpose.msra.mxu0 0.0
        %1561 = vmatprep.subr.mxu0 0.0
        %1562 = vmatpush1.xpose.msra.mxu0 0.0
        %1563 = vmatprep.subr.mxu0 0.0
        %1564 = vmatpush1.xpose.msra.mxu0 0.0
        %1565 = vmatprep.subr.mxu0 0.0
        %1566 = vmatpush1.xpose.msra.mxu0 0.0
        %1567 = vmatprep.subr.mxu0 0.0
        %1568 = vmatpush1.xpose.msra.mxu0 0.0
        %1569 = vmatprep.subr.mxu0 0.0
        %1570 = vmatpush1.xpose.msra.mxu0 0.0
        %1571 = vmatprep.subr.mxu0 0.0
        %1572 = vmatpush1.xpose.msra.mxu0 0.0
        %1573 = vmatprep.subr.mxu0 0.0
        %1574 = vmatpush1.xpose.msra.mxu0 0.0
        %1575 = vmatprep.subr.mxu0 0.0
        %1576 = vmatpush1.xpose.msra.mxu0 0.0
        %1577 = vmatprep.subr.mxu0 0.0
        %1578 = vmatpush1.xpose.msra.mxu0 0.0
        %1579 = vmatprep.subr.mxu0 0.0
        %1580 = vmatpush1.xpose.msra.mxu0 0.0
        %1581 = vmatprep.subr.mxu0 0.0
        %1582 = vmatpush1.xpose.msra.mxu0 0.0
        %1583 = vmatprep.subr.mxu0 0.0
        %1584 = vmatpush1.xpose.msra.mxu0 0.0
        %1585 = vmatprep.subr.mxu0 0.0
        %1586 = vmatpush1.xpose.msra.mxu0 %v1555
        %1587 = vmatprep.subr.mxu0 0.0
        %1588 = vmatpush1.xpose.msra.mxu0 %v1552
        %1589 = vmatprep.subr.mxu0 0.0
        %1590 = vmatpush2.xpose.msra.mxu0 0.0
        %1591 = vmatprep.subr.mxu0 0.0
        %1592 = vmatpush2.xpose.msra.mxu0 0.0
        %1593 = vmatprep.subr.mxu0 0.0
        %1594 = vmatpush2.xpose.msra.mxu0 0.0
        %1595 = vmatprep.subr.mxu0 0.0
        %1596 = vmatpush2.xpose.msra.mxu0 0.0
        %1597 = vmatprep.subr.mxu0 0.0
        %1598 = vmatpush2.xpose.msra.mxu0 0.0
        %1599 = vmatprep.subr.mxu0 0.0
        %1600 = vmatpush2.xpose.msra.mxu0 0.0
        %1601 = vmatprep.subr.mxu0 0.0
        %1602 = vmatpush2.xpose.msra.mxu0 0.0
        %1603 = vmatprep.subr.mxu0 0.0
        %1604 = vmatpush2.xpose.msra.mxu0 0.0
        %1605 = vmatprep.subr.mxu0 0.0
        %1606 = vmatpush2.xpose.msra.mxu0 0.0
        %1607 = vmatprep.subr.mxu0 0.0
        %1608 = vmatpush2.xpose.msra.mxu0 0.0
        %1609 = vmatprep.subr.mxu0 0.0
        %1610 = vmatpush2.xpose.msra.mxu0 0.0
        %1611 = vmatprep.subr.mxu0 0.0
        %1612 = vmatpush2.xpose.msra.mxu0 0.0
        %1613 = vmatprep.subr.mxu0 0.0
        %1614 = vmatpush2.xpose.msra.mxu0 0.0
        %1615 = vmatprep.subr.mxu0 0.0
        %1616 = vmatpush2.xpose.msra.mxu0 0.0
        %1617 = vmatprep.subr.mxu0 0.0
        %1618 = vmatpush2.xpose.msra.mxu0 0.0
        %1619 = vmatprep.subr.mxu0 0.0
        %1620 = vmatpush2.xpose.msra.mxu0 0.0
        %1621 = vmatprep.mubr.f32.mxu0 0.0
        %1622 = vmatmul.mubr.f32.gmra.mxu0 %v1549
        %v1623 = vpop.f32.mrf.mxu0
        %v1624 = vadd.f32 0.0, %v1623
        %v1625 = vpop.f32.mrf.mxu0
        %1626 = vdwg.mxu0
        %v1627 = vxor.u32 %v1545, 2147483648
        %v1628 = vxor.u32 %v1548, 2147483648
        %v1629 = vmul.f32 %v1627, 1.442695
        %v1630 = vpow.pop %v1629
        %v1631 = vmul.f32 %v1628, 1.442695
        %v1632 = vpow.pop %v1631
        %v1633 = vadd.f32 %v1630, 1.0
        %v1634 = vadd.f32 %v1632, 1.0
        %v1635 = vrcp.pop %v1633
        %v1636 = vmul.f32 1.0, %v1635
        %v1637 = vrcp.pop %v1634
        %v1638 = vmul.f32 1.0, %v1637
        %v1639 = vxor.u32 %v1624, 2147483648
        %v1640 = vmul.f32 %v1639, 1.442695
        %v1641 = vpow.pop %v1640
        %v1642 = vadd.f32 %v1641, 1.0
        %v1643 = vrcp.pop %v1642
        %v1644 = vmul.f32 1.0, %v1643
        %vm1645 = vcmp.gt.f32.partialorder %v977, 0.0
        %vm1646 = vcmp.gt.f32.partialorder %v978, 0.0
        %v1647 = vsel %vm1645, %v1636, -1e+30
        %v1648 = vsel %vm1646, %v1638, -1e+30
        %vm1649 = vcmp.gt.f32.partialorder %v1023, 0.0
        %v1650 = vsel %vm1649, %v1644, -1e+30
        %v1651 = vlaneseq
        %v1652 = vshrl.u32 %v1651, 7
        %v1653 = vsub.s32 0, %v1652
        %v1654 = vrot.slane %v1650, %v1653
        %vm1655 = vcmp.gt.f32.partialorder %v1654, %v1647
        %vm1656 = vcmp.gt.f32.partialorder %v1654, %v1648
        %vm1657 = vcmp.eq.f32.partialorder %v1654, %v1647
        %vm1658 = vcmp.eq.f32.partialorder %v1654, %v1648
        %vm1659 = vmand %vm1657, %vm957
        %vm1660 = vmand %vm1658, %vm958
        %vm1661 = vmor %vm1655, %vm1659
        %vm1662 = vmor %vm1656, %vm1660
        %v1663 = vsel %vm1661, 1, 0
        %v1664 = vsel %vm1662, 1, 0
        %v1665 = vcvt.s32.f32 %v1663
        %v1666 = vcvt.s32.f32 %v1664
        %v1667 = vsel %vm458, %v1665, 0.0
        %1668 = vadd.xlane.f32.xlu0 %v1667
        %v1669 = vpop.xlane.xlu0 %1668
        %v1670 = vsel %vm458, %v1666, 0.0
        %1671 = vadd.xlane.f32.xlu0 %v1670
        %v1672 = vpop.xlane.xlu0 %1671
        %vm1673 = vcmp.lt.f32.partialorder %v1669, 4.0
        %vm1674 = vcmp.lt.f32.partialorder %v1672, 4.0
        %v1675 = vsel %vm1673, 1, 0
        %v1676 = vsel %vm1674, 1, 0
        %v1677 = vcvt.s32.f32 %v1675
        %v1678 = vcvt.s32.f32 %v1676
        %v1679 = vmul.f32 %v1636, %v1677
        %v1680 = vmul.f32 %v1638, %v1678
        %v1681 = vmul.f32 %v1533, %v1679
        %v1682 = vmul.f32 %v1534, %v1680
        %v1683 = vsub.f32 1.0, %v1677
        %v1684 = vsub.f32 1.0, %v1678
        %v1685 = vmul.f32 %v1683, -1e+30
        %v1686 = vmul.f32 %v1684, -1e+30
        %v1687 = vadd.f32 %v1681, %v1685
        %v1688 = vadd.f32 %v1682, %v1686
        %v1689 = vsel %vm846, %v1687, -inf
        %v1690 = vsel %vm846, %v1688, -inf
        %v1691 = vmax.f32 %v1689, %v1690
        %v1692 = vrot.slane %v1691, 4
        %v1693 = vmax.f32 %v1691, %v1692
        %v1694 = vrot.slane %v1693, 2
        %v1695 = vmax.f32 %v1693, %v1694
        %v1696 = vrot.slane %v1695, 1
        %v1697 = vmax.f32 %v1695, %v1696
        %v1698 = vsel %vm846, %v1681, 0.0
        %v1699 = vsel %vm846, %v1682, 0.0
        %v1700 = vadd.f32 %v1698, %v1699
        %v1701 = vrot.slane %v1700, 4
        %v1702 = vadd.f32 %v1700, %v1701
        %v1703 = vrot.slane %v1702, 2
        %v1704 = vadd.f32 %v1702, %v1703
        %v1705 = vrot.slane %v1704, 1
        %v1706 = vadd.f32 %v1704, %v1705
        %v1707 = vmul.f32 %v1706, 0.25
        %vm1708 = vcmask 1040384
        %v1709 = vsel %vm1708, %v1050, %v1060
        %vm1710 = vcmask 1041408
        %v1711 = vsel %vm1710, %v1709, %v1697
        %vm1712 = vcmask 1042432
        %v1713 = vsel %vm1712, %v1711, %v1707
        %vm1714 = vcmask 519168
        %1715 = vst.msk [vmem:[%s394] sm:$0xf] %vm1714, %v1713
        %s1716 = scalar_lea.vmem %s340, 8 [#allocation2]
        %v1717 = vld [vmem:[%s1716] sm:$0xf]
        %v1718 = vld [vmem:[%s1716 + $0x4] sm:$0xf]
        %s1719 = scalar_lea.vmem %s349, 8 [#allocation5]
        %v1720 = vld [vmem:[%s1719] sm:$0xf]
        %v1721 = vld [vmem:[%s1719 + $0x4] sm:$0xf]
        %v1724 = vunpack.c.l.b16 %v1720
        %v1725 = vunpack.c.l.b16 %v1721
        %v1726 = vpack.c.b16 %v1725, %v1724
        %v1728 = vsel %vm458, %v1726, 0
        %1730 = vmatprep.subr.bf16.mxu0 0
        %1731 = vmatpush1.bf16.msra.mxu0 0
        %1732 = vmatprep.subr.bf16.mxu0 0
        %1733 = vmatpush1.bf16.msra.mxu0 0
        %1734 = vmatprep.subr.bf16.mxu0 0
        %1735 = vmatpush1.bf16.msra.mxu0 0
        %1736 = vmatprep.subr.bf16.mxu0 0
        %1737 = vmatpush1.bf16.msra.mxu0 0
        %1738 = vmatprep.subr.bf16.mxu0 0
        %1739 = vmatpush1.bf16.msra.mxu0 0
        %1740 = vmatprep.subr.bf16.mxu0 0
        %1741 = vmatpush1.bf16.msra.mxu0 0
        %1742 = vmatprep.subr.bf16.mxu0 0
        %1743 = vmatpush1.bf16.msra.mxu0 0
        %1744 = vmatprep.subr.bf16.mxu0 0
        %1745 = vmatpush1.bf16.msra.mxu0 1065369472
        %1746 = vmatprep.subr.bf16.mxu0 0
        %1747 = vmatpush2.bf16.msra.mxu0 0
        %1748 = vmatprep.subr.bf16.mxu0 0
        %1749 = vmatpush2.bf16.msra.mxu0 0
        %1750 = vmatprep.subr.bf16.mxu0 0
        %1751 = vmatpush2.bf16.msra.mxu0 0
        %1752 = vmatprep.subr.bf16.mxu0 0
        %1753 = vmatpush2.bf16.msra.mxu0 0
        %1754 = vmatprep.subr.bf16.mxu0 0
        %1755 = vmatpush2.bf16.msra.mxu0 0
        %1756 = vmatprep.subr.bf16.mxu0 0
        %1757 = vmatpush2.bf16.msra.mxu0 0
        %1758 = vmatprep.subr.bf16.mxu0 0
        %1759 = vmatpush2.bf16.msra.mxu0 0
        %1760 = vmatprep.subr.bf16.mxu0 0
        %1761 = vmatpush2.bf16.msra.mxu0 0
        %1762 = vmatprep.mubr.bf16.mxu0 0
        %1763 = vmatmul.mubr.bf16.gmra.mxu0 %v1728
        %v1764 = vpop.f32.mrf.mxu0
        %v1765 = vadd.f32 0.0, %v1764
        %v1766 = vpop.f32.mrf.mxu0
        %v1767 = vpop.f32.mrf.mxu0
        %v1768 = vadd.f32 0.0, %v1767
        %v1769 = vpop.f32.mrf.mxu0
        %1770 = vdwg.mxu0
        %1772 = vmatprep.subr.bf16.mxu0 0
        %1773 = vmatpush1.bf16.msra.mxu0 0
        %1774 = vmatprep.subr.bf16.mxu0 0
        %1775 = vmatpush1.bf16.msra.mxu0 0
        %1776 = vmatprep.subr.bf16.mxu0 0
        %1777 = vmatpush1.bf16.msra.mxu0 0
        %1778 = vmatprep.subr.bf16.mxu0 0
        %1779 = vmatpush1.bf16.msra.mxu0 0
        %1780 = vmatprep.subr.bf16.mxu0 0
        %1781 = vmatpush1.bf16.msra.mxu0 0
        %1782 = vmatprep.subr.bf16.mxu0 0
        %1783 = vmatpush1.bf16.msra.mxu0 0
        %1784 = vmatprep.subr.bf16.mxu0 0
        %1785 = vmatpush1.bf16.msra.mxu0 0
        %1786 = vmatprep.subr.bf16.mxu0 0
        %1787 = vmatpush1.bf16.msra.mxu0 %v1726
        %1788 = vmatprep.subr.bf16.mxu0 0
        %1789 = vmatpush2.bf16.msra.mxu0 0
        %1790 = vmatprep.subr.bf16.mxu0 0
        %1791 = vmatpush2.bf16.msra.mxu0 0
        %1792 = vmatprep.subr.bf16.mxu0 0
        %1793 = vmatpush2.bf16.msra.mxu0 0
        %1794 = vmatprep.subr.bf16.mxu0 0
        %1795 = vmatpush2.bf16.msra.mxu0 0
        %1796 = vmatprep.subr.bf16.mxu0 0
        %1797 = vmatpush2.bf16.msra.mxu0 0
        %1798 = vmatprep.subr.bf16.mxu0 0
        %1799 = vmatpush2.bf16.msra.mxu0 0
        %1800 = vmatprep.subr.bf16.mxu0 0
        %1801 = vmatpush2.bf16.msra.mxu0 0
        %1802 = vmatprep.subr.bf16.mxu0 0
        %1803 = vmatpush2.bf16.msra.mxu0 0
        %1804 = vmatprep.mubr.bf16.mxu0 0
        %1805 = vmatmul.mubr.bf16.gmra.mxu0 %v505
        %v1806 = vpop.f32.mrf.mxu0
        %v1807 = vadd.f32 0.0, %v1806
        %v1808 = vpop.f32.mrf.mxu0
        %v1809 = vpop.f32.mrf.mxu0
        %v1810 = vpop.f32.mrf.mxu0
        %1811 = vdwg.mxu0
        %vm1812 = vcmp.gt.f32.partialorder %v1765, 0.0
        %vm1813 = vcmp.gt.f32.partialorder %v1768, 0.0
        %v1814 = vrsqrt.pop %v1765
        %v1815 = vrsqrt.pop %v1768
        %v1816 = vsel %vm1812, %v1814, 0.0
        %v1817 = vsel %vm1813, %v1815, 0.0
        %vm1818 = vcmp.gt.f32.partialorder %v1807, 0.0
        %v1819 = vrsqrt.pop %v1807
        %v1820 = vsel %vm1818, %v1819, 0.0
        %v1821 = vunpack.c.l.bf16 %v1720
        %v1822 = vunpack.c.l.bf16 %v1721
        %1824 = vset.pattern.permute.xlu0 0
        %1825 = vperm.xlu0 %1824, %v1816
        %v1826 = vpop.permute.xlu0 %1825
        %1829 = vset.pattern.permute.xlu0 0
        %1830 = vperm.xlu0 %1829, %v1817
        %v1831 = vpop.permute.xlu0 %1830
        %v1833 = vmul.f32 %v1826, %v1821
        %v1834 = vmul.f32 %v1831, %v1822
        %v1835 = vlaneseq
        %v1836 = vshrl.u32 %v1835, 7
        %v1837 = vsub.s32 0, %v1836
        %v1838 = vrot.slane %v1820, %v1837
        %v1839 = vmul.f32 %v1833, %v1838
        %v1840 = vmul.f32 %v1834, %v1838
        %v1841 = vsub.f32 0.0, %v1839
        %v1842 = vsub.f32 0.0, %v1840
        %v1843 = vpack.c.bf16 %v1842, %v1841
        %v1846 = vunpack.c.l.b16 %v1717
        %v1847 = vunpack.c.l.b16 %v1718
        %v1848 = vpack.c.b16 %v1847, %v1846
        %v1851 = vsel %vm458, %v1843, 0
        %1853 = vmatprep.subr.bf16.mxu0 0
        %1854 = vmatpush1.bf16.msra.mxu0 0
        %1855 = vmatprep.subr.bf16.mxu0 0
        %1856 = vmatpush1.bf16.msra.mxu0 0
        %1857 = vmatprep.subr.bf16.mxu0 0
        %1858 = vmatpush1.bf16.msra.mxu0 0
        %1859 = vmatprep.subr.bf16.mxu0 0
        %1860 = vmatpush1.bf16.msra.mxu0 0
        %1861 = vmatprep.subr.bf16.mxu0 0
        %1862 = vmatpush1.bf16.msra.mxu0 0
        %1863 = vmatprep.subr.bf16.mxu0 0
        %1864 = vmatpush1.bf16.msra.mxu0 0
        %1865 = vmatprep.subr.bf16.mxu0 0
        %1866 = vmatpush1.bf16.msra.mxu0 0
        %1867 = vmatprep.subr.bf16.mxu0 0
        %1868 = vmatpush1.bf16.msra.mxu0 %v1848
        %1869 = vmatprep.subr.bf16.mxu0 0
        %1870 = vmatpush2.bf16.msra.mxu0 0
        %1871 = vmatprep.subr.bf16.mxu0 0
        %1872 = vmatpush2.bf16.msra.mxu0 0
        %1873 = vmatprep.subr.bf16.mxu0 0
        %1874 = vmatpush2.bf16.msra.mxu0 0
        %1875 = vmatprep.subr.bf16.mxu0 0
        %1876 = vmatpush2.bf16.msra.mxu0 0
        %1877 = vmatprep.subr.bf16.mxu0 0
        %1878 = vmatpush2.bf16.msra.mxu0 0
        %1879 = vmatprep.subr.bf16.mxu0 0
        %1880 = vmatpush2.bf16.msra.mxu0 0
        %1881 = vmatprep.subr.bf16.mxu0 0
        %1882 = vmatpush2.bf16.msra.mxu0 0
        %1883 = vmatprep.subr.bf16.mxu0 0
        %1884 = vmatpush2.bf16.msra.mxu0 0
        %1885 = vmatprep.mubr.bf16.mxu0 0
        %1886 = vmatmul.mubr.bf16.gmra.mxu0 %v1851
        %v1887 = vpop.f32.mrf.mxu0
        %v1888 = vadd.f32 0.0, %v1887
        %v1889 = vpop.f32.mrf.mxu0
        %v1890 = vpop.f32.mrf.mxu0
        %v1891 = vadd.f32 0.0, %v1890
        %v1892 = vpop.f32.mrf.mxu0
        %1893 = vdwg.mxu0
        %v1894 = vpack.c.bf16 %v1891, %v1888
        %1895 = vmatprep.subr.bf16.mxu0 0
        %1896 = vmatpush1.bf16.msra.mxu0 0
        %1897 = vmatprep.subr.bf16.mxu0 0
        %1898 = vmatpush1.bf16.msra.mxu0 0
        %1899 = vmatprep.subr.bf16.mxu0 0
        %1900 = vmatpush1.bf16.msra.mxu0 0
        %1901 = vmatprep.subr.bf16.mxu0 0
        %1902 = vmatpush1.bf16.msra.mxu0 0
        %1903 = vmatprep.subr.bf16.mxu0 0
        %1904 = vmatpush1.bf16.msra.mxu0 0
        %1905 = vmatprep.subr.bf16.mxu0 0
        %1906 = vmatpush1.bf16.msra.mxu0 0
        %1907 = vmatprep.subr.bf16.mxu0 0
        %1908 = vmatpush1.bf16.msra.mxu0 0
        %1909 = vmatprep.subr.bf16.mxu0 0
        %1910 = vmatpush1.bf16.msra.mxu0 %v1894
        %1911 = vmatprep.subr.bf16.mxu0 0
        %1912 = vmatpush2.bf16.msra.mxu0 0
        %1913 = vmatprep.subr.bf16.mxu0 0
        %1914 = vmatpush2.bf16.msra.mxu0 0
        %1915 = vmatprep.subr.bf16.mxu0 0
        %1916 = vmatpush2.bf16.msra.mxu0 0
        %1917 = vmatprep.subr.bf16.mxu0 0
        %1918 = vmatpush2.bf16.msra.mxu0 0
        %1919 = vmatprep.subr.bf16.mxu0 0
        %1920 = vmatpush2.bf16.msra.mxu0 0
        %1921 = vmatprep.subr.bf16.mxu0 0
        %1922 = vmatpush2.bf16.msra.mxu0 0
        %1923 = vmatprep.subr.bf16.mxu0 0
        %1924 = vmatpush2.bf16.msra.mxu0 0
        %1925 = vmatprep.subr.bf16.mxu0 0
        %1926 = vmatpush2.bf16.msra.mxu0 0
        %1927 = vmatprep.mubr.bf16.mxu0 0
        %1928 = vmatmul.mubr.bf16.gmra.mxu0 %v1851
        %v1929 = vpop.f32.mrf.mxu0
        %v1930 = vadd.f32 0.0, %v1929
        %v1931 = vpop.f32.mrf.mxu0
        %v1932 = vpop.f32.mrf.mxu0
        %v1933 = vadd.f32 0.0, %v1932
        %v1934 = vpop.f32.mrf.mxu0
        %1935 = vdwg.mxu0
        %v1936 = vmul.f32 %v1930, 2.0
        %v1937 = vmul.f32 %v1933, 2.0
        %v1938 = vunpack.c.l.bf16 %v1717
        %v1939 = vunpack.c.l.bf16 %v1718
        %v1940 = vsub.f32 %v1936, %v1938
        %v1941 = vsub.f32 %v1937, %v1939
        %v1943 = vsel %vm458, %v1894, 0
        %1945 = vmatprep.subr.bf16.mxu0 0
        %1946 = vmatpush1.bf16.msra.mxu0 0
        %1947 = vmatprep.subr.bf16.mxu0 0
        %1948 = vmatpush1.bf16.msra.mxu0 0
        %1949 = vmatprep.subr.bf16.mxu0 0
        %1950 = vmatpush1.bf16.msra.mxu0 0
        %1951 = vmatprep.subr.bf16.mxu0 0
        %1952 = vmatpush1.bf16.msra.mxu0 0
        %1953 = vmatprep.subr.bf16.mxu0 0
        %1954 = vmatpush1.bf16.msra.mxu0 0
        %1955 = vmatprep.subr.bf16.mxu0 0
        %1956 = vmatpush1.bf16.msra.mxu0 0
        %1957 = vmatprep.subr.bf16.mxu0 0
        %1958 = vmatpush1.bf16.msra.mxu0 0
        %1959 = vmatprep.subr.bf16.mxu0 0
        %1960 = vmatpush1.bf16.msra.mxu0 %v681
        %1961 = vmatprep.subr.bf16.mxu0 0
        %1962 = vmatpush2.bf16.msra.mxu0 0
        %1963 = vmatprep.subr.bf16.mxu0 0
        %1964 = vmatpush2.bf16.msra.mxu0 0
        %1965 = vmatprep.subr.bf16.mxu0 0
        %1966 = vmatpush2.bf16.msra.mxu0 0
        %1967 = vmatprep.subr.bf16.mxu0 0
        %1968 = vmatpush2.bf16.msra.mxu0 0
        %1969 = vmatprep.subr.bf16.mxu0 0
        %1970 = vmatpush2.bf16.msra.mxu0 0
        %1971 = vmatprep.subr.bf16.mxu0 0
        %1972 = vmatpush2.bf16.msra.mxu0 0
        %1973 = vmatprep.subr.bf16.mxu0 0
        %1974 = vmatpush2.bf16.msra.mxu0 0
        %1975 = vmatprep.subr.bf16.mxu0 0
        %1976 = vmatpush2.bf16.msra.mxu0 0
        %1977 = vmatprep.mubr.bf16.mxu0 0
        %1978 = vmatmul.mubr.bf16.gmra.mxu0 %v1943
        %v1979 = vpop.f32.mrf.mxu0
        %v1980 = vadd.f32 0.0, %v1979
        %v1981 = vpop.f32.mrf.mxu0
        %v1982 = vpop.f32.mrf.mxu0
        %v1983 = vadd.f32 0.0, %v1982
        %v1984 = vpop.f32.mrf.mxu0
        %1985 = vdwg.mxu0
        %v1987 = vsel %vm458, %v1848, 0
        %1989 = vmatprep.subr.bf16.mxu0 0
        %1990 = vmatpush1.bf16.msra.mxu0 0
        %1991 = vmatprep.subr.bf16.mxu0 0
        %1992 = vmatpush1.bf16.msra.mxu0 0
        %1993 = vmatprep.subr.bf16.mxu0 0
        %1994 = vmatpush1.bf16.msra.mxu0 0
        %1995 = vmatprep.subr.bf16.mxu0 0
        %1996 = vmatpush1.bf16.msra.mxu0 0
        %1997 = vmatprep.subr.bf16.mxu0 0
        %1998 = vmatpush1.bf16.msra.mxu0 0
        %1999 = vmatprep.subr.bf16.mxu0 0
        %2000 = vmatpush1.bf16.msra.mxu0 0
        %2001 = vmatprep.subr.bf16.mxu0 0
        %2002 = vmatpush1.bf16.msra.mxu0 0
        %2003 = vmatprep.subr.bf16.mxu0 0
        %2004 = vmatpush1.bf16.msra.mxu0 %v731
        %2005 = vmatprep.subr.bf16.mxu0 0
        %2006 = vmatpush2.bf16.msra.mxu0 0
        %2007 = vmatprep.subr.bf16.mxu0 0
        %2008 = vmatpush2.bf16.msra.mxu0 0
        %2009 = vmatprep.subr.bf16.mxu0 0
        %2010 = vmatpush2.bf16.msra.mxu0 0
        %2011 = vmatprep.subr.bf16.mxu0 0
        %2012 = vmatpush2.bf16.msra.mxu0 0
        %2013 = vmatprep.subr.bf16.mxu0 0
        %2014 = vmatpush2.bf16.msra.mxu0 0
        %2015 = vmatprep.subr.bf16.mxu0 0
        %2016 = vmatpush2.bf16.msra.mxu0 0
        %2017 = vmatprep.subr.bf16.mxu0 0
        %2018 = vmatpush2.bf16.msra.mxu0 0
        %2019 = vmatprep.subr.bf16.mxu0 0
        %2020 = vmatpush2.bf16.msra.mxu0 0
        %2021 = vmatprep.mubr.bf16.mxu0 0
        %2022 = vmatmul.mubr.bf16.gmra.mxu0 %v1987
        %v2023 = vpop.f32.mrf.mxu0
        %v2024 = vadd.f32 %v1980, %v2023
        %v2025 = vpop.f32.mrf.mxu0
        %v2026 = vpop.f32.mrf.mxu0
        %v2027 = vadd.f32 %v1983, %v2026
        %v2028 = vpop.f32.mrf.mxu0
        %2029 = vdwg.mxu0
        %v2030 = vpack.c.bf16 %v1941, %v1940
        %v2032 = vsel %vm458, %v2030, 0
        %2034 = vmatprep.subr.bf16.mxu0 0
        %2035 = vmatpush1.bf16.msra.mxu0 0
        %2036 = vmatprep.subr.bf16.mxu0 0
        %2037 = vmatpush1.bf16.msra.mxu0 0
        %2038 = vmatprep.subr.bf16.mxu0 0
        %2039 = vmatpush1.bf16.msra.mxu0 0
        %2040 = vmatprep.subr.bf16.mxu0 0
        %2041 = vmatpush1.bf16.msra.mxu0 0
        %2042 = vmatprep.subr.bf16.mxu0 0
        %2043 = vmatpush1.bf16.msra.mxu0 0
        %2044 = vmatprep.subr.bf16.mxu0 0
        %2045 = vmatpush1.bf16.msra.mxu0 0
        %2046 = vmatprep.subr.bf16.mxu0 0
        %2047 = vmatpush1.bf16.msra.mxu0 0
        %2048 = vmatprep.subr.bf16.mxu0 0
        %2049 = vmatpush1.bf16.msra.mxu0 %v782
        %2050 = vmatprep.subr.bf16.mxu0 0
        %2051 = vmatpush2.bf16.msra.mxu0 0
        %2052 = vmatprep.subr.bf16.mxu0 0
        %2053 = vmatpush2.bf16.msra.mxu0 0
        %2054 = vmatprep.subr.bf16.mxu0 0
        %2055 = vmatpush2.bf16.msra.mxu0 0
        %2056 = vmatprep.subr.bf16.mxu0 0
        %2057 = vmatpush2.bf16.msra.mxu0 0
        %2058 = vmatprep.subr.bf16.mxu0 0
        %2059 = vmatpush2.bf16.msra.mxu0 0
        %2060 = vmatprep.subr.bf16.mxu0 0
        %2061 = vmatpush2.bf16.msra.mxu0 0
        %2062 = vmatprep.subr.bf16.mxu0 0
        %2063 = vmatpush2.bf16.msra.mxu0 0
        %2064 = vmatprep.subr.bf16.mxu0 0
        %2065 = vmatpush2.bf16.msra.mxu0 0
        %2066 = vmatprep.mubr.bf16.mxu0 0
        %2067 = vmatmul.mubr.bf16.gmra.mxu0 %v2032
        %v2068 = vpop.f32.mrf.mxu0
        %v2069 = vadd.f32 0.0, %v2068
        %v2070 = vpop.f32.mrf.mxu0
        %v2071 = vpop.f32.mrf.mxu0
        %v2072 = vadd.f32 0.0, %v2071
        %v2073 = vpop.f32.mrf.mxu0
        %2074 = vdwg.mxu0
        %v2075 = vadd.f32 %v2024, %v2069
        %v2076 = vadd.f32 %v2027, %v2072
        %v2077 = vadd.f32 %v2075, %v834
        %v2078 = vadd.f32 %v2076, %v834
        %v2079 = vmul.f32 %v2077, %v842
        %v2080 = vmul.f32 %v2078, %v842
        %v2081 = vsel %vm846, %v2079, 0.0
        %2082 = vadd.xlane.f32.xlu0 %v2081
        %v2083 = vpop.xlane.xlu0 %2082
        %v2084 = vsel %vm846, %v2080, 0.0
        %2085 = vadd.xlane.f32.xlu0 %v2084
        %v2086 = vpop.xlane.xlu0 %2085
        %v2088 = vsel %vm846, %v2077, 0
        %v2091 = vsel %vm846, %v2078, 0
        %2093 = vmatprep.subr.mxu0 0.0
        %2094 = vmatpush1.xpose.msra.mxu0 0.0
        %2095 = vmatprep.subr.mxu0 0.0
        %2096 = vmatpush1.xpose.msra.mxu0 0.0
        %2097 = vmatprep.subr.mxu0 0.0
        %2098 = vmatpush1.xpose.msra.mxu0 0.0
        %2099 = vmatprep.subr.mxu0 0.0
        %2100 = vmatpush1.xpose.msra.mxu0 0.0
        %2101 = vmatprep.subr.mxu0 0.0
        %2102 = vmatpush1.xpose.msra.mxu0 0.0
        %2103 = vmatprep.subr.mxu0 0.0
        %2104 = vmatpush1.xpose.msra.mxu0 0.0
        %2105 = vmatprep.subr.mxu0 0.0
        %2106 = vmatpush1.xpose.msra.mxu0 0.0
        %2107 = vmatprep.subr.mxu0 0.0
        %2108 = vmatpush1.xpose.msra.mxu0 0.0
        %2109 = vmatprep.subr.mxu0 0.0
        %2110 = vmatpush1.xpose.msra.mxu0 0.0
        %2111 = vmatprep.subr.mxu0 0.0
        %2112 = vmatpush1.xpose.msra.mxu0 0.0
        %2113 = vmatprep.subr.mxu0 0.0
        %2114 = vmatpush1.xpose.msra.mxu0 0.0
        %2115 = vmatprep.subr.mxu0 0.0
        %2116 = vmatpush1.xpose.msra.mxu0 0.0
        %2117 = vmatprep.subr.mxu0 0.0
        %2118 = vmatpush1.xpose.msra.mxu0 0.0
        %2119 = vmatprep.subr.mxu0 0.0
        %2120 = vmatpush1.xpose.msra.mxu0 0.0
        %2121 = vmatprep.subr.mxu0 0.0
        %2122 = vmatpush1.xpose.msra.mxu0 %v2091
        %2123 = vmatprep.subr.mxu0 0.0
        %2124 = vmatpush1.xpose.msra.mxu0 %v2088
        %2125 = vmatprep.subr.mxu0 0.0
        %2126 = vmatpush2.xpose.msra.mxu0 0.0
        %2127 = vmatprep.subr.mxu0 0.0
        %2128 = vmatpush2.xpose.msra.mxu0 0.0
        %2129 = vmatprep.subr.mxu0 0.0
        %2130 = vmatpush2.xpose.msra.mxu0 0.0
        %2131 = vmatprep.subr.mxu0 0.0
        %2132 = vmatpush2.xpose.msra.mxu0 0.0
        %2133 = vmatprep.subr.mxu0 0.0
        %2134 = vmatpush2.xpose.msra.mxu0 0.0
        %2135 = vmatprep.subr.mxu0 0.0
        %2136 = vmatpush2.xpose.msra.mxu0 0.0
        %2137 = vmatprep.subr.mxu0 0.0
        %2138 = vmatpush2.xpose.msra.mxu0 0.0
        %2139 = vmatprep.subr.mxu0 0.0
        %2140 = vmatpush2.xpose.msra.mxu0 0.0
        %2141 = vmatprep.subr.mxu0 0.0
        %2142 = vmatpush2.xpose.msra.mxu0 0.0
        %2143 = vmatprep.subr.mxu0 0.0
        %2144 = vmatpush2.xpose.msra.mxu0 0.0
        %2145 = vmatprep.subr.mxu0 0.0
        %2146 = vmatpush2.xpose.msra.mxu0 0.0
        %2147 = vmatprep.subr.mxu0 0.0
        %2148 = vmatpush2.xpose.msra.mxu0 0.0
        %2149 = vmatprep.subr.mxu0 0.0
        %2150 = vmatpush2.xpose.msra.mxu0 0.0
        %2151 = vmatprep.subr.mxu0 0.0
        %2152 = vmatpush2.xpose.msra.mxu0 0.0
        %2153 = vmatprep.subr.mxu0 0.0
        %2154 = vmatpush2.xpose.msra.mxu0 0.0
        %2155 = vmatprep.subr.mxu0 0.0
        %2156 = vmatpush2.xpose.msra.mxu0 0.0
        %2157 = vmatprep.mubr.f32.mxu0 0.0
        %2158 = vmatmul.mubr.f32.gmra.mxu0 %v853
        %v2159 = vpop.f32.mrf.mxu0
        %v2160 = vadd.f32 0.0, %v2159
        %v2161 = vpop.f32.mrf.mxu0
        %2162 = vdwg.mxu0
        %v2163 = vxor.u32 %v2083, 2147483648
        %v2164 = vxor.u32 %v2086, 2147483648
        %v2165 = vmul.f32 %v2163, 1.442695
        %v2166 = vpow.pop %v2165
        %v2167 = vmul.f32 %v2164, 1.442695
        %v2168 = vpow.pop %v2167
        %v2169 = vadd.f32 %v2166, 1.0
        %v2170 = vadd.f32 %v2168, 1.0
        %v2171 = vrcp.pop %v2169
        %v2172 = vmul.f32 1.0, %v2171
        %v2173 = vrcp.pop %v2170
        %v2174 = vmul.f32 1.0, %v2173
        %v2175 = vxor.u32 %v2160, 2147483648
        %v2176 = vmul.f32 %v2175, 1.442695
        %v2177 = vpow.pop %v2176
        %v2178 = vadd.f32 %v2177, 1.0
        %v2179 = vrcp.pop %v2178
        %v2180 = vmul.f32 1.0, %v2179
        %v2181 = vlaneseq
        %v2182 = vshrl.u32 %v2181, 7
        %v2183 = vsub.s32 0, %v2182
        %v2184 = vrot.slane %v2180, %v2183
        %vm2185 = vcmp.gt.f32.partialorder %v2184, %v2172
        %vm2186 = vcmp.gt.f32.partialorder %v2184, %v2174
        %vm2187 = vcmp.eq.f32.partialorder %v2184, %v2172
        %vm2188 = vcmp.eq.f32.partialorder %v2184, %v2174
        %vm2189 = vmand %vm2187, %vm957
        %vm2190 = vmand %vm2188, %vm958
        %vm2191 = vmor %vm2185, %vm2189
        %vm2192 = vmor %vm2186, %vm2190
        %v2193 = vsel %vm2191, 1, 0
        %v2194 = vsel %vm2192, 1, 0
        %v2195 = vcvt.s32.f32 %v2193
        %v2196 = vcvt.s32.f32 %v2194
        %v2197 = vsel %vm458, %v2195, 0.0
        %2198 = vadd.xlane.f32.xlu0 %v2197
        %v2199 = vpop.xlane.xlu0 %2198
        %v2200 = vsel %vm458, %v2196, 0.0
        %2201 = vadd.xlane.f32.xlu0 %v2200
        %v2202 = vpop.xlane.xlu0 %2201
        %vm2203 = vcmp.lt.f32.partialorder %v2199, 8.0
        %vm2204 = vcmp.lt.f32.partialorder %v2202, 8.0
        %v2205 = vsel %vm2203, 1, 0
        %v2206 = vsel %vm2204, 1, 0
        %v2207 = vcvt.s32.f32 %v2205
        %v2208 = vcvt.s32.f32 %v2206
        %v2209 = vpack.c.bf16 %v2196, %v2195
        %2210 = vmatprep.subr.bf16.mxu0 0
        %2211 = vmatpush1.bf16.msra.mxu0 0
        %2212 = vmatprep.subr.bf16.mxu0 0
        %2213 = vmatpush1.bf16.msra.mxu0 0
        %2214 = vmatprep.subr.bf16.mxu0 0
        %2215 = vmatpush1.bf16.msra.mxu0 0
        %2216 = vmatprep.subr.bf16.mxu0 0
        %2217 = vmatpush1.bf16.msra.mxu0 0
        %2218 = vmatprep.subr.bf16.mxu0 0
        %2219 = vmatpush1.bf16.msra.mxu0 0
        %2220 = vmatprep.subr.bf16.mxu0 0
        %2221 = vmatpush1.bf16.msra.mxu0 0
        %2222 = vmatprep.subr.bf16.mxu0 0
        %2223 = vmatpush1.bf16.msra.mxu0 0
        %2224 = vmatprep.subr.bf16.mxu0 0
        %2225 = vmatpush1.bf16.msra.mxu0 %v2209
        %2226 = vmatprep.subr.bf16.mxu0 0
        %2227 = vmatpush2.bf16.msra.mxu0 0
        %2228 = vmatprep.subr.bf16.mxu0 0
        %2229 = vmatpush2.bf16.msra.mxu0 0
        %2230 = vmatprep.subr.bf16.mxu0 0
        %2231 = vmatpush2.bf16.msra.mxu0 0
        %2232 = vmatprep.subr.bf16.mxu0 0
        %2233 = vmatpush2.bf16.msra.mxu0 0
        %2234 = vmatprep.subr.bf16.mxu0 0
        %2235 = vmatpush2.bf16.msra.mxu0 0
        %2236 = vmatprep.subr.bf16.mxu0 0
        %2237 = vmatpush2.bf16.msra.mxu0 0
        %2238 = vmatprep.subr.bf16.mxu0 0
        %2239 = vmatpush2.bf16.msra.mxu0 0
        %2240 = vmatprep.subr.bf16.mxu0 0
        %2241 = vmatpush2.bf16.msra.mxu0 0
        %2242 = vmatprep.mubr.bf16.mxu0 0
        %2243 = vmatmul.mubr.bf16.gmra.mxu0 %v505
        %v2244 = vpop.f32.mrf.mxu0
        %v2245 = vadd.f32 0.0, %v2244
        %v2246 = vpop.f32.mrf.mxu0
        %v2247 = vpop.f32.mrf.mxu0
        %v2248 = vpop.f32.mrf.mxu0
        %2249 = vdwg.mxu0
        %v2250 = vsub.f32 15.0, %v2245
        %vm2251 = vcmp.lt.f32.partialorder %v2250, 8.0
        %v2252 = vsel %vm2251, 1, 0
        %v2253 = vcvt.s32.f32 %v2252
        %v2254 = vmul.f32 %v2172, %v2207
        %v2255 = vmul.f32 %v2174, %v2208
        %v2256 = vmul.f32 %v2077, %v2254
        %v2257 = vmul.f32 %v2078, %v2255
        %v2258 = vmul.f32 %v1821, %v2207
        %v2259 = vmul.f32 %v1822, %v2208
        %v2260 = vlaneseq
        %v2261 = vshrl.u32 %v2260, 7
        %v2262 = vsub.s32 0, %v2261
        %v2263 = vrot.slane %v2253, %v2262
        %v2264 = vmul.f32 %v2258, %v2263
        %v2265 = vmul.f32 %v2259, %v2263
        %v2266 = vsub.f32 1.0, %v2207
        %v2267 = vsub.f32 1.0, %v2208
        %v2268 = vmul.f32 %v2266, -1e+30
        %v2269 = vmul.f32 %v2267, -1e+30
        %v2270 = vadd.f32 %v2256, %v2268
        %v2271 = vadd.f32 %v2257, %v2269
        %v2272 = vsel %vm846, %v2270, -inf
        %v2273 = vsel %vm846, %v2271, -inf
        %v2274 = vmax.f32 %v2272, %v2273
        %v2275 = vrot.slane %v2274, 4
        %v2276 = vmax.f32 %v2274, %v2275
        %v2277 = vrot.slane %v2276, 2
        %v2278 = vmax.f32 %v2276, %v2277
        %v2279 = vrot.slane %v2278, 1
        %v2280 = vmax.f32 %v2278, %v2279
        %v2281 = vsel %vm846, %v2256, 0.0
        %v2282 = vsel %vm846, %v2257, 0.0
        %v2283 = vadd.f32 %v2281, %v2282
        %v2284 = vrot.slane %v2283, 4
        %v2285 = vadd.f32 %v2283, %v2284
        %v2286 = vrot.slane %v2285, 2
        %v2287 = vadd.f32 %v2285, %v2286
        %v2288 = vrot.slane %v2287, 1
        %v2289 = vadd.f32 %v2287, %v2288
        %v2290 = vmul.f32 %v2289, 0.125
        %v2291 = vpack.c.bf16 %v2265, %v2264
        %v2292 = vmul.f32 %v2264, 2.0
        %v2293 = vmul.f32 %v2265, 2.0
        %v2295 = vsel %vm458, %v2291, 0
        %2297 = vmatprep.subr.bf16.mxu0 0
        %2298 = vmatpush1.bf16.msra.mxu0 0
        %2299 = vmatprep.subr.bf16.mxu0 0
        %2300 = vmatpush1.bf16.msra.mxu0 0
        %2301 = vmatprep.subr.bf16.mxu0 0
        %2302 = vmatpush1.bf16.msra.mxu0 0
        %2303 = vmatprep.subr.bf16.mxu0 0
        %2304 = vmatpush1.bf16.msra.mxu0 0
        %2305 = vmatprep.subr.bf16.mxu0 0
        %2306 = vmatpush1.bf16.msra.mxu0 0
        %2307 = vmatprep.subr.bf16.mxu0 0
        %2308 = vmatpush1.bf16.msra.mxu0 0
        %2309 = vmatprep.subr.bf16.mxu0 0
        %2310 = vmatpush1.bf16.msra.mxu0 0
        %2311 = vmatprep.subr.bf16.mxu0 0
        %2312 = vmatpush1.bf16.msra.mxu0 %v2291
        %2313 = vmatprep.subr.bf16.mxu0 0
        %2314 = vmatpush2.bf16.msra.mxu0 0
        %2315 = vmatprep.subr.bf16.mxu0 0
        %2316 = vmatpush2.bf16.msra.mxu0 0
        %2317 = vmatprep.subr.bf16.mxu0 0
        %2318 = vmatpush2.bf16.msra.mxu0 0
        %2319 = vmatprep.subr.bf16.mxu0 0
        %2320 = vmatpush2.bf16.msra.mxu0 0
        %2321 = vmatprep.subr.bf16.mxu0 0
        %2322 = vmatpush2.bf16.msra.mxu0 0
        %2323 = vmatprep.subr.bf16.mxu0 0
        %2324 = vmatpush2.bf16.msra.mxu0 0
        %2325 = vmatprep.subr.bf16.mxu0 0
        %2326 = vmatpush2.bf16.msra.mxu0 0
        %2327 = vmatprep.subr.bf16.mxu0 0
        %2328 = vmatpush2.bf16.msra.mxu0 0
        %2329 = vmatprep.mubr.bf16.mxu0 0
        %2330 = vmatmul.mubr.bf16.gmra.mxu0 %v2295
        %v2331 = vpop.f32.mrf.mxu0
        %v2332 = vadd.f32 %v2292, %v2331
        %v2333 = vpop.f32.mrf.mxu0
        %v2334 = vpop.f32.mrf.mxu0
        %v2335 = vadd.f32 %v2293, %v2334
        %v2336 = vpop.f32.mrf.mxu0
        %2337 = vdwg.mxu0
        %v2338 = vmul.f32 %v2332, %v409
        %v2339 = vmul.f32 %v2335, %v410
        %v2340 = vpack.c.bf16 %v2339, %v2338
        %v2341 = vpack.c.bf16 %v2257, %v2256
        %v2343 = vsel %vm458, %v2340, 0
        %2345 = vmatprep.subr.bf16.mxu0 0
        %2346 = vmatpush1.bf16.msra.mxu0 0
        %2347 = vmatprep.subr.bf16.mxu0 0
        %2348 = vmatpush1.bf16.msra.mxu0 0
        %2349 = vmatprep.subr.bf16.mxu0 0
        %2350 = vmatpush1.bf16.msra.mxu0 0
        %2351 = vmatprep.subr.bf16.mxu0 0
        %2352 = vmatpush1.bf16.msra.mxu0 0
        %2353 = vmatprep.subr.bf16.mxu0 0
        %2354 = vmatpush1.bf16.msra.mxu0 0
        %2355 = vmatprep.subr.bf16.mxu0 0
        %2356 = vmatpush1.bf16.msra.mxu0 0
        %2357 = vmatprep.subr.bf16.mxu0 0
        %2358 = vmatpush1.bf16.msra.mxu0 0
        %2359 = vmatprep.subr.bf16.mxu0 0
        %2360 = vmatpush1.bf16.msra.mxu0 1065369472
        %2361 = vmatprep.subr.bf16.mxu0 0
        %2362 = vmatpush2.bf16.msra.mxu0 0
        %2363 = vmatprep.subr.bf16.mxu0 0
        %2364 = vmatpush2.bf16.msra.mxu0 0
        %2365 = vmatprep.subr.bf16.mxu0 0
        %2366 = vmatpush2.bf16.msra.mxu0 0
        %2367 = vmatprep.subr.bf16.mxu0 0
        %2368 = vmatpush2.bf16.msra.mxu0 0
        %2369 = vmatprep.subr.bf16.mxu0 0
        %2370 = vmatpush2.bf16.msra.mxu0 0
        %2371 = vmatprep.subr.bf16.mxu0 0
        %2372 = vmatpush2.bf16.msra.mxu0 0
        %2373 = vmatprep.subr.bf16.mxu0 0
        %2374 = vmatpush2.bf16.msra.mxu0 0
        %2375 = vmatprep.subr.bf16.mxu0 0
        %2376 = vmatpush2.bf16.msra.mxu0 0
        %2377 = vmatprep.mubr.bf16.mxu0 0
        %2378 = vmatmul.mubr.bf16.gmra.mxu0 %v2343
        %v2379 = vpop.f32.mrf.mxu0
        %v2380 = vadd.f32 0.0, %v2379
        %v2381 = vpop.f32.mrf.mxu0
        %v2382 = vpop.f32.mrf.mxu0
        %v2383 = vadd.f32 0.0, %v2382
        %v2384 = vpop.f32.mrf.mxu0
        %2385 = vdwg.mxu0
        %2386 = vmatprep.subr.bf16.mxu0 0
        %2387 = vmatpush1.bf16.msra.mxu0 0
        %2388 = vmatprep.subr.bf16.mxu0 0
        %2389 = vmatpush1.bf16.msra.mxu0 0
        %2390 = vmatprep.subr.bf16.mxu0 0
        %2391 = vmatpush1.bf16.msra.mxu0 0
        %2392 = vmatprep.subr.bf16.mxu0 0
        %2393 = vmatpush1.bf16.msra.mxu0 0
        %2394 = vmatprep.subr.bf16.mxu0 0
        %2395 = vmatpush1.bf16.msra.mxu0 0
        %2396 = vmatprep.subr.bf16.mxu0 0
        %2397 = vmatpush1.bf16.msra.mxu0 0
        %2398 = vmatprep.subr.bf16.mxu0 0
        %2399 = vmatpush1.bf16.msra.mxu0 0
        %2400 = vmatprep.subr.bf16.mxu0 0
        %2401 = vmatpush1.bf16.msra.mxu0 %v2340
        %2402 = vmatprep.subr.bf16.mxu0 0
        %2403 = vmatpush2.bf16.msra.mxu0 0
        %2404 = vmatprep.subr.bf16.mxu0 0
        %2405 = vmatpush2.bf16.msra.mxu0 0
        %2406 = vmatprep.subr.bf16.mxu0 0
        %2407 = vmatpush2.bf16.msra.mxu0 0
        %2408 = vmatprep.subr.bf16.mxu0 0
        %2409 = vmatpush2.bf16.msra.mxu0 0
        %2410 = vmatprep.subr.bf16.mxu0 0
        %2411 = vmatpush2.bf16.msra.mxu0 0
        %2412 = vmatprep.subr.bf16.mxu0 0
        %2413 = vmatpush2.bf16.msra.mxu0 0
        %2414 = vmatprep.subr.bf16.mxu0 0
        %2415 = vmatpush2.bf16.msra.mxu0 0
        %2416 = vmatprep.subr.bf16.mxu0 0
        %2417 = vmatpush2.bf16.msra.mxu0 0
        %2418 = vmatprep.mubr.bf16.mxu0 0
        %2419 = vmatmul.mubr.bf16.gmra.mxu0 %v505
        %v2420 = vpop.f32.mrf.mxu0
        %v2421 = vadd.f32 0.0, %v2420
        %v2422 = vpop.f32.mrf.mxu0
        %v2423 = vpop.f32.mrf.mxu0
        %v2424 = vpop.f32.mrf.mxu0
        %2425 = vdwg.mxu0
        %vm2426 = vcmp.gt.f32.partialorder %v2380, 0.0
        %vm2427 = vcmp.gt.f32.partialorder %v2383, 0.0
        %v2428 = vrsqrt.pop %v2380
        %v2429 = vrsqrt.pop %v2383
        %v2430 = vsel %vm2426, %v2428, 0.0
        %v2431 = vsel %vm2427, %v2429, 0.0
        %vm2432 = vcmp.gt.f32.partialorder %v2421, 0.0
        %v2433 = vrsqrt.pop %v2421
        %v2434 = vsel %vm2432, %v2433, 0.0
        %v2435 = vunpack.c.l.bf16 %v2340
        %v2436 = vunpack.c.h.bf16 %v2340
        %2438 = vset.pattern.permute.xlu0 0
        %2439 = vperm.xlu0 %2438, %v2430
        %v2440 = vpop.permute.xlu0 %2439
        %2443 = vset.pattern.permute.xlu0 0
        %2444 = vperm.xlu0 %2443, %v2431
        %v2445 = vpop.permute.xlu0 %2444
        %v2447 = vmul.f32 %v2440, %v2435
        %v2448 = vmul.f32 %v2445, %v2436
        %v2449 = vlaneseq
        %v2450 = vshrl.u32 %v2449, 7
        %v2451 = vsub.s32 0, %v2450
        %v2452 = vrot.slane %v2434, %v2451
        %v2453 = vmul.f32 %v2447, %v2452
        %v2454 = vmul.f32 %v2448, %v2452
        %v2455 = vsub.f32 0.0, %v2453
        %v2456 = vsub.f32 0.0, %v2454
        %v2457 = vpack.c.bf16 %v2456, %v2455
        %v2459 = vsel %vm458, %v2457, 0
        %2461 = vmatprep.subr.bf16.mxu0 0
        %2462 = vmatpush1.bf16.msra.mxu0 0
        %2463 = vmatprep.subr.bf16.mxu0 0
        %2464 = vmatpush1.bf16.msra.mxu0 0
        %2465 = vmatprep.subr.bf16.mxu0 0
        %2466 = vmatpush1.bf16.msra.mxu0 0
        %2467 = vmatprep.subr.bf16.mxu0 0
        %2468 = vmatpush1.bf16.msra.mxu0 0
        %2469 = vmatprep.subr.bf16.mxu0 0
        %2470 = vmatpush1.bf16.msra.mxu0 0
        %2471 = vmatprep.subr.bf16.mxu0 0
        %2472 = vmatpush1.bf16.msra.mxu0 0
        %2473 = vmatprep.subr.bf16.mxu0 0
        %2474 = vmatpush1.bf16.msra.mxu0 0
        %2475 = vmatprep.subr.bf16.mxu0 0
        %2476 = vmatpush1.bf16.msra.mxu0 %v2341
        %2477 = vmatprep.subr.bf16.mxu0 0
        %2478 = vmatpush2.bf16.msra.mxu0 0
        %2479 = vmatprep.subr.bf16.mxu0 0
        %2480 = vmatpush2.bf16.msra.mxu0 0
        %2481 = vmatprep.subr.bf16.mxu0 0
        %2482 = vmatpush2.bf16.msra.mxu0 0
        %2483 = vmatprep.subr.bf16.mxu0 0
        %2484 = vmatpush2.bf16.msra.mxu0 0
        %2485 = vmatprep.subr.bf16.mxu0 0
        %2486 = vmatpush2.bf16.msra.mxu0 0
        %2487 = vmatprep.subr.bf16.mxu0 0
        %2488 = vmatpush2.bf16.msra.mxu0 0
        %2489 = vmatprep.subr.bf16.mxu0 0
        %2490 = vmatpush2.bf16.msra.mxu0 0
        %2491 = vmatprep.subr.bf16.mxu0 0
        %2492 = vmatpush2.bf16.msra.mxu0 0
        %2493 = vmatprep.mubr.bf16.mxu0 0
        %2494 = vmatmul.mubr.bf16.gmra.mxu0 %v2459
        %v2495 = vpop.f32.mrf.mxu0
        %v2496 = vadd.f32 0.0, %v2495
        %v2497 = vpop.f32.mrf.mxu0
        %v2498 = vpop.f32.mrf.mxu0
        %v2499 = vadd.f32 0.0, %v2498
        %v2500 = vpop.f32.mrf.mxu0
        %2501 = vdwg.mxu0
        %v2502 = vpack.c.bf16 %v2499, %v2496
        %2503 = vmatprep.subr.bf16.mxu0 0
        %2504 = vmatpush1.bf16.msra.mxu0 0
        %2505 = vmatprep.subr.bf16.mxu0 0
        %2506 = vmatpush1.bf16.msra.mxu0 0
        %2507 = vmatprep.subr.bf16.mxu0 0
        %2508 = vmatpush1.bf16.msra.mxu0 0
        %2509 = vmatprep.subr.bf16.mxu0 0
        %2510 = vmatpush1.bf16.msra.mxu0 0
        %2511 = vmatprep.subr.bf16.mxu0 0
        %2512 = vmatpush1.bf16.msra.mxu0 0
        %2513 = vmatprep.subr.bf16.mxu0 0
        %2514 = vmatpush1.bf16.msra.mxu0 0
        %2515 = vmatprep.subr.bf16.mxu0 0
        %2516 = vmatpush1.bf16.msra.mxu0 0
        %2517 = vmatprep.subr.bf16.mxu0 0
        %2518 = vmatpush1.bf16.msra.mxu0 %v2502
        %2519 = vmatprep.subr.bf16.mxu0 0
        %2520 = vmatpush2.bf16.msra.mxu0 0
        %2521 = vmatprep.subr.bf16.mxu0 0
        %2522 = vmatpush2.bf16.msra.mxu0 0
        %2523 = vmatprep.subr.bf16.mxu0 0
        %2524 = vmatpush2.bf16.msra.mxu0 0
        %2525 = vmatprep.subr.bf16.mxu0 0
        %2526 = vmatpush2.bf16.msra.mxu0 0
        %2527 = vmatprep.subr.bf16.mxu0 0
        %2528 = vmatpush2.bf16.msra.mxu0 0
        %2529 = vmatprep.subr.bf16.mxu0 0
        %2530 = vmatpush2.bf16.msra.mxu0 0
        %2531 = vmatprep.subr.bf16.mxu0 0
        %2532 = vmatpush2.bf16.msra.mxu0 0
        %2533 = vmatprep.subr.bf16.mxu0 0
        %2534 = vmatpush2.bf16.msra.mxu0 0
        %2535 = vmatprep.mubr.bf16.mxu0 0
        %2536 = vmatmul.mubr.bf16.gmra.mxu0 %v2459
        %v2537 = vpop.f32.mrf.mxu0
        %v2538 = vadd.f32 0.0, %v2537
        %v2539 = vpop.f32.mrf.mxu0
        %v2540 = vpop.f32.mrf.mxu0
        %v2541 = vadd.f32 0.0, %v2540
        %v2542 = vpop.f32.mrf.mxu0
        %2543 = vdwg.mxu0
        %v2544 = vmul.f32 %v2538, 2.0
        %v2545 = vmul.f32 %v2541, 2.0
        %v2546 = vunpack.c.l.bf16 %v2341
        %v2547 = vunpack.c.h.bf16 %v2341
        %v2548 = vsub.f32 %v2544, %v2546
        %v2549 = vsub.f32 %v2545, %v2547
        %v2551 = vsel %vm846, %v2502, 0
        %2553 = vmatprep.subr.bf16.mxu0 0
        %2554 = vmatpush1.bf16.msra.mxu0 0
        %2555 = vmatprep.subr.bf16.mxu0 0
        %2556 = vmatpush1.bf16.msra.mxu0 0
        %2557 = vmatprep.subr.bf16.mxu0 0
        %2558 = vmatpush1.bf16.msra.mxu0 0
        %2559 = vmatprep.subr.bf16.mxu0 0
        %2560 = vmatpush1.bf16.msra.mxu0 0
        %2561 = vmatprep.subr.bf16.mxu0 0
        %2562 = vmatpush1.bf16.msra.mxu0 %v1339
        %2563 = vmatprep.subr.bf16.mxu0 0
        %2564 = vmatpush1.bf16.msra.mxu0 %v1338
        %2565 = vmatprep.subr.bf16.mxu0 0
        %2566 = vmatpush1.bf16.msra.mxu0 %v1337
        %2567 = vmatprep.subr.bf16.mxu0 0
        %2568 = vmatpush1.bf16.msra.mxu0 %v1336
        %2569 = vmatprep.subr.bf16.mxu0 0
        %2570 = vmatpush2.bf16.msra.mxu0 0
        %2571 = vmatprep.subr.bf16.mxu0 0
        %2572 = vmatpush2.bf16.msra.mxu0 0
        %2573 = vmatprep.subr.bf16.mxu0 0
        %2574 = vmatpush2.bf16.msra.mxu0 0
        %2575 = vmatprep.subr.bf16.mxu0 0
        %2576 = vmatpush2.bf16.msra.mxu0 0
        %2577 = vmatprep.subr.bf16.mxu0 0
        %2578 = vmatpush2.bf16.msra.mxu0 0
        %2579 = vmatprep.subr.bf16.mxu0 0
        %2580 = vmatpush2.bf16.msra.mxu0 0
        %2581 = vmatprep.subr.bf16.mxu0 0
        %2582 = vmatpush2.bf16.msra.mxu0 0
        %2583 = vmatprep.subr.bf16.mxu0 0
        %2584 = vmatpush2.bf16.msra.mxu0 0
        %2585 = vmatprep.mubr.bf16.mxu0 0
        %2586 = vmatmul.mubr.bf16.gmra.mxu0 %v2551
        %v2587 = vpop.f32.mrf.mxu0
        %v2588 = vadd.f32 0.0, %v2587
        %v2589 = vpop.f32.mrf.mxu0
        %v2590 = vpop.f32.mrf.mxu0
        %v2591 = vadd.f32 0.0, %v2590
        %v2592 = vpop.f32.mrf.mxu0
        %2593 = vdwg.mxu0
        %v2595 = vsel %vm846, %v2341, 0
        %2597 = vmatprep.subr.bf16.mxu0 0
        %2598 = vmatpush1.bf16.msra.mxu0 0
        %2599 = vmatprep.subr.bf16.mxu0 0
        %2600 = vmatpush1.bf16.msra.mxu0 0
        %2601 = vmatprep.subr.bf16.mxu0 0
        %2602 = vmatpush1.bf16.msra.mxu0 0
        %2603 = vmatprep.subr.bf16.mxu0 0
        %2604 = vmatpush1.bf16.msra.mxu0 0
        %2605 = vmatprep.subr.bf16.mxu0 0
        %2606 = vmatpush1.bf16.msra.mxu0 %v1407
        %2607 = vmatprep.subr.bf16.mxu0 0
        %2608 = vmatpush1.bf16.msra.mxu0 %v1406
        %2609 = vmatprep.subr.bf16.mxu0 0
        %2610 = vmatpush1.bf16.msra.mxu0 %v1405
        %2611 = vmatprep.subr.bf16.mxu0 0
        %2612 = vmatpush1.bf16.msra.mxu0 %v1404
        %2613 = vmatprep.subr.bf16.mxu0 0
        %2614 = vmatpush2.bf16.msra.mxu0 0
        %2615 = vmatprep.subr.bf16.mxu0 0
        %2616 = vmatpush2.bf16.msra.mxu0 0
        %2617 = vmatprep.subr.bf16.mxu0 0
        %2618 = vmatpush2.bf16.msra.mxu0 0
        %2619 = vmatprep.subr.bf16.mxu0 0
        %2620 = vmatpush2.bf16.msra.mxu0 0
        %2621 = vmatprep.subr.bf16.mxu0 0
        %2622 = vmatpush2.bf16.msra.mxu0 0
        %2623 = vmatprep.subr.bf16.mxu0 0
        %2624 = vmatpush2.bf16.msra.mxu0 0
        %2625 = vmatprep.subr.bf16.mxu0 0
        %2626 = vmatpush2.bf16.msra.mxu0 0
        %2627 = vmatprep.subr.bf16.mxu0 0
        %2628 = vmatpush2.bf16.msra.mxu0 0
        %2629 = vmatprep.mubr.bf16.mxu0 0
        %2630 = vmatmul.mubr.bf16.gmra.mxu0 %v2595
        %v2631 = vpop.f32.mrf.mxu0
        %v2632 = vadd.f32 %v2588, %v2631
        %v2633 = vpop.f32.mrf.mxu0
        %v2634 = vpop.f32.mrf.mxu0
        %v2635 = vadd.f32 %v2591, %v2634
        %v2636 = vpop.f32.mrf.mxu0
        %2637 = vdwg.mxu0
        %v2638 = vpack.c.bf16 %v2549, %v2548
        %v2640 = vsel %vm846, %v2638, 0
        %2642 = vmatprep.subr.bf16.mxu0 0
        %2643 = vmatpush1.bf16.msra.mxu0 0
        %2644 = vmatprep.subr.bf16.mxu0 0
        %2645 = vmatpush1.bf16.msra.mxu0 0
        %2646 = vmatprep.subr.bf16.mxu0 0
        %2647 = vmatpush1.bf16.msra.mxu0 0
        %2648 = vmatprep.subr.bf16.mxu0 0
        %2649 = vmatpush1.bf16.msra.mxu0 0
        %2650 = vmatprep.subr.bf16.mxu0 0
        %2651 = vmatpush1.bf16.msra.mxu0 %v1476
        %2652 = vmatprep.subr.bf16.mxu0 0
        %2653 = vmatpush1.bf16.msra.mxu0 %v1475
        %2654 = vmatprep.subr.bf16.mxu0 0
        %2655 = vmatpush1.bf16.msra.mxu0 %v1474
        %2656 = vmatprep.subr.bf16.mxu0 0
        %2657 = vmatpush1.bf16.msra.mxu0 %v1473
        %2658 = vmatprep.subr.bf16.mxu0 0
        %2659 = vmatpush2.bf16.msra.mxu0 0
        %2660 = vmatprep.subr.bf16.mxu0 0
        %2661 = vmatpush2.bf16.msra.mxu0 0
        %2662 = vmatprep.subr.bf16.mxu0 0
        %2663 = vmatpush2.bf16.msra.mxu0 0
        %2664 = vmatprep.subr.bf16.mxu0 0
        %2665 = vmatpush2.bf16.msra.mxu0 0
        %2666 = vmatprep.subr.bf16.mxu0 0
        %2667 = vmatpush2.bf16.msra.mxu0 0
        %2668 = vmatprep.subr.bf16.mxu0 0
        %2669 = vmatpush2.bf16.msra.mxu0 0
        %2670 = vmatprep.subr.bf16.mxu0 0
        %2671 = vmatpush2.bf16.msra.mxu0 0
        %2672 = vmatprep.subr.bf16.mxu0 0
        %2673 = vmatpush2.bf16.msra.mxu0 0
        %2674 = vmatprep.mubr.bf16.mxu0 0
        %2675 = vmatmul.mubr.bf16.gmra.mxu0 %v2640
        %v2676 = vpop.f32.mrf.mxu0
        %v2677 = vadd.f32 0.0, %v2676
        %v2678 = vpop.f32.mrf.mxu0
        %v2679 = vpop.f32.mrf.mxu0
        %v2680 = vadd.f32 0.0, %v2679
        %v2681 = vpop.f32.mrf.mxu0
        %2682 = vdwg.mxu0
        %v2683 = vadd.f32 %v2632, %v2677
        %v2684 = vadd.f32 %v2635, %v2680
        %v2685 = vadd.f32 %v2683, %v1531
        %v2686 = vadd.f32 %v2684, %v1531
        %v2687 = vmul.f32 %v2685, %v1539
        %v2688 = vmul.f32 %v2686, %v1539
        %v2689 = vsel %vm846, %v2687, 0.0
        %2690 = vadd.xlane.f32.xlu0 %v2689
        %v2691 = vpop.xlane.xlu0 %2690
        %v2692 = vsel %vm846, %v2688, 0.0
        %2693 = vadd.xlane.f32.xlu0 %v2692
        %v2694 = vpop.xlane.xlu0 %2693
        %v2696 = vsel %vm846, %v2685, 0
        %v2699 = vsel %vm846, %v2686, 0
        %2701 = vmatprep.subr.mxu0 0.0
        %2702 = vmatpush1.xpose.msra.mxu0 0.0
        %2703 = vmatprep.subr.mxu0 0.0
        %2704 = vmatpush1.xpose.msra.mxu0 0.0
        %2705 = vmatprep.subr.mxu0 0.0
        %2706 = vmatpush1.xpose.msra.mxu0 0.0
        %2707 = vmatprep.subr.mxu0 0.0
        %2708 = vmatpush1.xpose.msra.mxu0 0.0
        %2709 = vmatprep.subr.mxu0 0.0
        %2710 = vmatpush1.xpose.msra.mxu0 0.0
        %2711 = vmatprep.subr.mxu0 0.0
        %2712 = vmatpush1.xpose.msra.mxu0 0.0
        %2713 = vmatprep.subr.mxu0 0.0
        %2714 = vmatpush1.xpose.msra.mxu0 0.0
        %2715 = vmatprep.subr.mxu0 0.0
        %2716 = vmatpush1.xpose.msra.mxu0 0.0
        %2717 = vmatprep.subr.mxu0 0.0
        %2718 = vmatpush1.xpose.msra.mxu0 0.0
        %2719 = vmatprep.subr.mxu0 0.0
        %2720 = vmatpush1.xpose.msra.mxu0 0.0
        %2721 = vmatprep.subr.mxu0 0.0
        %2722 = vmatpush1.xpose.msra.mxu0 0.0
        %2723 = vmatprep.subr.mxu0 0.0
        %2724 = vmatpush1.xpose.msra.mxu0 0.0
        %2725 = vmatprep.subr.mxu0 0.0
        %2726 = vmatpush1.xpose.msra.mxu0 0.0
        %2727 = vmatprep.subr.mxu0 0.0
        %2728 = vmatpush1.xpose.msra.mxu0 0.0
        %2729 = vmatprep.subr.mxu0 0.0
        %2730 = vmatpush1.xpose.msra.mxu0 %v2699
        %2731 = vmatprep.subr.mxu0 0.0
        %2732 = vmatpush1.xpose.msra.mxu0 %v2696
        %2733 = vmatprep.subr.mxu0 0.0
        %2734 = vmatpush2.xpose.msra.mxu0 0.0
        %2735 = vmatprep.subr.mxu0 0.0
        %2736 = vmatpush2.xpose.msra.mxu0 0.0
        %2737 = vmatprep.subr.mxu0 0.0
        %2738 = vmatpush2.xpose.msra.mxu0 0.0
        %2739 = vmatprep.subr.mxu0 0.0
        %2740 = vmatpush2.xpose.msra.mxu0 0.0
        %2741 = vmatprep.subr.mxu0 0.0
        %2742 = vmatpush2.xpose.msra.mxu0 0.0
        %2743 = vmatprep.subr.mxu0 0.0
        %2744 = vmatpush2.xpose.msra.mxu0 0.0
        %2745 = vmatprep.subr.mxu0 0.0
        %2746 = vmatpush2.xpose.msra.mxu0 0.0
        %2747 = vmatprep.subr.mxu0 0.0
        %2748 = vmatpush2.xpose.msra.mxu0 0.0
        %2749 = vmatprep.subr.mxu0 0.0
        %2750 = vmatpush2.xpose.msra.mxu0 0.0
        %2751 = vmatprep.subr.mxu0 0.0
        %2752 = vmatpush2.xpose.msra.mxu0 0.0
        %2753 = vmatprep.subr.mxu0 0.0
        %2754 = vmatpush2.xpose.msra.mxu0 0.0
        %2755 = vmatprep.subr.mxu0 0.0
        %2756 = vmatpush2.xpose.msra.mxu0 0.0
        %2757 = vmatprep.subr.mxu0 0.0
        %2758 = vmatpush2.xpose.msra.mxu0 0.0
        %2759 = vmatprep.subr.mxu0 0.0
        %2760 = vmatpush2.xpose.msra.mxu0 0.0
        %2761 = vmatprep.subr.mxu0 0.0
        %2762 = vmatpush2.xpose.msra.mxu0 0.0
        %2763 = vmatprep.subr.mxu0 0.0
        %2764 = vmatpush2.xpose.msra.mxu0 0.0
        %2765 = vmatprep.mubr.f32.mxu0 0.0
        %2766 = vmatmul.mubr.f32.gmra.mxu0 %v1549
        %v2767 = vpop.f32.mrf.mxu0
        %v2768 = vadd.f32 0.0, %v2767
        %v2769 = vpop.f32.mrf.mxu0
        %2770 = vdwg.mxu0
        %v2771 = vxor.u32 %v2691, 2147483648
        %v2772 = vxor.u32 %v2694, 2147483648
        %v2773 = vmul.f32 %v2771, 1.442695
        %v2774 = vpow.pop %v2773
        %v2775 = vmul.f32 %v2772, 1.442695
        %v2776 = vpow.pop %v2775
        %v2777 = vadd.f32 %v2774, 1.0
        %v2778 = vadd.f32 %v2776, 1.0
        %v2779 = vrcp.pop %v2777
        %v2780 = vmul.f32 1.0, %v2779
        %v2781 = vrcp.pop %v2778
        %v2782 = vmul.f32 1.0, %v2781
        %v2783 = vxor.u32 %v2768, 2147483648
        %v2784 = vmul.f32 %v2783, 1.442695
        %v2785 = vpow.pop %v2784
        %v2786 = vadd.f32 %v2785, 1.0
        %v2787 = vrcp.pop %v2786
        %v2788 = vmul.f32 1.0, %v2787
        %vm2789 = vcmp.gt.f32.partialorder %v2207, 0.0
        %vm2790 = vcmp.gt.f32.partialorder %v2208, 0.0
        %v2791 = vsel %vm2789, %v2780, -1e+30
        %v2792 = vsel %vm2790, %v2782, -1e+30
        %vm2793 = vcmp.gt.f32.partialorder %v2253, 0.0
        %v2794 = vsel %vm2793, %v2788, -1e+30
        %v2795 = vlaneseq
        %v2796 = vshrl.u32 %v2795, 7
        %v2797 = vsub.s32 0, %v2796
        %v2798 = vrot.slane %v2794, %v2797
        %vm2799 = vcmp.gt.f32.partialorder %v2798, %v2791
        %vm2800 = vcmp.gt.f32.partialorder %v2798, %v2792
        %vm2801 = vcmp.eq.f32.partialorder %v2798, %v2791
        %vm2802 = vcmp.eq.f32.partialorder %v2798, %v2792
        %vm2803 = vmand %vm2801, %vm957
        %vm2804 = vmand %vm2802, %vm958
        %vm2805 = vmor %vm2799, %vm2803
        %vm2806 = vmor %vm2800, %vm2804
        %v2807 = vsel %vm2805, 1, 0
        %v2808 = vsel %vm2806, 1, 0
        %v2809 = vcvt.s32.f32 %v2807
        %v2810 = vcvt.s32.f32 %v2808
        %v2811 = vsel %vm458, %v2809, 0.0
        %2812 = vadd.xlane.f32.xlu0 %v2811
        %v2813 = vpop.xlane.xlu0 %2812
        %v2814 = vsel %vm458, %v2810, 0.0
        %2815 = vadd.xlane.f32.xlu0 %v2814
        %v2816 = vpop.xlane.xlu0 %2815
        %vm2817 = vcmp.lt.f32.partialorder %v2813, 4.0
        %vm2818 = vcmp.lt.f32.partialorder %v2816, 4.0
        %v2819 = vsel %vm2817, 1, 0
        %v2820 = vsel %vm2818, 1, 0
        %v2821 = vcvt.s32.f32 %v2819
        %v2822 = vcvt.s32.f32 %v2820
        %v2823 = vmul.f32 %v2780, %v2821
        %v2824 = vmul.f32 %v2782, %v2822
        %v2825 = vmul.f32 %v2685, %v2823
        %v2826 = vmul.f32 %v2686, %v2824
        %v2827 = vsub.f32 1.0, %v2821
        %v2828 = vsub.f32 1.0, %v2822
        %v2829 = vmul.f32 %v2827, -1e+30
        %v2830 = vmul.f32 %v2828, -1e+30
        %v2831 = vadd.f32 %v2825, %v2829
        %v2832 = vadd.f32 %v2826, %v2830
        %v2833 = vsel %vm846, %v2831, -inf
        %v2834 = vsel %vm846, %v2832, -inf
        %v2835 = vmax.f32 %v2833, %v2834
        %v2836 = vrot.slane %v2835, 4
        %v2837 = vmax.f32 %v2835, %v2836
        %v2838 = vrot.slane %v2837, 2
        %v2839 = vmax.f32 %v2837, %v2838
        %v2840 = vrot.slane %v2839, 1
        %v2841 = vmax.f32 %v2839, %v2840
        %v2842 = vsel %vm846, %v2825, 0.0
        %v2843 = vsel %vm846, %v2826, 0.0
        %v2844 = vadd.f32 %v2842, %v2843
        %v2845 = vrot.slane %v2844, 4
        %v2846 = vadd.f32 %v2844, %v2845
        %v2847 = vrot.slane %v2846, 2
        %v2848 = vadd.f32 %v2846, %v2847
        %v2849 = vrot.slane %v2848, 1
        %v2850 = vadd.f32 %v2848, %v2849
        %v2851 = vmul.f32 %v2850, 0.25
        %v2852 = vsel %vm1708, %v2280, %v2290
        %v2853 = vsel %vm1710, %v2852, %v2841
        %v2854 = vsel %vm1712, %v2853, %v2851
        %s2855 = scalar_lea.vmem %s394, 4 [#allocation10]
        %2856 = vst.msk [vmem:[%s2855] sm:$0xf] %vm1714, %v2854
        %s2857 = sand.u32 %s215, 1
        %s2858 = scalar_lea.sflag [#allocation4], %s2857
        %s2859 = sand.u32 %s215, 1
        %s2860 = smul.addr %s2859, 8
        %s2861 = scalar_lea.vmem [#allocation10], %s2860
        // Predicated region
        $region69: #{tpu_custom_call.1} parent=51 // pred_check
          %p2862 = pneg %p225
        $region70: #{tpu_custom_call.1} parent=51 // pred_check_branch
          %2864 = sbr.rel (%p2862) target = $region72
        $region71: #{tpu_custom_call.1} parent=51 // pred_region
          %s2865 = smul.u32 2, %s29
          %s2867 = ssub.s32 128, 128
          %2868 = vsyncadd %s2858, %s2867
          %s2869 = smul.addr %s2865, 64
          %s2870 = scalar_lea.hbm %s8, %s2869
          %s2871 = sshll.u32 %s2861, 4
          %s2872 = int_to_ptr.vmem [resolvable:$true] %s2871
          %2877 = dma.vmem_to_hbm [thread:$0]  %s2872, 128, %s2870, %s2858, 64, 64, 4
        $region72: #{tpu_custom_call.1} parent=51 // pred_fallthru
          _
      $region52: #{tpu_custom_call.1} parent=5 // pred_fallthru
        _
      %p2878 = scmp.le.s32.totalorder 2, %s24
      // Predicated region
      $region73: #{tpu_custom_call.1} parent=5 // pred_check
        %p2879 = pneg %p2878
      $region74: #{tpu_custom_call.1} parent=5 // pred_check_branch
        %2881 = sbr.rel (%p2879) target = $region76
      $region75: #{tpu_custom_call.1} parent=5 // pred_region
        %s2882 = ssub.s32 %s24, 2
        // Predicated region
        $region77: #{tpu_custom_call.1} parent=75 // pred_check
          %p2883 = pneg %p231
        $region78: #{tpu_custom_call.1} parent=75 // pred_check_branch
          %2885 = sbr.rel (%p2883) target = $region80
        $region79: #{tpu_custom_call.1} parent=75 // pred_region
          %s2886 = sand.u32 %s216, 1
          %s2887 = scalar_lea.sflag [#allocation4], %s2886
          %s2888 = sand.u32 %s216, 1
          %s2889 = smul.addr %s2888, 8
          %s2890 = scalar_lea.vmem [#allocation10], %s2889
          %2891 = dma.done %s2887, 128
        $region80: #{tpu_custom_call.1} parent=75 // pred_fallthru
          _
      $region76: #{tpu_custom_call.1} parent=5 // pred_fallthru
        _
    $region6: #{tpu_custom_call.1} parent=1 // loop_footer
      %s28 = sadd.s32 1, %s24
    $region7: #{tpu_custom_call.1} parent=1 // loop_footer_branch
      %23 = sbr.rel target = $region3
    $region8: #{tpu_custom_call.1} parent=1 // loop_exit
      _
    %2892 = vsyncpa [#allocation3], 1
    %s2893 = scalar_lea.sflag [#allocation3], 1
    %2894 = vsyncpa %s2893, 1
    %2895 = vsyncpa [#allocation6], 1
    %s2896 = scalar_lea.sflag [#allocation6], 1
    %2897 = vsyncpa %s2896, 1
    %2898 = vsyncpa [#allocation9], 1
    %2899 = vsyncpa [#allocation4], 1
    %s2900 = scalar_lea.sflag [#allocation4], 1
    %2901 = vsyncpa %s2900, 1

</llo_original>
